<compile_context>
chip_gen: v7x
topology: tpu7x:2x2x1
jax: 0.10.0
libtpu: 0.0.40
codegen_flags: <defaults>
</compile_context>

<pallas_src>
import functools
import math

import jax
import jax.numpy as jnp
from jax.experimental import pallas as pl
from jax.experimental.pallas import tpu as pltpu

VMEM = pltpu.MemorySpace.VMEM
_VMEM_LIMIT = 48 * 1024 * 1024   # scoped-VMEM cap; safe on v5e/v6e (128 MiB) and v7x (64 MiB)


# ----------------------------- helpers -----------------------------

def _pick_tile(dim, target, aligns=(8,)):
    """Largest tile <= target that divides `dim` and is a multiple of one of `aligns`
    (tried in order, so put the MXU-friendly alignment first); otherwise the full dim
    (full-extent blocks are always layout-legal)."""
    if dim <= target:
        return dim
    for align in aligns:
        t = (target // align) * align
        while t >= align:
            if dim % t == 0:
                return t
            t -= align
    return dim


def _gelu_f32(y):
    # tanh-approx GELU, computed in f32.
    return 0.5 * y * (1.0 + jnp.tanh(0.7978845608028654 * (y + 0.044715 * y * y * y)))


# ----------------------------- Pallas kernels -----------------------------

def linear(x, w, b, activation=None, out_dtype=None):
    """y = act(x @ w + b).  x:[M,K] bf16, w:[K,N] bf16, b:[N] f32.
    Large 256-aligned tiles, f32 accumulator, f32 epilogue."""
    M, K = x.shape
    N = w.shape[1]
    out_dtype = out_dtype if out_dtype is not None else x.dtype
    tm = _pick_tile(M, 1024, (256, 8))
    tn = _pick_tile(N, 1024, (256, 128))
    tk = _pick_tile(K, 512, (256, 128))

    def kernel(x_ref, w_ref, b_ref, o_ref, acc_ref):
        @pl.when(pl.program_id(2) == 0)
        def _():
            acc_ref[...] = jnp.zeros_like(acc_ref)

        acc_ref[...] += jnp.dot(x_ref[...], w_ref[...],
                                preferred_element_type=jnp.float32)

        @pl.when(pl.program_id(2) == pl.num_programs(2) - 1)
        def _():
            y = acc_ref[...] + b_ref[...]
            if activation == "gelu":
                y = _gelu_f32(y)
            elif activation == "tanh":
                y = jnp.tanh(y)
            o_ref[...] = y.astype(o_ref.dtype)

    return pl.pallas_call(
        kernel,
        out_shape=jax.ShapeDtypeStruct((M, N), out_dtype),
        grid_spec=pltpu.PrefetchScalarGridSpec(
            num_scalar_prefetch=0,
            grid=(M // tm, N // tn, K // tk),
            in_specs=[
                pl.BlockSpec((tm, tk), lambda i, j, k: (i, k)),
                pl.BlockSpec((tk, tn), lambda i, j, k: (k, j)),
                pl.BlockSpec((1, tn), lambda i, j, k: (0, j)),
            ],
            out_specs=pl.BlockSpec((tm, tn), lambda i, j, k: (i, j)),
            scratch_shapes=[pltpu.VMEM((tm, tn), jnp.float32)],
        ),
        compiler_params=pltpu.CompilerParams(
            dimension_semantics=("parallel", "parallel", "arbitrary"),
            vmem_limit_bytes=_VMEM_LIMIT),
    )(x, w, b.reshape(1, N).astype(jnp.float32))


def linear_add_layernorm(x, w, b, res, gamma, beta, eps=1e-12, out_dtype=None):
    """y = LayerNorm(x @ w + b + res) * gamma + beta, fused.
    x:[M,K] bf16, w:[K,N] bf16, res:[M,N] bf16, b/gamma/beta:[N] f32.
    N (= hidden) is kept whole so LN statistics are computed in one block."""
    M, K = x.shape
    N = w.shape[1]
    out_dtype = out_dtype if out_dtype is not None else res.dtype
    tm = _pick_tile(M, 1024, (256, 8))
    tk = _pick_tile(K, 512, (256, 128))

    def kernel(x_ref, w_ref, b_ref, r_ref, g_ref, be_ref, o_ref, acc_ref):
        @pl.when(pl.program_id(1) == 0)
        def _():
            acc_ref[...] = jnp.zeros_like(acc_ref)

        acc_ref[...] += jnp.dot(x_ref[...], w_ref[...],
                                preferred_element_type=jnp.float32)

        @pl.when(pl.program_id(1) == pl.num_programs(1) - 1)
        def _():
            y = acc_ref[...] + b_ref[...] + r_ref[...].astype(jnp.float32)
            mu = jnp.mean(y, axis=-1, keepdims=True)
            var = jnp.mean(jnp.square(y - mu), axis=-1, keepdims=True)
            normed = (y - mu) * jax.lax.rsqrt(var + eps)
            o_ref[...] = (normed * g_ref[...] + be_ref[...]).astype(o_ref.dtype)

    return pl.pallas_call(
        kernel,
        out_shape=jax.ShapeDtypeStruct((M, N), out_dtype),
        grid_spec=pltpu.PrefetchScalarGridSpec(
            num_scalar_prefetch=0,
            grid=(M // tm, K // tk),
            in_specs=[
                pl.BlockSpec((tm, tk), lambda i, k: (i, k)),
                pl.BlockSpec((tk, N), lambda i, k: (k, 0)),
                pl.BlockSpec((1, N), lambda i, k: (0, 0)),
                pl.BlockSpec((tm, N), lambda i, k: (i, 0)),
                pl.BlockSpec((1, N), lambda i, k: (0, 0)),
                pl.BlockSpec((1, N), lambda i, k: (0, 0)),
            ],
            out_specs=pl.BlockSpec((tm, N), lambda i, k: (i, 0)),
            scratch_shapes=[pltpu.VMEM((tm, N), jnp.float32)],
        ),
        compiler_params=pltpu.CompilerParams(
            dimension_semantics=("parallel", "arbitrary"),
            vmem_limit_bytes=_VMEM_LIMIT),
    )(x, w, b.reshape(1, N).astype(jnp.float32), res,
      gamma.reshape(1, N).astype(jnp.float32), beta.reshape(1, N).astype(jnp.float32))


def embed_layernorm(word_g, pos_e, type_row, gamma, beta, eps=1e-12,
                    out_dtype=jnp.bfloat16):
    """Fused BERT embedding sum + LayerNorm.
    word_g:[B,S,H] bf16 (gathered word embeddings), pos_e:[S,H] bf16,
    type_row:[1,H] bf16 (token_type 0), gamma/beta:[H] f32.  Output [B*S,H] bf16."""
    B, S, H = word_g.shape

    def kernel(w_ref, p_ref, t_ref, g_ref, b_ref, o_ref):
        x = (w_ref[0].astype(jnp.float32) + p_ref[...].astype(jnp.float32)
             + t_ref[...].astype(jnp.float32))
        mu = jnp.mean(x, axis=-1, keepdims=True)
        var = jnp.mean(jnp.square(x - mu), axis=-1, keepdims=True)
        normed = (x - mu) * jax.lax.rsqrt(var + eps)
        o_ref[...] = (normed * g_ref[...] + b_ref[...]).astype(o_ref.dtype)

    return pl.pallas_call(
        kernel,
        out_shape=jax.ShapeDtypeStruct((B * S, H), out_dtype),
        grid_spec=pltpu.PrefetchScalarGridSpec(
            num_scalar_prefetch=0,
            grid=(B,),
            in_specs=[
                pl.BlockSpec((1, S, H), lambda b: (b, 0, 0)),
                pl.BlockSpec((S, H), lambda b: (0, 0)),
                pl.BlockSpec((1, H), lambda b: (0, 0)),
                pl.BlockSpec((1, H), lambda b: (0, 0)),
                pl.BlockSpec((1, H), lambda b: (0, 0)),
            ],
            out_specs=pl.BlockSpec((S, H), lambda b: (b, 0)),
        ),
        compiler_params=pltpu.CompilerParams(
            dimension_semantics=("parallel",),
            vmem_limit_bytes=_VMEM_LIMIT),
    )(word_g, pos_e, type_row,
      gamma.reshape(1, H).astype(jnp.float32), beta.reshape(1, H).astype(jnp.float32))


def flash_attention(q, k, v, bias):
    """Softmax(q k^T + bias) v with online softmax, all heads of one batch element
    per grid step.  q,k,v:[B, heads, S, dh] bf16 (1/sqrt(dh) already folded into q's
    projection); bias:[B, 1, S] f32 additive mask ((1-mask)*-10000), broadcast in-VMEM."""
    B, Hh, S, dh = q.shape
    # 128-aligned kv tile (layout-legal bias block); modest target so the
    # (heads, S, tkv) f32 score temporary stays small even on v7x (64 MiB VMEM).
    tkv = _pick_tile(S, 256, (128,))
    n_kv = S // tkv

    def kernel(q_ref, k_ref, v_ref, b_ref, o_ref, m_sc, l_sc, acc_sc):
        ik = pl.program_id(1)

        @pl.when(ik == 0)
        def _():
            m_sc[...] = jnp.full_like(m_sc, -jnp.inf)
            l_sc[...] = jnp.zeros_like(l_sc)
            acc_sc[...] = jnp.zeros_like(acc_sc)

        qv = q_ref[0]                          # (heads, S, dh)
        kv = k_ref[0]                          # (heads, tkv, dh)
        s = jnp.einsum("hqd,hkd->hqk", qv, kv,
                       preferred_element_type=jnp.float32)
        s = s + b_ref[0]                       # (1, tkv) broadcasts over heads & q
        m_prev = m_sc[...]
        m_new = jnp.maximum(m_prev, jnp.max(s, axis=-1, keepdims=True))
        alpha = jnp.exp(m_prev - m_new)
        p = jnp.exp(s - m_new)
        l_sc[...] = alpha * l_sc[...] + jnp.sum(p, axis=-1, keepdims=True)
        acc_sc[...] = alpha * acc_sc[...] + jnp.einsum(
            "hqk,hkd->hqd", p.astype(v_ref.dtype), v_ref[0],
            preferred_element_type=jnp.float32)
        m_sc[...] = m_new

        @pl.when(ik == pl.num_programs(1) - 1)
        def _():
            o_ref[0] = (acc_sc[...] *
                        pl.reciprocal(l_sc[...], approx=True)).astype(o_ref.dtype)

    return pl.pallas_call(
        kernel,
        out_shape=jax.ShapeDtypeStruct((B, Hh, S, dh), q.dtype),
        grid_spec=pltpu.PrefetchScalarGridSpec(
            num_scalar_prefetch=0,
            grid=(B, n_kv),
            in_specs=[
                pl.BlockSpec((1, Hh, S, dh), lambda b, ik: (b, 0, 0, 0)),
                pl.BlockSpec((1, Hh, tkv, dh), lambda b, ik: (b, 0, ik, 0)),
                pl.BlockSpec((1, Hh, tkv, dh), lambda b, ik: (b, 0, ik, 0)),
                pl.BlockSpec((1, 1, tkv), lambda b, ik: (b, 0, ik)),
            ],
            out_specs=pl.BlockSpec((1, Hh, S, dh), lambda b, ik: (b, 0, 0, 0)),
            scratch_shapes=[
                pltpu.VMEM((Hh, S, 1), jnp.float32),    # running max
                pltpu.VMEM((Hh, S, 1), jnp.float32),    # running sum
                pltpu.VMEM((Hh, S, dh), jnp.float32),   # running output
            ],
        ),
        compiler_params=pltpu.CompilerParams(
            dimension_semantics=("parallel", "arbitrary"),
            vmem_limit_bytes=_VMEM_LIMIT),
    )(q, k, v, bias)


def pooler_projection(cls_tok, pool_w, pool_b, proj_w, proj_b):
    """Fused BERT pooler (dense + tanh on [CLS]) and the TextEncoder projection.
    cls:[B,H] bf16; tiny tensors -> single-block kernel (one launch instead of two)."""
    B, H = cls_tok.shape
    P = proj_w.shape[1]

    def kernel(c_ref, pw_ref, pb_ref, jw_ref, jb_ref, o_ref):
        pooled = jnp.tanh(
            jnp.dot(c_ref[...], pw_ref[...], preferred_element_type=jnp.float32)
            + pb_ref[...])
        out = jnp.dot(pooled.astype(jw_ref.dtype), jw_ref[...],
                      preferred_element_type=jnp.float32) + jb_ref[...]
        o_ref[...] = out.astype(o_ref.dtype)

    return pl.pallas_call(
        kernel,
        out_shape=jax.ShapeDtypeStruct((B, P), jnp.float32),
        in_specs=[pl.BlockSpec(memory_space=VMEM)] * 5,
        out_specs=pl.BlockSpec(memory_space=VMEM),
        compiler_params=pltpu.CompilerParams(vmem_limit_bytes=_VMEM_LIMIT),
    )(cls_tok, pool_w, pool_b.reshape(1, H).astype(jnp.float32),
      proj_w, proj_b.reshape(1, P).astype(jnp.float32))


# ----------------------------- parameter init -----------------------------

def init_params(key, *, vocab, max_pos, type_vocab, hidden, layers, intermediate,
                proj_dim, heads):
    keys = iter(jax.random.split(key, 8 + 8 * layers))

    def nrm(shape):
        return jax.random.normal(next(keys), shape, jnp.float32) * 0.02

    q_scale = 1.0 / math.sqrt(hidden // heads)   # fold 1/sqrt(dh) into the Q projection

    p = {
        "word_emb": nrm((vocab, hidden)).astype(jnp.bfloat16),
        "pos_emb": nrm((max_pos, hidden)).astype(jnp.bfloat16),
        "type_emb": nrm((type_vocab, hidden)).astype(jnp.bfloat16),
        "emb_ln_g": jnp.ones((hidden,), jnp.float32),
        "emb_ln_b": jnp.zeros((hidden,), jnp.float32),
        "layers": [],
        "pool_w": nrm((hidden, hidden)).astype(jnp.bfloat16),
        "pool_b": jnp.zeros((hidden,), jnp.float32),
        "proj_w": nrm((hidden, proj_dim)).astype(jnp.bfloat16),
        "proj_b": jnp.zeros((proj_dim,), jnp.float32),
    }
    for _ in range(layers):
        wq, wk, wv = nrm((hidden, hidden)), nrm((hidden, hidden)), nrm((hidden, hidden))
        bq = jnp.zeros((hidden,), jnp.float32)
        bk = jnp.zeros((hidden,), jnp.float32)
        bv = jnp.zeros((hidden,), jnp.float32)
        p["layers"].append({
            # fused QKV weight, with the attention scale folded (in f32) into the Q part
            "w_qkv": jnp.concatenate([wq * q_scale, wk, wv], axis=1).astype(jnp.bfloat16),
            "b_qkv": jnp.concatenate([bq * q_scale, bk, bv], axis=0),
            "wo": nrm((hidden, hidden)).astype(jnp.bfloat16),
            "bo": jnp.zeros((hidden,), jnp.float32),
            "ln1_g": jnp.ones((hidden,), jnp.float32),
            "ln1_b": jnp.zeros((hidden,), jnp.float32),
            "wi": nrm((hidden, intermediate)).astype(jnp.bfloat16),
            "bi": jnp.zeros((intermediate,), jnp.float32),
            "wo2": nrm((intermediate, hidden)).astype(jnp.bfloat16),
            "bo2": jnp.zeros((hidden,), jnp.float32),
            "ln2_g": jnp.ones((hidden,), jnp.float32),
            "ln2_b": jnp.zeros((hidden,), jnp.float32),
        })
    return p


# ----------------------------- forward pass -----------------------------

def text_encoder_forward(params, input_ids, attention_mask, *, heads):
    B, S = input_ids.shape
    H = params["word_emb"].shape[1]
    dh = H // heads
    BH = B * heads

    # BERT embeddings: word + position + token_type(=0) fused with LayerNorm in-kernel.
    word_g = params["word_emb"][input_ids]            # [B, S, H] bf16 gather
    pos_e = params["pos_emb"][:S]                     # [S, H]
    type_row = params["type_emb"][0:1]                # [1, H]  (token_type_ids == 0)
    x2 = embed_layernorm(word_g, pos_e, type_row,
                         params["emb_ln_g"], params["emb_ln_b"])   # [B*S, H] bf16

    # Small additive attention bias (HF BERT convention): (1 - mask) * -10000, [B,1,S].
    bias = ((1.0 - attention_mask.astype(jnp.float32)) * -10000.0)[:, None, :]

    def split_heads(t):
        return t.reshape(B, S, heads, dh).transpose(0, 2, 1, 3)       # [B, heads, S, dh]

    def merge_heads(t):
        return t.transpose(0, 2, 1, 3).reshape(B * S, H)              # [B*S, H]

    for lyr in params["layers"]:
        # Fused Q/K/V projection: one [H, 3H] matmul.
        qkv = linear(x2, lyr["w_qkv"], lyr["b_qkv"])
        q, k, v = qkv[:, :H], qkv[:, H:2 * H], qkv[:, 2 * H:]
        ctx = flash_attention(split_heads(q), split_heads(k), split_heads(v), bias)
        # Attention output projection fused with residual-add + LayerNorm.
        x2 = linear_add_layernorm(merge_heads(ctx), lyr["wo"], lyr["bo"],
                                  x2, lyr["ln1_g"], lyr["ln1_b"])
        # FFN: up-projection + GELU, then down-projection fused with residual + LayerNorm.
        ff = linear(x2, lyr["wi"], lyr["bi"], activation="gelu")
        x2 = linear_add_layernorm(ff, lyr["wo2"], lyr["bo2"],
                                  x2, lyr["ln2_g"], lyr["ln2_b"])

    # Fused BERT pooler (dense + tanh on [CLS]) and TextEncoder.projection.
    cls_tok = x2.reshape(B, S, H)[:, 0, :]
    out = pooler_projection(cls_tok, params["pool_w"], params["pool_b"],
                            params["proj_w"], params["proj_b"])
    return out


# ----------------------------- main -----------------------------

if __name__ == "__main__":
    # Small, forward-consistent shapes: batch=2, seq=8, hidden(encoder_dim)=32,
    # heads=4, layers=2, intermediate=64, projection_dim=16, vocab=100.
    B, S = 2, 8
    HIDDEN, HEADS, LAYERS, INTER = 32, 4, 2, 64
    PROJ_DIM, VOCAB, MAX_POS, TYPE_VOCAB = 16, 100, 16, 2

    key = jax.random.PRNGKey(0)
    k_param, k_ids = jax.random.split(key)

    params = init_params(k_param, vocab=VOCAB, max_pos=MAX_POS, type_vocab=TYPE_VOCAB,
                         hidden=HIDDEN, layers=LAYERS, intermediate=INTER,
                         proj_dim=PROJ_DIM, heads=HEADS)

    input_ids = jax.random.randint(k_ids, (B, S), 0, VOCAB, dtype=jnp.int32)
    attention_mask = jnp.array([[1, 1, 1, 1, 1, 1, 1, 1],
                                [1, 1, 1, 1, 1, 0, 0, 0]], dtype=jnp.int32)

    fwd = jax.jit(functools.partial(text_encoder_forward, heads=HEADS))
    out = fwd(params, input_ids, attention_mask)
    out = jax.block_until_ready(out)
    assert out.shape == (B, PROJ_DIM), out.shape
    assert bool(jnp.all(jnp.isfinite(out)))
    print("KERNEL_OK")
</pallas_src>

<mosaic_0001>
module attributes {stable_mosaic.version = 11 : i64} {
  func.func @kernel(%arg0: i32, %arg1: memref<1x8x32xbf16, #tpu.memory_space<vmem>>, %arg2: memref<8x32xbf16, #tpu.memory_space<vmem>>, %arg3: memref<1x32xbf16, #tpu.memory_space<vmem>>, %arg4: memref<1x32xf32, #tpu.memory_space<vmem>>, %arg5: memref<1x32xf32, #tpu.memory_space<vmem>>, %arg6: memref<8x32xbf16, #tpu.memory_space<vmem>>) attributes {dimension_semantics = [#tpu.dimension_semantics<parallel>], iteration_bounds = array<i64: 2>, scalar_prefetch = 0 : i64, scratch_operands = 0 : i64, tpu.core_type = #tpu.core_type<tc>, window_params = [{transform_indices = @transform_0, window_bounds = array<i64: 1, 8, 32>}, {pipeline_mode = #tpu.pipeline_mode<synchronous>, transform_indices = @transform_1, window_bounds = array<i64: 8, 32>}, {pipeline_mode = #tpu.pipeline_mode<synchronous>, transform_indices = @transform_2, window_bounds = array<i64: 1, 32>}, {pipeline_mode = #tpu.pipeline_mode<synchronous>, transform_indices = @transform_3, window_bounds = array<i64: 1, 32>}, {pipeline_mode = #tpu.pipeline_mode<synchronous>, transform_indices = @transform_4, window_bounds = array<i64: 1, 32>}, {transform_indices = @transform_5, window_bounds = array<i64: 8, 32>}]} {
    %c0 = arith.constant 0 : index
    %c0_0 = arith.constant 0 : index
    %c0_1 = arith.constant 0 : index
    %0 = vector.load %arg1[%c0, %c0_0, %c0_1] : memref<1x8x32xbf16, #tpu.memory_space<vmem>>, vector<1x8x32xbf16>
    %1 = vector.shape_cast %0 : vector<1x8x32xbf16> to vector<8x32xbf16>
    %2 = arith.extf %1 : vector<8x32xbf16> to vector<8x32xf32>
    %c0_2 = arith.constant 0 : index
    %c0_3 = arith.constant 0 : index
    %3 = vector.load %arg2[%c0_2, %c0_3] : memref<8x32xbf16, #tpu.memory_space<vmem>>, vector<8x32xbf16>
    %4 = arith.extf %3 : vector<8x32xbf16> to vector<8x32xf32>
    %5 = arith.addf %2, %4 : vector<8x32xf32>
    %c0_4 = arith.constant 0 : index
    %c0_5 = arith.constant 0 : index
    %6 = vector.load %arg3[%c0_4, %c0_5] : memref<1x32xbf16, #tpu.memory_space<vmem>>, vector<1x32xbf16>
    %7 = arith.extf %6 : vector<1x32xbf16> to vector<1x32xf32>
    %8 = vector.broadcast %7 : vector<1x32xf32> to vector<8x32xf32>
    %9 = arith.addf %5, %8 : vector<8x32xf32>
    %cst = arith.constant dense<0.000000e+00> : vector<8xf32>
    %10 = vector.multi_reduction <add>, %9, %cst [1] : vector<8x32xf32> to vector<8xf32>
    %11 = vector.shape_cast %10 : vector<8xf32> to vector<8x1xf32>
    %cst_6 = arith.constant 3.200000e+01 : f32
    %12 = vector.broadcast %cst_6 : f32 to vector<8x1xf32>
    %13 = arith.divf %11, %12 : vector<8x1xf32>
    %14 = vector.broadcast %13 : vector<8x1xf32> to vector<8x32xf32>
    %15 = arith.subf %9, %14 : vector<8x32xf32>
    %16 = arith.mulf %15, %15 : vector<8x32xf32>
    %cst_7 = arith.constant dense<0.000000e+00> : vector<8xf32>
    %17 = vector.multi_reduction <add>, %16, %cst_7 [1] : vector<8x32xf32> to vector<8xf32>
    %18 = vector.shape_cast %17 : vector<8xf32> to vector<8x1xf32>
    %cst_8 = arith.constant 3.200000e+01 : f32
    %19 = vector.broadcast %cst_8 : f32 to vector<8x1xf32>
    %20 = arith.divf %18, %19 : vector<8x1xf32>
    %21 = vector.broadcast %13 : vector<8x1xf32> to vector<8x32xf32>
    %22 = arith.subf %9, %21 : vector<8x32xf32>
    %cst_9 = arith.constant 9.99999996E-13 : f32
    %23 = vector.broadcast %cst_9 : f32 to vector<8x1xf32>
    %24 = arith.addf %20, %23 : vector<8x1xf32>
    %25 = math.rsqrt %24 : vector<8x1xf32>
    %26 = vector.broadcast %25 : vector<8x1xf32> to vector<8x32xf32>
    %27 = arith.mulf %22, %26 : vector<8x32xf32>
    %c0_10 = arith.constant 0 : index
    %c0_11 = arith.constant 0 : index
    %28 = vector.load %arg4[%c0_10, %c0_11] : memref<1x32xf32, #tpu.memory_space<vmem>>, vector<1x32xf32>
    %29 = vector.broadcast %28 : vector<1x32xf32> to vector<8x32xf32>
    %30 = arith.mulf %27, %29 : vector<8x32xf32>
    %c0_12 = arith.constant 0 : index
    %c0_13 = arith.constant 0 : index
    %31 = vector.load %arg5[%c0_12, %c0_13] : memref<1x32xf32, #tpu.memory_space<vmem>>, vector<1x32xf32>
    %32 = vector.broadcast %31 : vector<1x32xf32> to vector<8x32xf32>
    %33 = arith.addf %30, %32 : vector<8x32xf32>
    %34 = arith.truncf %33 : vector<8x32xf32> to vector<8x32xbf16>
    %c0_14 = arith.constant 0 : index
    %c0_15 = arith.constant 0 : index
    %35 = vector.load %arg6[%c0_14, %c0_15] : memref<8x32xbf16, #tpu.memory_space<vmem>>, vector<8x32xbf16>
    tpu.vector_store %arg6[%c0_14, %c0_15], %34 {strides = array<i32>} : memref<8x32xbf16, #tpu.memory_space<vmem>>, vector<8x32xbf16>,
    return
  }
  func.func @transform_0(%arg0: i32) -> (i32, i32, i32) {
    %c0_i32 = arith.constant 0 : i32
    %c0_i32_0 = arith.constant 0 : i32
    %c0_i32_1 = arith.constant 0 : i32
    return %arg0, %c0_i32, %c0_i32_0 : i32, i32, i32
  }
  func.func @transform_1(%arg0: i32) -> (i32, i32) {
    %c0_i32 = arith.constant 0 : i32
    %c0_i32_0 = arith.constant 0 : i32
    %c0_i32_1 = arith.constant 0 : i32
    return %c0_i32, %c0_i32_0 : i32, i32
  }
  func.func @transform_2(%arg0: i32) -> (i32, i32) {
    %c0_i32 = arith.constant 0 : i32
    %c0_i32_0 = arith.constant 0 : i32
    %c0_i32_1 = arith.constant 0 : i32
    return %c0_i32, %c0_i32_0 : i32, i32
  }
  func.func @transform_3(%arg0: i32) -> (i32, i32) {
    %c0_i32 = arith.constant 0 : i32
    %c0_i32_0 = arith.constant 0 : i32
    %c0_i32_1 = arith.constant 0 : i32
    return %c0_i32, %c0_i32_0 : i32, i32
  }
  func.func @transform_4(%arg0: i32) -> (i32, i32) {
    %c0_i32 = arith.constant 0 : i32
    %c0_i32_0 = arith.constant 0 : i32
    %c0_i32_1 = arith.constant 0 : i32
    return %c0_i32, %c0_i32_0 : i32, i32
  }
  func.func @transform_5(%arg0: i32) -> (i32, i32) {
    %c0_i32 = arith.constant 0 : i32
    %c0_i32_0 = arith.constant 0 : i32
    return %arg0, %c0_i32 : i32, i32
  }
}

module attributes {stable_mosaic.version = 11 : i64} {
  func.func @kernel(%arg0: i32, %arg1: i32, %arg2: i32, %arg3: memref<16x32xbf16, #tpu.memory_space<vmem>>, %arg4: memref<32x96xbf16, #tpu.memory_space<vmem>>, %arg5: memref<1x96xf32, #tpu.memory_space<vmem>>, %arg6: memref<16x96xbf16, #tpu.memory_space<vmem>>, %arg7: memref<16x96xf32, #tpu.memory_space<vmem>>) attributes {dimension_semantics = [#tpu.dimension_semantics<parallel>, #tpu.dimension_semantics<parallel>, #tpu.dimension_semantics<arbitrary>], iteration_bounds = array<i64: 1, 1, 1>, scalar_prefetch = 0 : i64, scratch_operands = 1 : i64, tpu.core_type = #tpu.core_type<tc>, window_params = [{transform_indices = @transform_0, window_bounds = array<i64: 16, 32>}, {transform_indices = @transform_1, window_bounds = array<i64: 32, 96>}, {transform_indices = @transform_2, window_bounds = array<i64: 1, 96>}, {transform_indices = @transform_3, window_bounds = array<i64: 16, 96>}]} {
    %c0_i32 = arith.constant 0 : i32
    %0 = arith.cmpi eq, %arg2, %c0_i32 : i32
    %1 = arith.extui %0 : i1 to i32
    %c0_i32_0 = arith.constant 0 : i32
    %2 = arith.cmpi ne, %1, %c0_i32_0 : i32
    scf.if %2 {
      %cst_10 = arith.constant 0.000000e+00 : f32
      %12 = vector.broadcast %cst_10 : f32 to vector<16x96xf32>
      %c0_11 = arith.constant 0 : index
      %c0_12 = arith.constant 0 : index
      %13 = vector.load %arg7[%c0_11, %c0_12] : memref<16x96xf32, #tpu.memory_space<vmem>>, vector<16x96xf32>
      tpu.vector_store %arg7[%c0_11, %c0_12], %12 {strides = array<i32>} : memref<16x96xf32, #tpu.memory_space<vmem>>, vector<16x96xf32>,
    } else {
    }
    %c0 = arith.constant 0 : index
    %c0_1 = arith.constant 0 : index
    %3 = vector.load %arg7[%c0, %c0_1] : memref<16x96xf32, #tpu.memory_space<vmem>>, vector<16x96xf32>
    %c0_2 = arith.constant 0 : index
    %c0_3 = arith.constant 0 : index
    %4 = vector.load %arg3[%c0_2, %c0_3] : memref<16x32xbf16, #tpu.memory_space<vmem>>, vector<16x32xbf16>
    %c0_4 = arith.constant 0 : index
    %c0_5 = arith.constant 0 : index
    %5 = vector.load %arg4[%c0_4, %c0_5] : memref<32x96xbf16, #tpu.memory_space<vmem>>, vector<32x96xbf16>
    %cst = arith.constant dense<0.000000e+00> : vector<16x96xf32>
    %6 = tpu.matmul %4, %5, %cst {dimension_numbers = #tpu.dot_dimension_numbers<[1], [0], [0], [1], [0, 0, 1, 1], [], []>} : vector<16x32xbf16>, vector<32x96xbf16>, vector<16x96xf32> -> vector<16x96xf32>
    %7 = arith.addf %3, %6 : vector<16x96xf32>
    %c0_6 = arith.constant 0 : index
    %c0_7 = arith.constant 0 : index
    %8 = vector.load %arg7[%c0_6, %c0_7] : memref<16x96xf32, #tpu.memory_space<vmem>>, vector<16x96xf32>
    tpu.vector_store %arg7[%c0_6, %c0_7], %7 {strides = array<i32>} : memref<16x96xf32, #tpu.memory_space<vmem>>, vector<16x96xf32>,
    %c0_i32_8 = arith.constant 0 : i32
    %9 = arith.cmpi eq, %arg2, %c0_i32_8 : i32
    %10 = arith.extui %9 : i1 to i32
    %c0_i32_9 = arith.constant 0 : i32
    %11 = arith.cmpi ne, %10, %c0_i32_9 : i32
    scf.if %11 {
      %c0_10 = arith.constant 0 : index
      %c0_11 = arith.constant 0 : index
      %12 = vector.load %arg7[%c0_10, %c0_11] : memref<16x96xf32, #tpu.memory_space<vmem>>, vector<16x96xf32>
      %c0_12 = arith.constant 0 : index
      %c0_13 = arith.constant 0 : index
      %13 = vector.load %arg5[%c0_12, %c0_13] : memref<1x96xf32, #tpu.memory_space<vmem>>, vector<1x96xf32>
      %14 = vector.broadcast %13 : vector<1x96xf32> to vector<16x96xf32>
      %15 = arith.addf %12, %14 : vector<16x96xf32>
      %16 = arith.truncf %15 : vector<16x96xf32> to vector<16x96xbf16>
      %c0_14 = arith.constant 0 : index
      %c0_15 = arith.constant 0 : index
      %17 = vector.load %arg6[%c0_14, %c0_15] : memref<16x96xbf16, #tpu.memory_space<vmem>>, vector<16x96xbf16>
      tpu.vector_store %arg6[%c0_14, %c0_15], %16 {strides = array<i32>} : memref<16x96xbf16, #tpu.memory_space<vmem>>, vector<16x96xbf16>,
    } else {
    }
    return
  }
  func.func @transform_0(%arg0: i32, %arg1: i32, %arg2: i32) -> (i32, i32) {
    %c0_i32 = arith.constant 0 : i32
    return %arg0, %arg2 : i32, i32
  }
  func.func @transform_1(%arg0: i32, %arg1: i32, %arg2: i32) -> (i32, i32) {
    %c0_i32 = arith.constant 0 : i32
    return %arg2, %arg1 : i32, i32
  }
  func.func @transform_2(%arg0: i32, %arg1: i32, %arg2: i32) -> (i32, i32) {
    %c0_i32 = arith.constant 0 : i32
    %c0_i32_0 = arith.constant 0 : i32
    return %c0_i32, %arg1 : i32, i32
  }
  func.func @transform_3(%arg0: i32, %arg1: i32, %arg2: i32) -> (i32, i32) {
    %c0_i32 = arith.constant 0 : i32
    return %arg0, %arg1 : i32, i32
  }
}

module attributes {stable_mosaic.version = 11 : i64} {
  func.func @kernel(%arg0: i32, %arg1: i32, %arg2: memref<1x4x8x8xbf16, #tpu.memory_space<vmem>>, %arg3: memref<1x4x8x8xbf16, #tpu.memory_space<vmem>>, %arg4: memref<1x4x8x8xbf16, #tpu.memory_space<vmem>>, %arg5: memref<1x1x8xf32, #tpu.memory_space<vmem>>, %arg6: memref<1x4x8x8xbf16, #tpu.memory_space<vmem>>, %arg7: memref<4x8x1xf32, #tpu.memory_space<vmem>>, %arg8: memref<4x8x1xf32, #tpu.memory_space<vmem>>, %arg9: memref<4x8x8xf32, #tpu.memory_space<vmem>>) attributes {dimension_semantics = [#tpu.dimension_semantics<parallel>, #tpu.dimension_semantics<arbitrary>], iteration_bounds = array<i64: 2, 1>, scalar_prefetch = 0 : i64, scratch_operands = 3 : i64, tpu.core_type = #tpu.core_type<tc>, window_params = [{transform_indices = @transform_0, window_bounds = array<i64: 1, 4, 8, 8>}, {transform_indices = @transform_1, window_bounds = array<i64: 1, 4, 8, 8>}, {transform_indices = @transform_2, window_bounds = array<i64: 1, 4, 8, 8>}, {transform_indices = @transform_3, window_bounds = array<i64: 1, 1, 8>}, {transform_indices = @transform_4, window_bounds = array<i64: 1, 4, 8, 8>}]} {
    %c0_i32 = arith.constant 0 : i32
    %0 = arith.cmpi eq, %arg1, %c0_i32 : i32
    %1 = arith.extui %0 : i1 to i32
    %c0_i32_0 = arith.constant 0 : i32
    %2 = arith.cmpi ne, %1, %c0_i32_0 : i32
    scf.if %2 {
      %cst_38 = arith.constant 0xFF800000 : f32
      %41 = vector.broadcast %cst_38 : f32 to vector<4x8x1xf32>
      %c0_39 = arith.constant 0 : index
      %c0_40 = arith.constant 0 : index
      %c0_41 = arith.constant 0 : index
      %42 = vector.load %arg7[%c0_39, %c0_40, %c0_41] : memref<4x8x1xf32, #tpu.memory_space<vmem>>, vector<4x8x1xf32>
      tpu.vector_store %arg7[%c0_39, %c0_40, %c0_41], %41 {strides = array<i32>} : memref<4x8x1xf32, #tpu.memory_space<vmem>>, vector<4x8x1xf32>,
      %cst_42 = arith.constant 0.000000e+00 : f32
      %43 = vector.broadcast %cst_42 : f32 to vector<4x8x1xf32>
      %c0_43 = arith.constant 0 : index
      %c0_44 = arith.constant 0 : index
      %c0_45 = arith.constant 0 : index
      %44 = vector.load %arg8[%c0_43, %c0_44, %c0_45] : memref<4x8x1xf32, #tpu.memory_space<vmem>>, vector<4x8x1xf32>
      tpu.vector_store %arg8[%c0_43, %c0_44, %c0_45], %43 {strides = array<i32>} : memref<4x8x1xf32, #tpu.memory_space<vmem>>, vector<4x8x1xf32>,
      %cst_46 = arith.constant 0.000000e+00 : f32
      %45 = vector.broadcast %cst_46 : f32 to vector<4x8x8xf32>
      %c0_47 = arith.constant 0 : index
      %c0_48 = arith.constant 0 : index
      %c0_49 = arith.constant 0 : index
      %46 = vector.load %arg9[%c0_47, %c0_48, %c0_49] : memref<4x8x8xf32, #tpu.memory_space<vmem>>, vector<4x8x8xf32>
      tpu.vector_store %arg9[%c0_47, %c0_48, %c0_49], %45 {strides = array<i32>} : memref<4x8x8xf32, #tpu.memory_space<vmem>>, vector<4x8x8xf32>,
    } else {
    }
    %c0 = arith.constant 0 : index
    %c0_1 = arith.constant 0 : index
    %c0_2 = arith.constant 0 : index
    %c0_3 = arith.constant 0 : index
    %3 = vector.load %arg2[%c0, %c0_1, %c0_2, %c0_3] : memref<1x4x8x8xbf16, #tpu.memory_space<vmem>>, vector<1x4x8x8xbf16>
    %4 = vector.shape_cast %3 : vector<1x4x8x8xbf16> to vector<4x8x8xbf16>
    %c0_4 = arith.constant 0 : index
    %c0_5 = arith.constant 0 : index
    %c0_6 = arith.constant 0 : index
    %c0_7 = arith.constant 0 : index
    %5 = vector.load %arg3[%c0_4, %c0_5, %c0_6, %c0_7] : memref<1x4x8x8xbf16, #tpu.memory_space<vmem>>, vector<1x4x8x8xbf16>
    %6 = vector.shape_cast %5 : vector<1x4x8x8xbf16> to vector<4x8x8xbf16>
    "tpu.trace_start"() <{level = 10 : i32, message = "hqd,hkd->hqk"}> : () -> ()
    %cst = arith.constant dense<0.000000e+00> : vector<4x8x8xf32>
    %7 = tpu.matmul %4, %6, %cst {dimension_numbers = #tpu.dot_dimension_numbers<[2], [2], [1], [1], [0, 0, 0, 1, 1, 1], [0], [0]>} : vector<4x8x8xbf16>, vector<4x8x8xbf16>, vector<4x8x8xf32> -> vector<4x8x8xf32>
    "tpu.trace_stop"() : () -> ()
    %c0_8 = arith.constant 0 : index
    %c0_9 = arith.constant 0 : index
    %c0_10 = arith.constant 0 : index
    %8 = vector.load %arg5[%c0_8, %c0_9, %c0_10] : memref<1x1x8xf32, #tpu.memory_space<vmem>>, vector<1x1x8xf32>
    %9 = vector.shape_cast %8 : vector<1x1x8xf32> to vector<1x8xf32>
    %10 = vector.shape_cast %9 : vector<1x8xf32> to vector<1x1x8xf32>
    %11 = vector.broadcast %10 : vector<1x1x8xf32> to vector<4x8x8xf32>
    %12 = arith.addf %7, %11 : vector<4x8x8xf32>
    %c0_11 = arith.constant 0 : index
    %c0_12 = arith.constant 0 : index
    %c0_13 = arith.constant 0 : index
    %13 = vector.load %arg7[%c0_11, %c0_12, %c0_13] : memref<4x8x1xf32, #tpu.memory_space<vmem>>, vector<4x8x1xf32>
    %cst_14 = arith.constant dense<0xFF800000> : vector<4x8xf32>
    %14 = vector.multi_reduction <maximumf>, %12, %cst_14 [2] : vector<4x8x8xf32> to vector<4x8xf32>
    %15 = vector.shape_cast %14 : vector<4x8xf32> to vector<4x8x1xf32>
    %16 = arith.maximumf %13, %15 : vector<4x8x1xf32>
    %17 = arith.subf %13, %16 : vector<4x8x1xf32>
    %18 = math.exp %17 : vector<4x8x1xf32>
    %19 = vector.broadcast %16 : vector<4x8x1xf32> to vector<4x8x8xf32>
    %20 = arith.subf %12, %19 : vector<4x8x8xf32>
    %21 = math.exp %20 : vector<4x8x8xf32>
    %c0_15 = arith.constant 0 : index
    %c0_16 = arith.constant 0 : index
    %c0_17 = arith.constant 0 : index
    %22 = vector.load %arg8[%c0_15, %c0_16, %c0_17] : memref<4x8x1xf32, #tpu.memory_space<vmem>>, vector<4x8x1xf32>
    %23 = arith.mulf %18, %22 : vector<4x8x1xf32>
    %cst_18 = arith.constant dense<0.000000e+00> : vector<4x8xf32>
    %24 = vector.multi_reduction <add>, %21, %cst_18 [2] : vector<4x8x8xf32> to vector<4x8xf32>
    %25 = vector.shape_cast %24 : vector<4x8xf32> to vector<4x8x1xf32>
    %26 = arith.addf %23, %25 : vector<4x8x1xf32>
    %c0_19 = arith.constant 0 : index
    %c0_20 = arith.constant 0 : index
    %c0_21 = arith.constant 0 : index
    %27 = vector.load %arg8[%c0_19, %c0_20, %c0_21] : memref<4x8x1xf32, #tpu.memory_space<vmem>>, vector<4x8x1xf32>
    tpu.vector_store %arg8[%c0_19, %c0_20, %c0_21], %26 {strides = array<i32>} : memref<4x8x1xf32, #tpu.memory_space<vmem>>, vector<4x8x1xf32>,
    %c0_22 = arith.constant 0 : index
    %c0_23 = arith.constant 0 : index
    %c0_24 = arith.constant 0 : index
    %28 = vector.load %arg9[%c0_22, %c0_23, %c0_24] : memref<4x8x8xf32, #tpu.memory_space<vmem>>, vector<4x8x8xf32>
    %29 = vector.broadcast %18 : vector<4x8x1xf32> to vector<4x8x8xf32>
    %30 = arith.mulf %29, %28 : vector<4x8x8xf32>
    %31 = arith.truncf %21 : vector<4x8x8xf32> to vector<4x8x8xbf16>
    %c0_25 = arith.constant 0 : index
    %c0_26 = arith.constant 0 : index
    %c0_27 = arith.constant 0 : index
    %c0_28 = arith.constant 0 : index
    %32 = vector.load %arg4[%c0_25, %c0_26, %c0_27, %c0_28] : memref<1x4x8x8xbf16, #tpu.memory_space<vmem>>, vector<1x4x8x8xbf16>
    %33 = vector.shape_cast %32 : vector<1x4x8x8xbf16> to vector<4x8x8xbf16>
    "tpu.trace_start"() <{level = 10 : i32, message = "hqk,hkd->hqd"}> : () -> ()
    %cst_29 = arith.constant dense<0.000000e+00> : vector<4x8x8xf32>
    %34 = tpu.matmul %31, %33, %cst_29 {dimension_numbers = #tpu.dot_dimension_numbers<[2], [1], [1], [2], [0, 0, 0, 1, 1, 2], [0], [0]>} : vector<4x8x8xbf16>, vector<4x8x8xbf16>, vector<4x8x8xf32> -> vector<4x8x8xf32>
    "tpu.trace_stop"() : () -> ()
    %35 = arith.addf %30, %34 : vector<4x8x8xf32>
    %c0_30 = arith.constant 0 : index
    %c0_31 = arith.constant 0 : index
    %c0_32 = arith.constant 0 : index
    %36 = vector.load %arg9[%c0_30, %c0_31, %c0_32] : memref<4x8x8xf32, #tpu.memory_space<vmem>>, vector<4x8x8xf32>
    tpu.vector_store %arg9[%c0_30, %c0_31, %c0_32], %35 {strides = array<i32>} : memref<4x8x8xf32, #tpu.memory_space<vmem>>, vector<4x8x8xf32>,
    %c0_33 = arith.constant 0 : index
    %c0_34 = arith.constant 0 : index
    %c0_35 = arith.constant 0 : index
    %37 = vector.load %arg7[%c0_33, %c0_34, %c0_35] : memref<4x8x1xf32, #tpu.memory_space<vmem>>, vector<4x8x1xf32>
    tpu.vector_store %arg7[%c0_33, %c0_34, %c0_35], %16 {strides = array<i32>} : memref<4x8x1xf32, #tpu.memory_space<vmem>>, vector<4x8x1xf32>,
    %c0_i32_36 = arith.constant 0 : i32
    %38 = arith.cmpi eq, %arg1, %c0_i32_36 : i32
    %39 = arith.extui %38 : i1 to i32
    %c0_i32_37 = arith.constant 0 : i32
    %40 = arith.cmpi ne, %39, %c0_i32_37 : i32
    scf.if %40 {
      %c0_38 = arith.constant 0 : index
      %c0_39 = arith.constant 0 : index
      %c0_40 = arith.constant 0 : index
      %41 = vector.load %arg9[%c0_38, %c0_39, %c0_40] : memref<4x8x8xf32, #tpu.memory_space<vmem>>, vector<4x8x8xf32>
      %c0_41 = arith.constant 0 : index
      %c0_42 = arith.constant 0 : index
      %c0_43 = arith.constant 0 : index
      %42 = vector.load %arg8[%c0_41, %c0_42, %c0_43] : memref<4x8x1xf32, #tpu.memory_space<vmem>>, vector<4x8x1xf32>
      %43 = tpu.reciprocal %42 {approx = true} : vector<4x8x1xf32> -> vector<4x8x1xf32>
      %44 = vector.broadcast %43 : vector<4x8x1xf32> to vector<4x8x8xf32>
      %45 = arith.mulf %41, %44 : vector<4x8x8xf32>
      %46 = arith.truncf %45 : vector<4x8x8xf32> to vector<4x8x8xbf16>
      %c0_44 = arith.constant 0 : index
      %c0_45 = arith.constant 0 : index
      %c0_46 = arith.constant 0 : index
      %c0_47 = arith.constant 0 : index
      %47 = vector.load %arg6[%c0_44, %c0_45, %c0_46, %c0_47] : memref<1x4x8x8xbf16, #tpu.memory_space<vmem>>, vector<1x4x8x8xbf16>
      %48 = vector.shape_cast %47 : vector<1x4x8x8xbf16> to vector<4x8x8xbf16>
      %49 = vector.shape_cast %46 : vector<4x8x8xbf16> to vector<1x4x8x8xbf16>
      tpu.vector_store %arg6[%c0_44, %c0_45, %c0_46, %c0_47], %49 {strides = array<i32>} : memref<1x4x8x8xbf16, #tpu.memory_space<vmem>>, vector<1x4x8x8xbf16>,
    } else {
    }
    return
  }
  func.func @transform_0(%arg0: i32, %arg1: i32) -> (i32, i32, i32, i32) {
    %c0_i32 = arith.constant 0 : i32
    %c0_i32_0 = arith.constant 0 : i32
    %c0_i32_1 = arith.constant 0 : i32
    %c0_i32_2 = arith.constant 0 : i32
    return %arg0, %c0_i32, %c0_i32_0, %c0_i32_1 : i32, i32, i32, i32
  }
  func.func @transform_1(%arg0: i32, %arg1: i32) -> (i32, i32, i32, i32) {
    %c0_i32 = arith.constant 0 : i32
    %c0_i32_0 = arith.constant 0 : i32
    %c0_i32_1 = arith.constant 0 : i32
    return %arg0, %c0_i32, %arg1, %c0_i32_0 : i32, i32, i32, i32
  }
  func.func @transform_2(%arg0: i32, %arg1: i32) -> (i32, i32, i32, i32) {
    %c0_i32 = arith.constant 0 : i32
    %c0_i32_0 = arith.constant 0 : i32
    %c0_i32_1 = arith.constant 0 : i32
    return %arg0, %c0_i32, %arg1, %c0_i32_0 : i32, i32, i32, i32
  }
  func.func @transform_3(%arg0: i32, %arg1: i32) -> (i32, i32, i32) {
    %c0_i32 = arith.constant 0 : i32
    %c0_i32_0 = arith.constant 0 : i32
    return %arg0, %c0_i32, %arg1 : i32, i32, i32
  }
  func.func @transform_4(%arg0: i32, %arg1: i32) -> (i32, i32, i32, i32) {
    %c0_i32 = arith.constant 0 : i32
    %c0_i32_0 = arith.constant 0 : i32
    %c0_i32_1 = arith.constant 0 : i32
    %c0_i32_2 = arith.constant 0 : i32
    return %arg0, %c0_i32, %c0_i32_0, %c0_i32_1 : i32, i32, i32, i32
  }
}

module attributes {stable_mosaic.version = 11 : i64} {
  func.func @kernel(%arg0: i32, %arg1: i32, %arg2: memref<16x32xbf16, #tpu.memory_space<vmem>>, %arg3: memref<32x32xbf16, #tpu.memory_space<vmem>>, %arg4: memref<1x32xf32, #tpu.memory_space<vmem>>, %arg5: memref<16x32xbf16, #tpu.memory_space<vmem>>, %arg6: memref<1x32xf32, #tpu.memory_space<vmem>>, %arg7: memref<1x32xf32, #tpu.memory_space<vmem>>, %arg8: memref<16x32xbf16, #tpu.memory_space<vmem>>, %arg9: memref<16x32xf32, #tpu.memory_space<vmem>>) attributes {dimension_semantics = [#tpu.dimension_semantics<parallel>, #tpu.dimension_semantics<arbitrary>], iteration_bounds = array<i64: 1, 1>, scalar_prefetch = 0 : i64, scratch_operands = 1 : i64, tpu.core_type = #tpu.core_type<tc>, window_params = [{transform_indices = @transform_0, window_bounds = array<i64: 16, 32>}, {transform_indices = @transform_1, window_bounds = array<i64: 32, 32>}, {pipeline_mode = #tpu.pipeline_mode<synchronous>, transform_indices = @transform_2, window_bounds = array<i64: 1, 32>}, {transform_indices = @transform_3, window_bounds = array<i64: 16, 32>}, {pipeline_mode = #tpu.pipeline_mode<synchronous>, transform_indices = @transform_4, window_bounds = array<i64: 1, 32>}, {pipeline_mode = #tpu.pipeline_mode<synchronous>, transform_indices = @transform_5, window_bounds = array<i64: 1, 32>}, {transform_indices = @transform_6, window_bounds = array<i64: 16, 32>}]} {
    %c0_i32 = arith.constant 0 : i32
    %0 = arith.cmpi eq, %arg1, %c0_i32 : i32
    %1 = arith.extui %0 : i1 to i32
    %c0_i32_0 = arith.constant 0 : i32
    %2 = arith.cmpi ne, %1, %c0_i32_0 : i32
    scf.if %2 {
      %cst_10 = arith.constant 0.000000e+00 : f32
      %12 = vector.broadcast %cst_10 : f32 to vector<16x32xf32>
      %c0_11 = arith.constant 0 : index
      %c0_12 = arith.constant 0 : index
      %13 = vector.load %arg9[%c0_11, %c0_12] : memref<16x32xf32, #tpu.memory_space<vmem>>, vector<16x32xf32>
      tpu.vector_store %arg9[%c0_11, %c0_12], %12 {strides = array<i32>} : memref<16x32xf32, #tpu.memory_space<vmem>>, vector<16x32xf32>,
    } else {
    }
    %c0 = arith.constant 0 : index
    %c0_1 = arith.constant 0 : index
    %3 = vector.load %arg9[%c0, %c0_1] : memref<16x32xf32, #tpu.memory_space<vmem>>, vector<16x32xf32>
    %c0_2 = arith.constant 0 : index
    %c0_3 = arith.constant 0 : index
    %4 = vector.load %arg2[%c0_2, %c0_3] : memref<16x32xbf16, #tpu.memory_space<vmem>>, vector<16x32xbf16>
    %c0_4 = arith.constant 0 : index
    %c0_5 = arith.constant 0 : index
    %5 = vector.load %arg3[%c0_4, %c0_5] : memref<32x32xbf16, #tpu.memory_space<vmem>>, vector<32x32xbf16>
    %cst = arith.constant dense<0.000000e+00> : vector<16x32xf32>
    %6 = tpu.matmul %4, %5, %cst {dimension_numbers = #tpu.dot_dimension_numbers<[1], [0], [0], [1], [0, 0, 1, 1], [], []>} : vector<16x32xbf16>, vector<32x32xbf16>, vector<16x32xf32> -> vector<16x32xf32>
    %7 = arith.addf %3, %6 : vector<16x32xf32>
    %c0_6 = arith.constant 0 : index
    %c0_7 = arith.constant 0 : index
    %8 = vector.load %arg9[%c0_6, %c0_7] : memref<16x32xf32, #tpu.memory_space<vmem>>, vector<16x32xf32>
    tpu.vector_store %arg9[%c0_6, %c0_7], %7 {strides = array<i32>} : memref<16x32xf32, #tpu.memory_space<vmem>>, vector<16x32xf32>,
    %c0_i32_8 = arith.constant 0 : i32
    %9 = arith.cmpi eq, %arg1, %c0_i32_8 : i32
    %10 = arith.extui %9 : i1 to i32
    %c0_i32_9 = arith.constant 0 : i32
    %11 = arith.cmpi ne, %10, %c0_i32_9 : i32
    scf.if %11 {
      %c0_10 = arith.constant 0 : index
      %c0_11 = arith.constant 0 : index
      %12 = vector.load %arg9[%c0_10, %c0_11] : memref<16x32xf32, #tpu.memory_space<vmem>>, vector<16x32xf32>
      %c0_12 = arith.constant 0 : index
      %c0_13 = arith.constant 0 : index
      %13 = vector.load %arg4[%c0_12, %c0_13] : memref<1x32xf32, #tpu.memory_space<vmem>>, vector<1x32xf32>
      %14 = vector.broadcast %13 : vector<1x32xf32> to vector<16x32xf32>
      %15 = arith.addf %12, %14 : vector<16x32xf32>
      %c0_14 = arith.constant 0 : index
      %c0_15 = arith.constant 0 : index
      %16 = vector.load %arg5[%c0_14, %c0_15] : memref<16x32xbf16, #tpu.memory_space<vmem>>, vector<16x32xbf16>
      %17 = arith.extf %16 : vector<16x32xbf16> to vector<16x32xf32>
      %18 = arith.addf %15, %17 : vector<16x32xf32>
      %cst_16 = arith.constant dense<0.000000e+00> : vector<16xf32>
      %19 = vector.multi_reduction <add>, %18, %cst_16 [1] : vector<16x32xf32> to vector<16xf32>
      %20 = vector.shape_cast %19 : vector<16xf32> to vector<16x1xf32>
      %cst_17 = arith.constant 3.200000e+01 : f32
      %21 = vector.broadcast %cst_17 : f32 to vector<16x1xf32>
      %22 = arith.divf %20, %21 : vector<16x1xf32>
      %23 = vector.broadcast %22 : vector<16x1xf32> to vector<16x32xf32>
      %24 = arith.subf %18, %23 : vector<16x32xf32>
      %25 = arith.mulf %24, %24 : vector<16x32xf32>
      %cst_18 = arith.constant dense<0.000000e+00> : vector<16xf32>
      %26 = vector.multi_reduction <add>, %25, %cst_18 [1] : vector<16x32xf32> to vector<16xf32>
      %27 = vector.shape_cast %26 : vector<16xf32> to vector<16x1xf32>
      %cst_19 = arith.constant 3.200000e+01 : f32
      %28 = vector.broadcast %cst_19 : f32 to vector<16x1xf32>
      %29 = arith.divf %27, %28 : vector<16x1xf32>
      %30 = vector.broadcast %22 : vector<16x1xf32> to vector<16x32xf32>
      %31 = arith.subf %18, %30 : vector<16x32xf32>
      %cst_20 = arith.constant 9.99999996E-13 : f32
      %32 = vector.broadcast %cst_20 : f32 to vector<16x1xf32>
      %33 = arith.addf %29, %32 : vector<16x1xf32>
      %34 = math.rsqrt %33 : vector<16x1xf32>
      %35 = vector.broadcast %34 : vector<16x1xf32> to vector<16x32xf32>
      %36 = arith.mulf %31, %35 : vector<16x32xf32>
      %c0_21 = arith.constant 0 : index
      %c0_22 = arith.constant 0 : index
      %37 = vector.load %arg6[%c0_21, %c0_22] : memref<1x32xf32, #tpu.memory_space<vmem>>, vector<1x32xf32>
      %38 = vector.broadcast %37 : vector<1x32xf32> to vector<16x32xf32>
      %39 = arith.mulf %36, %38 : vector<16x32xf32>
      %c0_23 = arith.constant 0 : index
      %c0_24 = arith.constant 0 : index
      %40 = vector.load %arg7[%c0_23, %c0_24] : memref<1x32xf32, #tpu.memory_space<vmem>>, vector<1x32xf32>
      %41 = vector.broadcast %40 : vector<1x32xf32> to vector<16x32xf32>
      %42 = arith.addf %39, %41 : vector<16x32xf32>
      %43 = arith.truncf %42 : vector<16x32xf32> to vector<16x32xbf16>
      %c0_25 = arith.constant 0 : index
      %c0_26 = arith.constant 0 : index
      %44 = vector.load %arg8[%c0_25, %c0_26] : memref<16x32xbf16, #tpu.memory_space<vmem>>, vector<16x32xbf16>
      tpu.vector_store %arg8[%c0_25, %c0_26], %43 {strides = array<i32>} : memref<16x32xbf16, #tpu.memory_space<vmem>>, vector<16x32xbf16>,
    } else {
    }
    return
  }
  func.func @transform_0(%arg0: i32, %arg1: i32) -> (i32, i32) {
    %c0_i32 = arith.constant 0 : i32
    return %arg0, %arg1 : i32, i32
  }
  func.func @transform_1(%arg0: i32, %arg1: i32) -> (i32, i32) {
    %c0_i32 = arith.constant 0 : i32
    %c0_i32_0 = arith.constant 0 : i32
    return %arg1, %c0_i32 : i32, i32
  }
  func.func @transform_2(%arg0: i32, %arg1: i32) -> (i32, i32) {
    %c0_i32 = arith.constant 0 : i32
    %c0_i32_0 = arith.constant 0 : i32
    %c0_i32_1 = arith.constant 0 : i32
    return %c0_i32, %c0_i32_0 : i32, i32
  }
  func.func @transform_3(%arg0: i32, %arg1: i32) -> (i32, i32) {
    %c0_i32 = arith.constant 0 : i32
    %c0_i32_0 = arith.constant 0 : i32
    return %arg0, %c0_i32 : i32, i32
  }
  func.func @transform_4(%arg0: i32, %arg1: i32) -> (i32, i32) {
    %c0_i32 = arith.constant 0 : i32
    %c0_i32_0 = arith.constant 0 : i32
    %c0_i32_1 = arith.constant 0 : i32
    return %c0_i32, %c0_i32_0 : i32, i32
  }
  func.func @transform_5(%arg0: i32, %arg1: i32) -> (i32, i32) {
    %c0_i32 = arith.constant 0 : i32
    %c0_i32_0 = arith.constant 0 : i32
    %c0_i32_1 = arith.constant 0 : i32
    return %c0_i32, %c0_i32_0 : i32, i32
  }
  func.func @transform_6(%arg0: i32, %arg1: i32) -> (i32, i32) {
    %c0_i32 = arith.constant 0 : i32
    %c0_i32_0 = arith.constant 0 : i32
    return %arg0, %c0_i32 : i32, i32
  }
}

module attributes {stable_mosaic.version = 11 : i64} {
  func.func @kernel(%arg0: i32, %arg1: i32, %arg2: i32, %arg3: memref<16x32xbf16, #tpu.memory_space<vmem>>, %arg4: memref<32x64xbf16, #tpu.memory_space<vmem>>, %arg5: memref<1x64xf32, #tpu.memory_space<vmem>>, %arg6: memref<16x64xbf16, #tpu.memory_space<vmem>>, %arg7: memref<16x64xf32, #tpu.memory_space<vmem>>) attributes {dimension_semantics = [#tpu.dimension_semantics<parallel>, #tpu.dimension_semantics<parallel>, #tpu.dimension_semantics<arbitrary>], iteration_bounds = array<i64: 1, 1, 1>, scalar_prefetch = 0 : i64, scratch_operands = 1 : i64, tpu.core_type = #tpu.core_type<tc>, window_params = [{transform_indices = @transform_0, window_bounds = array<i64: 16, 32>}, {transform_indices = @transform_1, window_bounds = array<i64: 32, 64>}, {transform_indices = @transform_2, window_bounds = array<i64: 1, 64>}, {transform_indices = @transform_3, window_bounds = array<i64: 16, 64>}]} {
    %c0_i32 = arith.constant 0 : i32
    %0 = arith.cmpi eq, %arg2, %c0_i32 : i32
    %1 = arith.extui %0 : i1 to i32
    %c0_i32_0 = arith.constant 0 : i32
    %2 = arith.cmpi ne, %1, %c0_i32_0 : i32
    scf.if %2 {
      %cst_10 = arith.constant 0.000000e+00 : f32
      %12 = vector.broadcast %cst_10 : f32 to vector<16x64xf32>
      %c0_11 = arith.constant 0 : index
      %c0_12 = arith.constant 0 : index
      %13 = vector.load %arg7[%c0_11, %c0_12] : memref<16x64xf32, #tpu.memory_space<vmem>>, vector<16x64xf32>
      tpu.vector_store %arg7[%c0_11, %c0_12], %12 {strides = array<i32>} : memref<16x64xf32, #tpu.memory_space<vmem>>, vector<16x64xf32>,
    } else {
    }
    %c0 = arith.constant 0 : index
    %c0_1 = arith.constant 0 : index
    %3 = vector.load %arg7[%c0, %c0_1] : memref<16x64xf32, #tpu.memory_space<vmem>>, vector<16x64xf32>
    %c0_2 = arith.constant 0 : index
    %c0_3 = arith.constant 0 : index
    %4 = vector.load %arg3[%c0_2, %c0_3] : memref<16x32xbf16, #tpu.memory_space<vmem>>, vector<16x32xbf16>
    %c0_4 = arith.constant 0 : index
    %c0_5 = arith.constant 0 : index
    %5 = vector.load %arg4[%c0_4, %c0_5] : memref<32x64xbf16, #tpu.memory_space<vmem>>, vector<32x64xbf16>
    %cst = arith.constant dense<0.000000e+00> : vector<16x64xf32>
    %6 = tpu.matmul %4, %5, %cst {dimension_numbers = #tpu.dot_dimension_numbers<[1], [0], [0], [1], [0, 0, 1, 1], [], []>} : vector<16x32xbf16>, vector<32x64xbf16>, vector<16x64xf32> -> vector<16x64xf32>
    %7 = arith.addf %3, %6 : vector<16x64xf32>
    %c0_6 = arith.constant 0 : index
    %c0_7 = arith.constant 0 : index
    %8 = vector.load %arg7[%c0_6, %c0_7] : memref<16x64xf32, #tpu.memory_space<vmem>>, vector<16x64xf32>
    tpu.vector_store %arg7[%c0_6, %c0_7], %7 {strides = array<i32>} : memref<16x64xf32, #tpu.memory_space<vmem>>, vector<16x64xf32>,
    %c0_i32_8 = arith.constant 0 : i32
    %9 = arith.cmpi eq, %arg2, %c0_i32_8 : i32
    %10 = arith.extui %9 : i1 to i32
    %c0_i32_9 = arith.constant 0 : i32
    %11 = arith.cmpi ne, %10, %c0_i32_9 : i32
    scf.if %11 {
      %c0_10 = arith.constant 0 : index
      %c0_11 = arith.constant 0 : index
      %12 = vector.load %arg7[%c0_10, %c0_11] : memref<16x64xf32, #tpu.memory_space<vmem>>, vector<16x64xf32>
      %c0_12 = arith.constant 0 : index
      %c0_13 = arith.constant 0 : index
      %13 = vector.load %arg5[%c0_12, %c0_13] : memref<1x64xf32, #tpu.memory_space<vmem>>, vector<1x64xf32>
      %14 = vector.broadcast %13 : vector<1x64xf32> to vector<16x64xf32>
      %15 = arith.addf %12, %14 : vector<16x64xf32>
      %cst_14 = arith.constant 5.000000e-01 : f32
      %16 = vector.broadcast %cst_14 : f32 to vector<16x64xf32>
      %17 = arith.mulf %16, %15 : vector<16x64xf32>
      %cst_15 = arith.constant 4.471500e-02 : f32
      %18 = vector.broadcast %cst_15 : f32 to vector<16x64xf32>
      %19 = arith.mulf %18, %15 : vector<16x64xf32>
      %20 = arith.mulf %19, %15 : vector<16x64xf32>
      %21 = arith.mulf %20, %15 : vector<16x64xf32>
      %22 = arith.addf %15, %21 : vector<16x64xf32>
      %cst_16 = arith.constant 0.797884583 : f32
      %23 = vector.broadcast %cst_16 : f32 to vector<16x64xf32>
      %24 = arith.mulf %23, %22 : vector<16x64xf32>
      %25 = math.tanh %24 : vector<16x64xf32>
      %cst_17 = arith.constant 1.000000e+00 : f32
      %26 = vector.broadcast %cst_17 : f32 to vector<16x64xf32>
      %27 = arith.addf %26, %25 : vector<16x64xf32>
      %28 = arith.mulf %17, %27 : vector<16x64xf32>
      %29 = arith.truncf %28 : vector<16x64xf32> to vector<16x64xbf16>
      %c0_18 = arith.constant 0 : index
      %c0_19 = arith.constant 0 : index
      %30 = vector.load %arg6[%c0_18, %c0_19] : memref<16x64xbf16, #tpu.memory_space<vmem>>, vector<16x64xbf16>
      tpu.vector_store %arg6[%c0_18, %c0_19], %29 {strides = array<i32>} : memref<16x64xbf16, #tpu.memory_space<vmem>>, vector<16x64xbf16>,
    } else {
    }
    return
  }
  func.func @transform_0(%arg0: i32, %arg1: i32, %arg2: i32) -> (i32, i32) {
    %c0_i32 = arith.constant 0 : i32
    return %arg0, %arg2 : i32, i32
  }
  func.func @transform_1(%arg0: i32, %arg1: i32, %arg2: i32) -> (i32, i32) {
    %c0_i32 = arith.constant 0 : i32
    return %arg2, %arg1 : i32, i32
  }
  func.func @transform_2(%arg0: i32, %arg1: i32, %arg2: i32) -> (i32, i32) {
    %c0_i32 = arith.constant 0 : i32
    %c0_i32_0 = arith.constant 0 : i32
    return %c0_i32, %arg1 : i32, i32
  }
  func.func @transform_3(%arg0: i32, %arg1: i32, %arg2: i32) -> (i32, i32) {
    %c0_i32 = arith.constant 0 : i32
    return %arg0, %arg1 : i32, i32
  }
}

module attributes {stable_mosaic.version = 11 : i64} {
  func.func @kernel(%arg0: i32, %arg1: i32, %arg2: memref<16x64xbf16, #tpu.memory_space<vmem>>, %arg3: memref<64x32xbf16, #tpu.memory_space<vmem>>, %arg4: memref<1x32xf32, #tpu.memory_space<vmem>>, %arg5: memref<16x32xbf16, #tpu.memory_space<vmem>>, %arg6: memref<1x32xf32, #tpu.memory_space<vmem>>, %arg7: memref<1x32xf32, #tpu.memory_space<vmem>>, %arg8: memref<16x32xbf16, #tpu.memory_space<vmem>>, %arg9: memref<16x32xf32, #tpu.memory_space<vmem>>) attributes {dimension_semantics = [#tpu.dimension_semantics<parallel>, #tpu.dimension_semantics<arbitrary>], iteration_bounds = array<i64: 1, 1>, scalar_prefetch = 0 : i64, scratch_operands = 1 : i64, tpu.core_type = #tpu.core_type<tc>, window_params = [{transform_indices = @transform_0, window_bounds = array<i64: 16, 64>}, {transform_indices = @transform_1, window_bounds = array<i64: 64, 32>}, {pipeline_mode = #tpu.pipeline_mode<synchronous>, transform_indices = @transform_2, window_bounds = array<i64: 1, 32>}, {transform_indices = @transform_3, window_bounds = array<i64: 16, 32>}, {pipeline_mode = #tpu.pipeline_mode<synchronous>, transform_indices = @transform_4, window_bounds = array<i64: 1, 32>}, {pipeline_mode = #tpu.pipeline_mode<synchronous>, transform_indices = @transform_5, window_bounds = array<i64: 1, 32>}, {transform_indices = @transform_6, window_bounds = array<i64: 16, 32>}]} {
    %c0_i32 = arith.constant 0 : i32
    %0 = arith.cmpi eq, %arg1, %c0_i32 : i32
    %1 = arith.extui %0 : i1 to i32
    %c0_i32_0 = arith.constant 0 : i32
    %2 = arith.cmpi ne, %1, %c0_i32_0 : i32
    scf.if %2 {
      %cst_10 = arith.constant 0.000000e+00 : f32
      %12 = vector.broadcast %cst_10 : f32 to vector<16x32xf32>
      %c0_11 = arith.constant 0 : index
      %c0_12 = arith.constant 0 : index
      %13 = vector.load %arg9[%c0_11, %c0_12] : memref<16x32xf32, #tpu.memory_space<vmem>>, vector<16x32xf32>
      tpu.vector_store %arg9[%c0_11, %c0_12], %12 {strides = array<i32>} : memref<16x32xf32, #tpu.memory_space<vmem>>, vector<16x32xf32>,
    } else {
    }
    %c0 = arith.constant 0 : index
    %c0_1 = arith.constant 0 : index
    %3 = vector.load %arg9[%c0, %c0_1] : memref<16x32xf32, #tpu.memory_space<vmem>>, vector<16x32xf32>
    %c0_2 = arith.constant 0 : index
    %c0_3 = arith.constant 0 : index
    %4 = vector.load %arg2[%c0_2, %c0_3] : memref<16x64xbf16, #tpu.memory_space<vmem>>, vector<16x64xbf16>
    %c0_4 = arith.constant 0 : index
    %c0_5 = arith.constant 0 : index
    %5 = vector.load %arg3[%c0_4, %c0_5] : memref<64x32xbf16, #tpu.memory_space<vmem>>, vector<64x32xbf16>
    %cst = arith.constant dense<0.000000e+00> : vector<16x32xf32>
    %6 = tpu.matmul %4, %5, %cst {dimension_numbers = #tpu.dot_dimension_numbers<[1], [0], [0], [1], [0, 0, 1, 1], [], []>} : vector<16x64xbf16>, vector<64x32xbf16>, vector<16x32xf32> -> vector<16x32xf32>
    %7 = arith.addf %3, %6 : vector<16x32xf32>
    %c0_6 = arith.constant 0 : index
    %c0_7 = arith.constant 0 : index
    %8 = vector.load %arg9[%c0_6, %c0_7] : memref<16x32xf32, #tpu.memory_space<vmem>>, vector<16x32xf32>
    tpu.vector_store %arg9[%c0_6, %c0_7], %7 {strides = array<i32>} : memref<16x32xf32, #tpu.memory_space<vmem>>, vector<16x32xf32>,
    %c0_i32_8 = arith.constant 0 : i32
    %9 = arith.cmpi eq, %arg1, %c0_i32_8 : i32
    %10 = arith.extui %9 : i1 to i32
    %c0_i32_9 = arith.constant 0 : i32
    %11 = arith.cmpi ne, %10, %c0_i32_9 : i32
    scf.if %11 {
      %c0_10 = arith.constant 0 : index
      %c0_11 = arith.constant 0 : index
      %12 = vector.load %arg9[%c0_10, %c0_11] : memref<16x32xf32, #tpu.memory_space<vmem>>, vector<16x32xf32>
      %c0_12 = arith.constant 0 : index
      %c0_13 = arith.constant 0 : index
      %13 = vector.load %arg4[%c0_12, %c0_13] : memref<1x32xf32, #tpu.memory_space<vmem>>, vector<1x32xf32>
      %14 = vector.broadcast %13 : vector<1x32xf32> to vector<16x32xf32>
      %15 = arith.addf %12, %14 : vector<16x32xf32>
      %c0_14 = arith.constant 0 : index
      %c0_15 = arith.constant 0 : index
      %16 = vector.load %arg5[%c0_14, %c0_15] : memref<16x32xbf16, #tpu.memory_space<vmem>>, vector<16x32xbf16>
      %17 = arith.extf %16 : vector<16x32xbf16> to vector<16x32xf32>
      %18 = arith.addf %15, %17 : vector<16x32xf32>
      %cst_16 = arith.constant dense<0.000000e+00> : vector<16xf32>
      %19 = vector.multi_reduction <add>, %18, %cst_16 [1] : vector<16x32xf32> to vector<16xf32>
      %20 = vector.shape_cast %19 : vector<16xf32> to vector<16x1xf32>
      %cst_17 = arith.constant 3.200000e+01 : f32
      %21 = vector.broadcast %cst_17 : f32 to vector<16x1xf32>
      %22 = arith.divf %20, %21 : vector<16x1xf32>
      %23 = vector.broadcast %22 : vector<16x1xf32> to vector<16x32xf32>
      %24 = arith.subf %18, %23 : vector<16x32xf32>
      %25 = arith.mulf %24, %24 : vector<16x32xf32>
      %cst_18 = arith.constant dense<0.000000e+00> : vector<16xf32>
      %26 = vector.multi_reduction <add>, %25, %cst_18 [1] : vector<16x32xf32> to vector<16xf32>
      %27 = vector.shape_cast %26 : vector<16xf32> to vector<16x1xf32>
      %cst_19 = arith.constant 3.200000e+01 : f32
      %28 = vector.broadcast %cst_19 : f32 to vector<16x1xf32>
      %29 = arith.divf %27, %28 : vector<16x1xf32>
      %30 = vector.broadcast %22 : vector<16x1xf32> to vector<16x32xf32>
      %31 = arith.subf %18, %30 : vector<16x32xf32>
      %cst_20 = arith.constant 9.99999996E-13 : f32
      %32 = vector.broadcast %cst_20 : f32 to vector<16x1xf32>
      %33 = arith.addf %29, %32 : vector<16x1xf32>
      %34 = math.rsqrt %33 : vector<16x1xf32>
      %35 = vector.broadcast %34 : vector<16x1xf32> to vector<16x32xf32>
      %36 = arith.mulf %31, %35 : vector<16x32xf32>
      %c0_21 = arith.constant 0 : index
      %c0_22 = arith.constant 0 : index
      %37 = vector.load %arg6[%c0_21, %c0_22] : memref<1x32xf32, #tpu.memory_space<vmem>>, vector<1x32xf32>
      %38 = vector.broadcast %37 : vector<1x32xf32> to vector<16x32xf32>
      %39 = arith.mulf %36, %38 : vector<16x32xf32>
      %c0_23 = arith.constant 0 : index
      %c0_24 = arith.constant 0 : index
      %40 = vector.load %arg7[%c0_23, %c0_24] : memref<1x32xf32, #tpu.memory_space<vmem>>, vector<1x32xf32>
      %41 = vector.broadcast %40 : vector<1x32xf32> to vector<16x32xf32>
      %42 = arith.addf %39, %41 : vector<16x32xf32>
      %43 = arith.truncf %42 : vector<16x32xf32> to vector<16x32xbf16>
      %c0_25 = arith.constant 0 : index
      %c0_26 = arith.constant 0 : index
      %44 = vector.load %arg8[%c0_25, %c0_26] : memref<16x32xbf16, #tpu.memory_space<vmem>>, vector<16x32xbf16>
      tpu.vector_store %arg8[%c0_25, %c0_26], %43 {strides = array<i32>} : memref<16x32xbf16, #tpu.memory_space<vmem>>, vector<16x32xbf16>,
    } else {
    }
    return
  }
  func.func @transform_0(%arg0: i32, %arg1: i32) -> (i32, i32) {
    %c0_i32 = arith.constant 0 : i32
    return %arg0, %arg1 : i32, i32
  }
  func.func @transform_1(%arg0: i32, %arg1: i32) -> (i32, i32) {
    %c0_i32 = arith.constant 0 : i32
    %c0_i32_0 = arith.constant 0 : i32
    return %arg1, %c0_i32 : i32, i32
  }
  func.func @transform_2(%arg0: i32, %arg1: i32) -> (i32, i32) {
    %c0_i32 = arith.constant 0 : i32
    %c0_i32_0 = arith.constant 0 : i32
    %c0_i32_1 = arith.constant 0 : i32
    return %c0_i32, %c0_i32_0 : i32, i32
  }
  func.func @transform_3(%arg0: i32, %arg1: i32) -> (i32, i32) {
    %c0_i32 = arith.constant 0 : i32
    %c0_i32_0 = arith.constant 0 : i32
    return %arg0, %c0_i32 : i32, i32
  }
  func.func @transform_4(%arg0: i32, %arg1: i32) -> (i32, i32) {
    %c0_i32 = arith.constant 0 : i32
    %c0_i32_0 = arith.constant 0 : i32
    %c0_i32_1 = arith.constant 0 : i32
    return %c0_i32, %c0_i32_0 : i32, i32
  }
  func.func @transform_5(%arg0: i32, %arg1: i32) -> (i32, i32) {
    %c0_i32 = arith.constant 0 : i32
    %c0_i32_0 = arith.constant 0 : i32
    %c0_i32_1 = arith.constant 0 : i32
    return %c0_i32, %c0_i32_0 : i32, i32
  }
  func.func @transform_6(%arg0: i32, %arg1: i32) -> (i32, i32) {
    %c0_i32 = arith.constant 0 : i32
    %c0_i32_0 = arith.constant 0 : i32
    return %arg0, %c0_i32 : i32, i32
  }
}

module attributes {stable_mosaic.version = 11 : i64} {
  func.func @kernel(%arg0: memref<2x32xbf16, #tpu.memory_space<vmem>>, %arg1: memref<32x32xbf16, #tpu.memory_space<vmem>>, %arg2: memref<1x32xf32, #tpu.memory_space<vmem>>, %arg3: memref<32x16xbf16, #tpu.memory_space<vmem>>, %arg4: memref<1x16xf32, #tpu.memory_space<vmem>>, %arg5: memref<2x16xf32, #tpu.memory_space<vmem>>) attributes {dimension_semantics = [], scalar_prefetch = 0 : i64, scratch_operands = 0 : i64, tpu.core_type = #tpu.core_type<tc>} {
    %c0 = arith.constant 0 : index
    %c0_0 = arith.constant 0 : index
    %0 = vector.load %arg0[%c0, %c0_0] : memref<2x32xbf16, #tpu.memory_space<vmem>>, vector<2x32xbf16>
    %c0_1 = arith.constant 0 : index
    %c0_2 = arith.constant 0 : index
    %1 = vector.load %arg1[%c0_1, %c0_2] : memref<32x32xbf16, #tpu.memory_space<vmem>>, vector<32x32xbf16>
    %cst = arith.constant dense<0.000000e+00> : vector<2x32xf32>
    %2 = tpu.matmul %0, %1, %cst {dimension_numbers = #tpu.dot_dimension_numbers<[1], [0], [0], [1], [0, 0, 1, 1], [], []>} : vector<2x32xbf16>, vector<32x32xbf16>, vector<2x32xf32> -> vector<2x32xf32>
    %c0_3 = arith.constant 0 : index
    %c0_4 = arith.constant 0 : index
    %3 = vector.load %arg2[%c0_3, %c0_4] : memref<1x32xf32, #tpu.memory_space<vmem>>, vector<1x32xf32>
    %4 = vector.broadcast %3 : vector<1x32xf32> to vector<2x32xf32>
    %5 = arith.addf %2, %4 : vector<2x32xf32>
    %6 = math.tanh %5 : vector<2x32xf32>
    %7 = arith.truncf %6 : vector<2x32xf32> to vector<2x32xbf16>
    %c0_5 = arith.constant 0 : index
    %c0_6 = arith.constant 0 : index
    %8 = vector.load %arg3[%c0_5, %c0_6] : memref<32x16xbf16, #tpu.memory_space<vmem>>, vector<32x16xbf16>
    %cst_7 = arith.constant dense<0.000000e+00> : vector<2x16xf32>
    %9 = tpu.matmul %7, %8, %cst_7 {dimension_numbers = #tpu.dot_dimension_numbers<[1], [0], [0], [1], [0, 0, 1, 1], [], []>} : vector<2x32xbf16>, vector<32x16xbf16>, vector<2x16xf32> -> vector<2x16xf32>
    %c0_8 = arith.constant 0 : index
    %c0_9 = arith.constant 0 : index
    %10 = vector.load %arg4[%c0_8, %c0_9] : memref<1x16xf32, #tpu.memory_space<vmem>>, vector<1x16xf32>
    %11 = vector.broadcast %10 : vector<1x16xf32> to vector<2x16xf32>
    %12 = arith.addf %9, %11 : vector<2x16xf32>
    %c0_10 = arith.constant 0 : index
    %c0_11 = arith.constant 0 : index
    %13 = vector.load %arg5[%c0_10, %c0_11] : memref<2x16xf32, #tpu.memory_space<vmem>>, vector<2x16xf32>
    tpu.vector_store %arg5[%c0_10, %c0_11], %12 {strides = array<i32>} : memref<2x16xf32, #tpu.memory_space<vmem>>, vector<2x16xf32>,
    return
  }
}

</mosaic_0001>

<llo_original>
// kernel: text_encoder_forward.12
$region0: #{text_encoder_forward.12}
  #allocation0 [shape = 'u32[]', space=smem, size = 0x4, offset = 0x4, fixed_abs, tag = 'smem constant byte address 0x4 - core index']
  #allocation1 [shape = 'u32[144,128]{1,0:T(1,128)}', space=vmem, size = 0x12000, scoped, tag = 'internal scratch']
  %s0 = inlined_call_operand.vmem [shape: bf16[2,8,32], index: 0, kind: input, shape index: {}]
  %s1 = inlined_call_operand.vmem [shape: bf16[8,32], index: 1, kind: input, shape index: {}]
  %s2 = inlined_call_operand.vmem [shape: bf16[1,32], index: 2, kind: input, shape index: {}]
  %s3 = inlined_call_operand.vmem [shape: f32[1,32], index: 3, kind: input, shape index: {}]
  %s4 = inlined_call_operand.vmem [shape: f32[1,32], index: 4, kind: input, shape index: {}]
  %s5 = inlined_call_operand.vmem [shape: bf16[16,32], index: 5, kind: output, shape index: {}]
  %s6 = sld [smem:[#allocation0]]
  $region53: #{text_encoder_forward.12} parent=0
    _
  %s8 = ssub.s32 1, %s6
  %s9 = scalar_select 0, %s8, %s6
  loop: start=0, step=1, limit=4
  $region2: #{text_encoder_forward.12} parent=0 // loop_pre_header
    _
  $region3: #{text_encoder_forward.12} parent=0 // loop_header
    %s11 = sphi 0, %s15
    %p12 = scmp.ge.s32.totalorder %s11, 4
    %s21 = sphi 0, %s23
    %s24 = sphi 0, %s21
    %s25 = sphi 0, %s24
    %s41 = sphi 0, %s25
    %s45 = sphi 0, %s45
    %s47 = sphi 0, %s45
    %s48 = sphi 0, %s47
    %s62 = sphi 0, %s48
    %s66 = sphi 0, %s66
    %s68 = sphi 0, %s66
    %s69 = sphi 0, %s68
    %s83 = sphi 0, %s69
    %s87 = sphi 0, %s87
    %s89 = sphi 0, %s87
    %s90 = sphi 0, %s89
    %s104 = sphi 0, %s90
    %s108 = sphi 0, %s108
    %s110 = sphi 0, %s108
    %s111 = sphi 0, %s110
    %s125 = sphi 0, %s111
    %s131 = sphi 0, %s133
    %s134 = sphi 0, %s131
    %s135 = sphi 0, %s134
    %s151 = sphi 0, %s135
  $region4: #{text_encoder_forward.12} parent=0 // loop_header_branch
    %14 = sbr.rel (%p12) target = $region8
  $region5: #{text_encoder_forward.12} parent=0 // loop_body
    %s16 = ssub.s32 %s11, 1
    %s17 = ssub.s32 %s11, 2
    %s18 = sadd.s32 %s11, 1
    %s19 = ssub.s32 %s11, %s18
    %p20 = scmp.eq.s32.totalorder %s19, 0
    %s22 = sadd.s32 %s21, 1
    %s23 = scalar_select %p20, %s21, %s22
    %p26 = pneg %p20
    %p27 = scmp.eq.s32.totalorder %s11, 1
    %p28 = por %p26, %p27
    %p29 = scmp.ne.s32.totalorder %s21, %s24
    %p30 = scmp.eq.s32.totalorder %s11, 0
    %p31 = por %p29, %p30
    %p32 = scmp.ne.s32.totalorder %s21, %s24
    %p33 = scmp.eq.s32.totalorder %s16, 1
    %p34 = por %p32, %p33
    %p35 = scmp.ne.s32.totalorder %s24, %s25
    %p36 = scmp.eq.s32.totalorder %s16, 0
    %p37 = por %p35, %p36
    %p38 = scmp.ne.s32.totalorder %s24, %s25
    %p39 = scmp.eq.s32.totalorder %s17, 1
    %p40 = por %p38, %p39
    %p42 = scmp.ne.s32.totalorder %s25, %s41
    %p43 = scmp.eq.s32.totalorder %s17, 0
    %p44 = por %p42, %p43
    %s46 = sadd.s32 %s45, 1
    %p49 = scmp.eq.s32.totalorder %s11, 1
    %p50 = scmp.ne.s32.totalorder %s45, %s47
    %p51 = scmp.eq.s32.totalorder %s11, 0
    %p52 = por %p50, %p51
    %p53 = scmp.ne.s32.totalorder %s45, %s47
    %p54 = scmp.eq.s32.totalorder %s16, 1
    %p55 = por %p53, %p54
    %p56 = scmp.ne.s32.totalorder %s47, %s48
    %p57 = scmp.eq.s32.totalorder %s16, 0
    %p58 = por %p56, %p57
    %p59 = scmp.ne.s32.totalorder %s47, %s48
    %p60 = scmp.eq.s32.totalorder %s17, 1
    %p61 = por %p59, %p60
    %p63 = scmp.ne.s32.totalorder %s48, %s62
    %p64 = scmp.eq.s32.totalorder %s17, 0
    %p65 = por %p63, %p64
    %s67 = sadd.s32 %s66, 1
    %p70 = scmp.eq.s32.totalorder %s11, 1
    %p71 = scmp.ne.s32.totalorder %s66, %s68
    %p72 = scmp.eq.s32.totalorder %s11, 0
    %p73 = por %p71, %p72
    %p74 = scmp.ne.s32.totalorder %s66, %s68
    %p75 = scmp.eq.s32.totalorder %s16, 1
    %p76 = por %p74, %p75
    %p77 = scmp.ne.s32.totalorder %s68, %s69
    %p78 = scmp.eq.s32.totalorder %s16, 0
    %p79 = por %p77, %p78
    %p80 = scmp.ne.s32.totalorder %s68, %s69
    %p81 = scmp.eq.s32.totalorder %s17, 1
    %p82 = por %p80, %p81
    %p84 = scmp.ne.s32.totalorder %s69, %s83
    %p85 = scmp.eq.s32.totalorder %s17, 0
    %p86 = por %p84, %p85
    %s88 = sadd.s32 %s87, 1
    %p91 = scmp.eq.s32.totalorder %s11, 1
    %p92 = scmp.ne.s32.totalorder %s87, %s89
    %p93 = scmp.eq.s32.totalorder %s11, 0
    %p94 = por %p92, %p93
    %p95 = scmp.ne.s32.totalorder %s87, %s89
    %p96 = scmp.eq.s32.totalorder %s16, 1
    %p97 = por %p95, %p96
    %p98 = scmp.ne.s32.totalorder %s89, %s90
    %p99 = scmp.eq.s32.totalorder %s16, 0
    %p100 = por %p98, %p99
    %p101 = scmp.ne.s32.totalorder %s89, %s90
    %p102 = scmp.eq.s32.totalorder %s17, 1
    %p103 = por %p101, %p102
    %p105 = scmp.ne.s32.totalorder %s90, %s104
    %p106 = scmp.eq.s32.totalorder %s17, 0
    %p107 = por %p105, %p106
    %s109 = sadd.s32 %s108, 1
    %p112 = scmp.eq.s32.totalorder %s11, 1
    %p113 = scmp.ne.s32.totalorder %s108, %s110
    %p114 = scmp.eq.s32.totalorder %s11, 0
    %p115 = por %p113, %p114
    %p116 = scmp.ne.s32.totalorder %s108, %s110
    %p117 = scmp.eq.s32.totalorder %s16, 1
    %p118 = por %p116, %p117
    %p119 = scmp.ne.s32.totalorder %s110, %s111
    %p120 = scmp.eq.s32.totalorder %s16, 0
    %p121 = por %p119, %p120
    %p122 = scmp.ne.s32.totalorder %s110, %s111
    %p123 = scmp.eq.s32.totalorder %s17, 1
    %p124 = por %p122, %p123
    %p126 = scmp.ne.s32.totalorder %s111, %s125
    %p127 = scmp.eq.s32.totalorder %s17, 0
    %p128 = por %p126, %p127
    %s129 = ssub.s32 %s11, %s18
    %p130 = scmp.eq.s32.totalorder %s129, 0
    %s132 = sadd.s32 %s131, 1
    %s133 = scalar_select %p130, %s131, %s132
    %p136 = pneg %p130
    %p137 = scmp.eq.s32.totalorder %s11, 1
    %p138 = por %p136, %p137
    %p139 = scmp.ne.s32.totalorder %s131, %s134
    %p140 = scmp.eq.s32.totalorder %s11, 0
    %p141 = por %p139, %p140
    %p142 = scmp.ne.s32.totalorder %s131, %s134
    %p143 = scmp.eq.s32.totalorder %s16, 1
    %p144 = por %p142, %p143
    %p145 = scmp.ne.s32.totalorder %s134, %s135
    %p146 = scmp.eq.s32.totalorder %s16, 0
    %p147 = por %p145, %p146
    %p148 = scmp.ne.s32.totalorder %s134, %s135
    %p149 = scmp.eq.s32.totalorder %s17, 1
    %p150 = por %p148, %p149
    %p152 = scmp.ne.s32.totalorder %s135, %s151
    %p153 = scmp.eq.s32.totalorder %s17, 0
    %p154 = por %p152, %p153
    %p155 = scmp.le.s32.totalorder 1, %s11
    %p156 = scmp.lt.s32.totalorder %s11, 3
    %p157 = pnand %p155, %p156
    %p158 = pneg %p157
    // Predicated region
    $region9: #{text_encoder_forward.12} parent=5 // pred_check
      _
    $region10: #{text_encoder_forward.12} parent=5 // pred_check_branch
      %160 = sbr.rel (%p157) target = $region12
    $region11: #{text_encoder_forward.12} parent=5 // pred_region
      %s161 = ssub.s32 %s11, 1
      // Predicated region
      $region13: #{text_encoder_forward.12} parent=11 // pred_check
        %p162 = pneg %p58
      $region14: #{text_encoder_forward.12} parent=11 // pred_check_branch
        %164 = sbr.rel (%p162) target = $region16
      $region15: #{text_encoder_forward.12} parent=11 // pred_region
        _
      $region16: #{text_encoder_forward.12} parent=11 // pred_fallthru
        _
      // Predicated region
      $region17: #{text_encoder_forward.12} parent=11 // pred_check
        %p165 = pneg %p79
      $region18: #{text_encoder_forward.12} parent=11 // pred_check_branch
        %167 = sbr.rel (%p165) target = $region20
      $region19: #{text_encoder_forward.12} parent=11 // pred_region
        _
      $region20: #{text_encoder_forward.12} parent=11 // pred_fallthru
        _
      // Predicated region
      $region21: #{text_encoder_forward.12} parent=11 // pred_check
        %p168 = pneg %p100
      $region22: #{text_encoder_forward.12} parent=11 // pred_check_branch
        %170 = sbr.rel (%p168) target = $region24
      $region23: #{text_encoder_forward.12} parent=11 // pred_region
        _
      $region24: #{text_encoder_forward.12} parent=11 // pred_fallthru
        _
      // Predicated region
      $region25: #{text_encoder_forward.12} parent=11 // pred_check
        %p171 = pneg %p121
      $region26: #{text_encoder_forward.12} parent=11 // pred_check_branch
        %173 = sbr.rel (%p171) target = $region28
      $region27: #{text_encoder_forward.12} parent=11 // pred_region
        _
      $region28: #{text_encoder_forward.12} parent=11 // pred_fallthru
        _
    $region12: #{text_encoder_forward.12} parent=5 // pred_fallthru
      _
    %p174 = scmp.lt.s32.totalorder %s11, 2
    // Predicated region
    $region29: #{text_encoder_forward.12} parent=5 // pred_check
      %p175 = pneg %p174
    $region30: #{text_encoder_forward.12} parent=5 // pred_check_branch
      %177 = sbr.rel (%p175) target = $region32
    $region31: #{text_encoder_forward.12} parent=5 // pred_region
      // Predicated region
      $region33: #{text_encoder_forward.12} parent=31 // pred_check
        %p178 = pneg %p31
      $region34: #{text_encoder_forward.12} parent=31 // pred_check_branch
        %180 = sbr.rel (%p178) target = $region36
      $region35: #{text_encoder_forward.12} parent=31 // pred_region
        %p181 = scmp.lt.s32.totalorder %s11, 1
        %s182 = scalar_select %p181, %s11, 1
        %s183 = smul.addr %s182, 4
        %s184 = scalar_lea.vmem %s0, %s183
      $region36: #{text_encoder_forward.12} parent=31 // pred_fallthru
        _
    $region32: #{text_encoder_forward.12} parent=5 // pred_fallthru
      _
    %p185 = scmp.le.s32.totalorder 1, %s11
    %p186 = scmp.lt.s32.totalorder %s11, 3
    %p187 = pnand %p185, %p186
    %p188 = pneg %p187
    // Predicated region
    $region37: #{text_encoder_forward.12} parent=5 // pred_check
      _
    $region38: #{text_encoder_forward.12} parent=5 // pred_check_branch
      %190 = sbr.rel (%p187) target = $region40
    $region39: #{text_encoder_forward.12} parent=5 // pred_region
      %s191 = ssub.s32 %s11, 1
      %p192 = scmp.lt.s32.totalorder %s16, 1
      %s193 = scalar_select %p192, %s16, 1
      %s194 = smul.addr %s193, 4
      %s195 = scalar_lea.vmem %s0, %s194
      %p196 = pneg %p37
      %p197 = pneg %p34
      %p198 = pneg %p58
      %p199 = pneg %p55
      %p200 = pneg %p79
      %p201 = pneg %p76
      %p202 = pneg %p100
      %p203 = pneg %p97
      %p204 = pneg %p121
      %p205 = pneg %p118
      %p206 = pneg %p147
      %p207 = pneg %p144
      %p208 = scmp.lt.s32.totalorder %s16, 1
      %s209 = scalar_select %p208, %s16, 1
      %s210 = smul.addr %s209, 4
      %s211 = scalar_lea.vmem %s5, %s210
      %p212 = scmp.lt.s32.totalorder %s16, 1
      %s213 = scalar_select %p212, %s16, 1
      %s214 = smul.addr %s213, 4
      %s215 = scalar_lea.vmem %s0, %s214
      %p216 = scmp.lt.s32.totalorder %s16, 1
      %s217 = scalar_select %p216, %s16, 1
      %s218 = smul.addr %s217, 4
      %s219 = scalar_lea.vmem %s5, %s218
      %v220 = vld [vmem:[%s215] sm:$0xf]
      %v221 = vunpack.c.l.bf16 %v220
      %v222 = vld [vmem:[%s1] sm:$0xf]
      %v223 = vunpack.c.l.bf16 %v222
      %v224 = vadd.f32 %v221, %v223
      %v225 = vld [vmem:[%s2] sm:$0x1]
      %v226 = vunpack.c.l.bf16 %v225
      %v227 = vlaneseq
      %v228 = vshrl.u32 %v227, 7
      %v229 = vsub.s32 0, %v228
      %v230 = vrot.slane %v226, %v229
      %v231 = vadd.f32 %v224, %v230
      %vm232 = vcmask 261120
      %v233 = vsel %vm232, %v231, 0.0
      %234 = vadd.xlane.f32.xlu0 %v233
      %v235 = vpop.xlane.xlu0 %234
      %v236 = vrcp.pop 32.0
      %v237 = vmul.f32 %v235, %v236
      %v238 = vsub.f32 %v231, %v237
      %v239 = vmul.f32 %v238, %v238
      %v240 = vsel %vm232, %v239, 0.0
      %241 = vadd.xlane.f32.xlu0 %v240
      %v242 = vpop.xlane.xlu0 %241
      %v243 = vmul.f32 %v242, %v236
      %v244 = vadd.f32 %v243, 1e-12
      %v245 = vrsqrt.pop %v244
      %v246 = vmul.f32 %v238, %v245
      %v247 = vld [vmem:[%s3] sm:$0x1]
      %v249 = vlaneseq
      %v250 = vshrl.u32 %v249, 7
      %v251 = vsub.s32 0, %v250
      %v252 = vrot.slane %v247, %v251
      %v254 = vmul.f32 %v246, %v252
      %v255 = vld [vmem:[%s4] sm:$0x1]
      %v257 = vlaneseq
      %v258 = vshrl.u32 %v257, 7
      %v259 = vsub.s32 0, %v258
      %v260 = vrot.slane %v255, %v259
      %v262 = vadd.f32 %v254, %v260
      %v263 = vpack.c.bf16 %v262, %v262
      %vm264 = vcmask 257024
      %265 = vst.msk [vmem:[%s219] sm:$0xf] %vm264, %v263
      %p266 = scmp.lt.s32.totalorder %s16, 1
      %s267 = scalar_select %p266, %s16, 1
      %s268 = smul.addr %s267, 4
      %s269 = scalar_lea.vmem %s5, %s268
      // Predicated region
      $region41: #{text_encoder_forward.12} parent=39 // pred_check
        %p270 = pneg %p144
      $region42: #{text_encoder_forward.12} parent=39 // pred_check_branch
        %272 = sbr.rel (%p270) target = $region44
      $region43: #{text_encoder_forward.12} parent=39 // pred_region
        _
      $region44: #{text_encoder_forward.12} parent=39 // pred_fallthru
        _
    $region40: #{text_encoder_forward.12} parent=5 // pred_fallthru
      _
    %p273 = scmp.le.s32.totalorder 2, %s11
    // Predicated region
    $region45: #{text_encoder_forward.12} parent=5 // pred_check
      %p274 = pneg %p273
    $region46: #{text_encoder_forward.12} parent=5 // pred_check_branch
      %276 = sbr.rel (%p274) target = $region48
    $region47: #{text_encoder_forward.12} parent=5 // pred_region
      %s277 = ssub.s32 %s11, 2
      // Predicated region
      $region49: #{text_encoder_forward.12} parent=47 // pred_check
        %p278 = pneg %p150
      $region50: #{text_encoder_forward.12} parent=47 // pred_check_branch
        %280 = sbr.rel (%p278) target = $region52
      $region51: #{text_encoder_forward.12} parent=47 // pred_region
        %p281 = scmp.lt.s32.totalorder %s17, 1
        %s282 = scalar_select %p281, %s17, 1
        %s283 = smul.addr %s282, 4
        %s284 = scalar_lea.vmem %s5, %s283
      $region52: #{text_encoder_forward.12} parent=47 // pred_fallthru
        _
    $region48: #{text_encoder_forward.12} parent=5 // pred_fallthru
      _
  $region6: #{text_encoder_forward.12} parent=0 // loop_footer
    %s15 = sadd.s32 1, %s11
  $region7: #{text_encoder_forward.12} parent=0 // loop_footer_branch
    %10 = sbr.rel target = $region3
  $region8: #{text_encoder_forward.12} parent=0 // loop_exit
    _

// kernel: text_encoder_forward.13
$region0: #{text_encoder_forward.13}
  #allocation0 [shape = 'u32[]', space=smem, size = 0x4, offset = 0x4, fixed_abs, tag = 'smem constant byte address 0x4 - core index']
  #allocation1 [shape = 'u32[144,128]{1,0:T(1,128)}', space=vmem, size = 0x12000, scoped, tag = 'internal scratch']
  #allocation2 [shape = 'f32[16,96]{1,0:T(8,128)}', space=vmem, size = 0x2000, scoped, tag = 'scratch operand']
  %s0 = inlined_call_operand.vmem [shape: bf16[16,32], index: 0, kind: input, shape index: {}]
  %s1 = inlined_call_operand.vmem [shape: bf16[32,96], index: 1, kind: input, shape index: {}]
  %s2 = inlined_call_operand.vmem [shape: f32[1,96], index: 2, kind: input, shape index: {}]
  %s3 = inlined_call_operand.vmem [shape: bf16[16,96], index: 3, kind: output, shape index: {}]
  %s4 = sld [smem:[#allocation0]]
  $region30: #{text_encoder_forward.13} parent=0
    _
  %s6 = ssub.s32 1, %s4
  %s7 = scalar_select 0, %s6, %s4
  // Predicated region
  $region2: #{text_encoder_forward.13} parent=0 // pred_check
    _
  $region3: #{text_encoder_forward.13} parent=0 // pred_check_branch
    %9 = sbr.rel (0) target = $region5
  $region4: #{text_encoder_forward.13} parent=0 // pred_region
    _
  $region5: #{text_encoder_forward.13} parent=0 // pred_fallthru
    _
  // Predicated region
  $region6: #{text_encoder_forward.13} parent=0 // pred_check
    _
  $region7: #{text_encoder_forward.13} parent=0 // pred_check_branch
    %11 = sbr.rel (0) target = $region9
  $region8: #{text_encoder_forward.13} parent=0 // pred_region
    _
  $region9: #{text_encoder_forward.13} parent=0 // pred_fallthru
    _
  // Predicated region
  $region10: #{text_encoder_forward.13} parent=0 // pred_check
    _
  $region11: #{text_encoder_forward.13} parent=0 // pred_check_branch
    %13 = sbr.rel (0) target = $region13
  $region12: #{text_encoder_forward.13} parent=0 // pred_region
    _
  $region13: #{text_encoder_forward.13} parent=0 // pred_fallthru
    _
  %p15 = scmp.eq.s32.totalorder 0, 0
  // Predicated region
  $region14: #{text_encoder_forward.13} parent=0 // pred_check
    %p16 = pneg %p15
  $region15: #{text_encoder_forward.13} parent=0 // pred_check_branch
    %18 = sbr.rel (%p16) target = $region17
  $region16: #{text_encoder_forward.13} parent=0 // pred_region
    %vm19 = vcmask 785408
    %20 = vst.msk [vmem:[#allocation2] sm:$0xff] %vm19, 0.0
    %21 = vst.msk [vmem:[#allocation2 + $0x8] sm:$0xff] %vm19, 0.0
  $region17: #{text_encoder_forward.13} parent=0 // pred_fallthru
    _
  %v22 = vld [vmem:[#allocation2] sm:$0xff]
  %v23 = vld [vmem:[#allocation2 + $0x8] sm:$0xff]
  %v24 = vld [vmem:[%s0] sm:$0xf]
  %v25 = vld [vmem:[%s0 + $0x4] sm:$0xf]
  %v26 = vld [vmem:[%s1] sm:$0xf]
  %v27 = vld [vmem:[%s1 + $0x4] sm:$0xf]
  %v28 = vld [vmem:[%s1 + $0x8] sm:$0xf]
  %v29 = vld [vmem:[%s1 + $0xc] sm:$0xf]
  %v32 = vunpack.c.l.b16 %v24
  %v33 = vunpack.c.l.b16 %v25
  %v34 = vpack.c.b16 %v33, %v32
  %v39 = vunpack.c.l.b16 %v26
  %v40 = vunpack.c.l.b16 %v27
  %v41 = vunpack.c.l.b16 %v28
  %v42 = vunpack.c.l.b16 %v29
  %v43 = vpack.c.b16 %v40, %v39
  %v44 = vpack.c.b16 %v42, %v41
  %vm47 = vcmask 261120
  %v49 = vsel %vm47, %v34, 0
  %51 = vmatprep.subr.bf16.mxu0 0
  %52 = vmatpush1.bf16.msra.mxu0 %v43
  %53 = vmatprep.subr.bf16.mxu0 0
  %54 = vmatpush1.bf16.msra.mxu0 %v44
  %55 = vmatprep.subr.bf16.mxu0 0
  %56 = vmatpush1.bf16.msra.mxu0 0
  %57 = vmatprep.subr.bf16.mxu0 0
  %58 = vmatpush1.bf16.msra.mxu0 0
  %59 = vmatprep.subr.bf16.mxu0 0
  %60 = vmatpush1.bf16.msra.mxu0 0
  %61 = vmatprep.subr.bf16.mxu0 0
  %62 = vmatpush1.bf16.msra.mxu0 0
  %63 = vmatprep.subr.bf16.mxu0 0
  %64 = vmatpush1.bf16.msra.mxu0 0
  %65 = vmatprep.subr.bf16.mxu0 0
  %66 = vmatpush1.bf16.msra.mxu0 0
  %67 = vmatprep.subr.bf16.mxu0 0
  %68 = vmatpush1.bf16.msra.mxu0 0
  %69 = vmatprep.subr.bf16.mxu0 0
  %70 = vmatpush1.bf16.msra.mxu0 0
  %71 = vmatprep.subr.bf16.mxu0 0
  %72 = vmatpush1.bf16.msra.mxu0 0
  %73 = vmatprep.subr.bf16.mxu0 0
  %74 = vmatpush1.bf16.msra.mxu0 0
  %75 = vmatprep.subr.bf16.mxu0 0
  %76 = vmatpush1.bf16.msra.mxu0 0
  %77 = vmatprep.subr.bf16.mxu0 0
  %78 = vmatpush1.bf16.msra.mxu0 0
  %79 = vmatprep.subr.bf16.mxu0 0
  %80 = vmatpush1.bf16.msra.mxu0 0
  %81 = vmatprep.subr.bf16.mxu0 0
  %82 = vmatpush1.bf16.msra.mxu0 0
  %83 = vmatprep.mubr.bf16.mxu0 0
  %84 = vmatmul.mubr.bf16.gmra.mrb[0].mxu0 %v49
  %v85 = vpop.f32.mrb[0].mxu0
  %v86 = vadd.f32 0.0, %v85
  %v87 = vpop.f32.mrb[0].mxu0
  %v88 = vpop.f32.mrb[0].mxu0
  %v89 = vadd.f32 0.0, %v88
  %v90 = vpop.f32.mrb[0].mxu0
  %91 = vdwg.mxu0
  %v92 = vadd.f32 %v22, %v86
  %v93 = vadd.f32 %v23, %v89
  %vm94 = vcmask 785408
  %95 = vst.msk [vmem:[#allocation2] sm:$0xff] %vm94, %v92
  %96 = vst.msk [vmem:[#allocation2 + $0x8] sm:$0xff] %vm94, %v93
  // Predicated region
  $region18: #{text_encoder_forward.13} parent=0 // pred_check
    %p97 = pneg %p15
  $region19: #{text_encoder_forward.13} parent=0 // pred_check_branch
    %99 = sbr.rel (%p97) target = $region21
  $region20: #{text_encoder_forward.13} parent=0 // pred_region
    %v100 = vld [vmem:[#allocation2] sm:$0xff]
    %v101 = vld [vmem:[#allocation2 + $0x8] sm:$0xff]
    %v102 = vld [vmem:[%s2] sm:$0x1]
    %v104 = vlaneseq
    %v105 = vshrl.u32 %v104, 7
    %v106 = vsub.s32 0, %v105
    %v107 = vrot.slane %v102, %v106
    %v109 = vadd.f32 %v100, %v107
    %v110 = vadd.f32 %v101, %v107
    %v111 = vpack.c.bf16 %v110, %v109
    %v113 = vunpack.c.l.b16 %v111
    %v114 = vunpack.c.h.b16 %v111
    %v115 = vpack.c.b16 %v113, %v113
    %v116 = vpack.c.b16 %v114, %v114
    %vm119 = vcmask 781312
    %120 = vst.msk [vmem:[%s3] sm:$0xf] %vm119, %v115
    %121 = vst.msk [vmem:[%s3 + $0x4] sm:$0xf] %vm119, %v116
  $region21: #{text_encoder_forward.13} parent=0 // pred_fallthru
    _
  // Predicated region
  $region22: #{text_encoder_forward.13} parent=0 // pred_check
    _
  $region23: #{text_encoder_forward.13} parent=0 // pred_check_branch
    %123 = sbr.rel (0) target = $region25
  $region24: #{text_encoder_forward.13} parent=0 // pred_region
    _
  $region25: #{text_encoder_forward.13} parent=0 // pred_fallthru
    _
  // Predicated region
  $region26: #{text_encoder_forward.13} parent=0 // pred_check
    _
  $region27: #{text_encoder_forward.13} parent=0 // pred_check_branch
    %125 = sbr.rel (0) target = $region29
  $region28: #{text_encoder_forward.13} parent=0 // pred_region
    _
  $region29: #{text_encoder_forward.13} parent=0 // pred_fallthru
    _

// kernel: text_encoder_forward.15
$region0: #{text_encoder_forward.15}
  #allocation0 [shape = 'u32[]', space=smem, size = 0x4, offset = 0x4, fixed_abs, tag = 'smem constant byte address 0x4 - core index']
  #allocation1 [shape = 'u32[144,128]{1,0:T(1,128)}', space=vmem, size = 0x12000, scoped, tag = 'internal scratch']
  #allocation2 [shape = 'f32[16,32]{1,0:T(8,128)}', space=vmem, size = 0x2000, scoped, tag = 'scratch operand']
  %s0 = inlined_call_operand.vmem [shape: bf16[16,32], index: 0, kind: input, shape index: {}]
  %s1 = inlined_call_operand.vmem [shape: bf16[32,32], index: 1, kind: input, shape index: {}]
  %s2 = inlined_call_operand.vmem [shape: f32[1,32], index: 2, kind: input, shape index: {}]
  %s3 = inlined_call_operand.vmem [shape: bf16[16,32], index: 3, kind: input, shape index: {}]
  %s4 = inlined_call_operand.vmem [shape: f32[1,32], index: 4, kind: input, shape index: {}]
  %s5 = inlined_call_operand.vmem [shape: f32[1,32], index: 5, kind: input, shape index: {}]
  %s6 = inlined_call_operand.vmem [shape: bf16[16,32], index: 6, kind: output, shape index: {}]
  %s7 = sld [smem:[#allocation0]]
  $region42: #{text_encoder_forward.15} parent=0
    _
  %s9 = ssub.s32 1, %s7
  %s10 = scalar_select 0, %s9, %s7
  // Predicated region
  $region2: #{text_encoder_forward.15} parent=0 // pred_check
    _
  $region3: #{text_encoder_forward.15} parent=0 // pred_check_branch
    %12 = sbr.rel (0) target = $region5
  $region4: #{text_encoder_forward.15} parent=0 // pred_region
    _
  $region5: #{text_encoder_forward.15} parent=0 // pred_fallthru
    _
  // Predicated region
  $region6: #{text_encoder_forward.15} parent=0 // pred_check
    _
  $region7: #{text_encoder_forward.15} parent=0 // pred_check_branch
    %14 = sbr.rel (0) target = $region9
  $region8: #{text_encoder_forward.15} parent=0 // pred_region
    _
  $region9: #{text_encoder_forward.15} parent=0 // pred_fallthru
    _
  // Predicated region
  $region10: #{text_encoder_forward.15} parent=0 // pred_check
    _
  $region11: #{text_encoder_forward.15} parent=0 // pred_check_branch
    %16 = sbr.rel (0) target = $region13
  $region12: #{text_encoder_forward.15} parent=0 // pred_region
    _
  $region13: #{text_encoder_forward.15} parent=0 // pred_fallthru
    _
  // Predicated region
  $region14: #{text_encoder_forward.15} parent=0 // pred_check
    _
  $region15: #{text_encoder_forward.15} parent=0 // pred_check_branch
    %18 = sbr.rel (0) target = $region17
  $region16: #{text_encoder_forward.15} parent=0 // pred_region
    _
  $region17: #{text_encoder_forward.15} parent=0 // pred_fallthru
    _
  // Predicated region
  $region18: #{text_encoder_forward.15} parent=0 // pred_check
    _
  $region19: #{text_encoder_forward.15} parent=0 // pred_check_branch
    %20 = sbr.rel (0) target = $region21
  $region20: #{text_encoder_forward.15} parent=0 // pred_region
    _
  $region21: #{text_encoder_forward.15} parent=0 // pred_fallthru
    _
  // Predicated region
  $region22: #{text_encoder_forward.15} parent=0 // pred_check
    _
  $region23: #{text_encoder_forward.15} parent=0 // pred_check_branch
    %22 = sbr.rel (0) target = $region25
  $region24: #{text_encoder_forward.15} parent=0 // pred_region
    _
  $region25: #{text_encoder_forward.15} parent=0 // pred_fallthru
    _
  %p24 = scmp.eq.s32.totalorder 0, 0
  // Predicated region
  $region26: #{text_encoder_forward.15} parent=0 // pred_check
    %p25 = pneg %p24
  $region27: #{text_encoder_forward.15} parent=0 // pred_check_branch
    %27 = sbr.rel (%p25) target = $region29
  $region28: #{text_encoder_forward.15} parent=0 // pred_region
    %vm28 = vcmask 261120
    %29 = vst.msk [vmem:[#allocation2] sm:$0xff] %vm28, 0.0
    %30 = vst.msk [vmem:[#allocation2 + $0x8] sm:$0xff] %vm28, 0.0
  $region29: #{text_encoder_forward.15} parent=0 // pred_fallthru
    _
  %v31 = vld [vmem:[#allocation2] sm:$0xff]
  %v32 = vld [vmem:[#allocation2 + $0x8] sm:$0xff]
  %v33 = vld [vmem:[%s0] sm:$0xf]
  %v34 = vld [vmem:[%s0 + $0x4] sm:$0xf]
  %v35 = vld [vmem:[%s1] sm:$0xf]
  %v36 = vld [vmem:[%s1 + $0x4] sm:$0xf]
  %v37 = vld [vmem:[%s1 + $0x8] sm:$0xf]
  %v38 = vld [vmem:[%s1 + $0xc] sm:$0xf]
  %v41 = vunpack.c.l.b16 %v33
  %v42 = vunpack.c.l.b16 %v34
  %v43 = vpack.c.b16 %v42, %v41
  %v48 = vunpack.c.l.b16 %v35
  %v49 = vunpack.c.l.b16 %v36
  %v50 = vunpack.c.l.b16 %v37
  %v51 = vunpack.c.l.b16 %v38
  %v52 = vpack.c.b16 %v49, %v48
  %v53 = vpack.c.b16 %v51, %v50
  %vm56 = vcmask 261120
  %v58 = vsel %vm56, %v43, 0
  %60 = vmatprep.subr.bf16.mxu0 0
  %61 = vmatpush1.bf16.msra.mxu0 %v52
  %62 = vmatprep.subr.bf16.mxu0 0
  %63 = vmatpush1.bf16.msra.mxu0 %v53
  %64 = vmatprep.subr.bf16.mxu0 0
  %65 = vmatpush1.bf16.msra.mxu0 0
  %66 = vmatprep.subr.bf16.mxu0 0
  %67 = vmatpush1.bf16.msra.mxu0 0
  %68 = vmatprep.subr.bf16.mxu0 0
  %69 = vmatpush1.bf16.msra.mxu0 0
  %70 = vmatprep.subr.bf16.mxu0 0
  %71 = vmatpush1.bf16.msra.mxu0 0
  %72 = vmatprep.subr.bf16.mxu0 0
  %73 = vmatpush1.bf16.msra.mxu0 0
  %74 = vmatprep.subr.bf16.mxu0 0
  %75 = vmatpush1.bf16.msra.mxu0 0
  %76 = vmatprep.subr.bf16.mxu0 0
  %77 = vmatpush1.bf16.msra.mxu0 0
  %78 = vmatprep.subr.bf16.mxu0 0
  %79 = vmatpush1.bf16.msra.mxu0 0
  %80 = vmatprep.subr.bf16.mxu0 0
  %81 = vmatpush1.bf16.msra.mxu0 0
  %82 = vmatprep.subr.bf16.mxu0 0
  %83 = vmatpush1.bf16.msra.mxu0 0
  %84 = vmatprep.subr.bf16.mxu0 0
  %85 = vmatpush1.bf16.msra.mxu0 0
  %86 = vmatprep.subr.bf16.mxu0 0
  %87 = vmatpush1.bf16.msra.mxu0 0
  %88 = vmatprep.subr.bf16.mxu0 0
  %89 = vmatpush1.bf16.msra.mxu0 0
  %90 = vmatprep.subr.bf16.mxu0 0
  %91 = vmatpush1.bf16.msra.mxu0 0
  %92 = vmatprep.mubr.bf16.mxu0 0
  %93 = vmatmul.mubr.bf16.gmra.mrb[0].mxu0 %v58
  %v94 = vpop.f32.mrb[0].mxu0
  %v95 = vadd.f32 0.0, %v94
  %v96 = vpop.f32.mrb[0].mxu0
  %v97 = vpop.f32.mrb[0].mxu0
  %v98 = vadd.f32 0.0, %v97
  %v99 = vpop.f32.mrb[0].mxu0
  %100 = vdwg.mxu0
  %v101 = vadd.f32 %v31, %v95
  %v102 = vadd.f32 %v32, %v98
  %103 = vst.msk [vmem:[#allocation2] sm:$0xff] %vm56, %v101
  %104 = vst.msk [vmem:[#allocation2 + $0x8] sm:$0xff] %vm56, %v102
  // Predicated region
  $region30: #{text_encoder_forward.15} parent=0 // pred_check
    %p105 = pneg %p24
  $region31: #{text_encoder_forward.15} parent=0 // pred_check_branch
    %107 = sbr.rel (%p105) target = $region33
  $region32: #{text_encoder_forward.15} parent=0 // pred_region
    %v108 = vld [vmem:[#allocation2] sm:$0xff]
    %v109 = vld [vmem:[#allocation2 + $0x8] sm:$0xff]
    %v110 = vld [vmem:[%s2] sm:$0x1]
    %v112 = vlaneseq
    %v113 = vshrl.u32 %v112, 7
    %v114 = vsub.s32 0, %v113
    %v115 = vrot.slane %v110, %v114
    %v117 = vadd.f32 %v108, %v115
    %v118 = vadd.f32 %v109, %v115
    %v119 = vld [vmem:[%s3] sm:$0xf]
    %v120 = vld [vmem:[%s3 + $0x4] sm:$0xf]
    %v121 = vunpack.c.l.bf16 %v119
    %v122 = vunpack.c.l.bf16 %v120
    %v123 = vadd.f32 %v117, %v121
    %v124 = vadd.f32 %v118, %v122
    %v125 = vsel %vm56, %v123, 0.0
    %126 = vadd.xlane.f32.xlu0 %v125
    %v127 = vpop.xlane.xlu0 %126
    %v128 = vsel %vm56, %v124, 0.0
    %129 = vadd.xlane.f32.xlu0 %v128
    %v130 = vpop.xlane.xlu0 %129
    %v131 = vrcp.pop 32.0
    %v132 = vmul.f32 %v127, %v131
    %v133 = vmul.f32 %v130, %v131
    %v134 = vsub.f32 %v123, %v132
    %v135 = vsub.f32 %v124, %v133
    %v136 = vmul.f32 %v134, %v134
    %v137 = vmul.f32 %v135, %v135
    %v138 = vsel %vm56, %v136, 0.0
    %139 = vadd.xlane.f32.xlu0 %v138
    %v140 = vpop.xlane.xlu0 %139
    %v141 = vsel %vm56, %v137, 0.0
    %142 = vadd.xlane.f32.xlu0 %v141
    %v143 = vpop.xlane.xlu0 %142
    %v144 = vmul.f32 %v140, %v131
    %v145 = vmul.f32 %v143, %v131
    %v146 = vadd.f32 %v144, 1e-12
    %v147 = vadd.f32 %v145, 1e-12
    %v148 = vrsqrt.pop %v146
    %v149 = vrsqrt.pop %v147
    %v150 = vmul.f32 %v134, %v148
    %v151 = vmul.f32 %v135, %v149
    %v152 = vld [vmem:[%s4] sm:$0x1]
    %v154 = vlaneseq
    %v155 = vshrl.u32 %v154, 7
    %v156 = vsub.s32 0, %v155
    %v157 = vrot.slane %v152, %v156
    %v159 = vmul.f32 %v150, %v157
    %v160 = vmul.f32 %v151, %v157
    %v161 = vld [vmem:[%s5] sm:$0x1]
    %v163 = vlaneseq
    %v164 = vshrl.u32 %v163, 7
    %v165 = vsub.s32 0, %v164
    %v166 = vrot.slane %v161, %v165
    %v168 = vadd.f32 %v159, %v166
    %v169 = vadd.f32 %v160, %v166
    %v170 = vpack.c.bf16 %v169, %v168
    %v172 = vunpack.c.l.b16 %v170
    %v173 = vunpack.c.h.b16 %v170
    %v174 = vpack.c.b16 %v172, %v172
    %v175 = vpack.c.b16 %v173, %v173
    %vm178 = vcmask 257024
    %179 = vst.msk [vmem:[%s6] sm:$0xf] %vm178, %v174
    %180 = vst.msk [vmem:[%s6 + $0x4] sm:$0xf] %vm178, %v175
  $region33: #{text_encoder_forward.15} parent=0 // pred_fallthru
    _
  // Predicated region
  $region34: #{text_encoder_forward.15} parent=0 // pred_check
    _
  $region35: #{text_encoder_forward.15} parent=0 // pred_check_branch
    %182 = sbr.rel (0) target = $region37
  $region36: #{text_encoder_forward.15} parent=0 // pred_region
    _
  $region37: #{text_encoder_forward.15} parent=0 // pred_fallthru
    _
  // Predicated region
  $region38: #{text_encoder_forward.15} parent=0 // pred_check
    _
  $region39: #{text_encoder_forward.15} parent=0 // pred_check_branch
    %184 = sbr.rel (0) target = $region41
  $region40: #{text_encoder_forward.15} parent=0 // pred_region
    _
  $region41: #{text_encoder_forward.15} parent=0 // pred_fallthru
    _

// kernel: text_encoder_forward.14
$region0: #{text_encoder_forward.14}
  #allocation0 [shape = 'u32[]', space=smem, size = 0x4, offset = 0x4, fixed_abs, tag = 'smem constant byte address 0x4 - core index']
  #allocation1 [shape = 'u32[144,128]{1,0:T(1,128)}', space=vmem, size = 0x12000, scoped, tag = 'internal scratch']
  #allocation2 [shape = 'f32[4,8,1]{2,1,0:T(8,128)}', space=vmem, size = 0x4000, scoped, tag = 'scratch operand']
  #allocation3 [shape = 'f32[4,8,1]{2,1,0:T(8,128)}', space=vmem, size = 0x4000, scoped, tag = 'scratch operand']
  #allocation4 [shape = 'f32[4,8,8]{2,1,0:T(8,128)}', space=vmem, size = 0x4000, scoped, tag = 'scratch operand']
  %s0 = inlined_call_operand.vmem [shape: bf16[2,4,8,8], index: 0, kind: input, shape index: {}]
  %s1 = inlined_call_operand.vmem [shape: bf16[2,4,8,8], index: 1, kind: input, shape index: {}]
  %s2 = inlined_call_operand.vmem [shape: bf16[2,4,8,8], index: 2, kind: input, shape index: {}]
  %s3 = inlined_call_operand.vmem [shape: f32[2,1,8], index: 3, kind: input, shape index: {}]
  %s4 = inlined_call_operand.vmem [shape: bf16[2,4,8,8], index: 4, kind: output, shape index: {}]
  %s5 = sld [smem:[#allocation0]]
  $region57: #{text_encoder_forward.14} parent=0
    _
  %s7 = ssub.s32 1, %s5
  %s8 = scalar_select 0, %s7, %s5
  loop: start=0, step=1, limit=4
  $region2: #{text_encoder_forward.14} parent=0 // loop_pre_header
    _
  $region3: #{text_encoder_forward.14} parent=0 // loop_header
    %s10 = sphi 0, %s14
    %p11 = scmp.ge.s32.totalorder %s10, 4
    %s17 = sphi 0, %s29
    %s18 = sphi 0, %s25
    %s19 = sphi 0, %s17
    %s20 = sphi 0, %s18
    %s21 = sphi 0, %s19
    %s22 = sphi 0, %s20
    %s32 = sphi 0, %s34
    %s35 = sphi 0, %s32
    %s36 = sphi 0, %s35
    %s52 = sphi 0, %s36
    %s60 = sphi 0, %s62
    %s63 = sphi 0, %s60
    %s64 = sphi 0, %s63
    %s80 = sphi 0, %s64
    %s88 = sphi 0, %s90
    %s91 = sphi 0, %s88
    %s92 = sphi 0, %s91
    %s108 = sphi 0, %s92
    %s116 = sphi 0, %s118
    %s119 = sphi 0, %s116
    %s120 = sphi 0, %s119
    %s136 = sphi 0, %s120
    %s142 = sphi 0, %s144
    %s145 = sphi 0, %s142
    %s146 = sphi 0, %s145
    %s162 = sphi 0, %s146
  $region4: #{text_encoder_forward.14} parent=0 // loop_header_branch
    %13 = sbr.rel (%p11) target = $region8
  $region5: #{text_encoder_forward.14} parent=0 // loop_body
    %s15 = ssub.s32 %s10, 1
    %s16 = ssub.s32 %s10, 2
    %s23 = sadd.s32 1, %s18
    %p24 = scmp.ge.s32.totalorder %s23, 1
    %s25 = scalar_select %p24, 0, %s23
    %s26 = sadd.s32 1, %s17
    %s27 = scalar_select %p24, %s26, %s17
    %p28 = scmp.ge.s32.totalorder %s27, 2
    %s29 = scalar_select %p28, 0, %s27
    %s30 = ssub.s32 %s17, %s29
    %p31 = scmp.eq.s32.totalorder %s30, 0
    %s33 = sadd.s32 %s32, 1
    %s34 = scalar_select %p31, %s32, %s33
    %p37 = pneg %p31
    %p38 = scmp.eq.s32.totalorder %s10, 1
    %p39 = por %p37, %p38
    %p40 = scmp.ne.s32.totalorder %s32, %s35
    %p41 = scmp.eq.s32.totalorder %s10, 0
    %p42 = por %p40, %p41
    %p43 = scmp.ne.s32.totalorder %s32, %s35
    %p44 = scmp.eq.s32.totalorder %s15, 1
    %p45 = por %p43, %p44
    %p46 = scmp.ne.s32.totalorder %s35, %s36
    %p47 = scmp.eq.s32.totalorder %s15, 0
    %p48 = por %p46, %p47
    %p49 = scmp.ne.s32.totalorder %s35, %s36
    %p50 = scmp.eq.s32.totalorder %s16, 1
    %p51 = por %p49, %p50
    %p53 = scmp.ne.s32.totalorder %s36, %s52
    %p54 = scmp.eq.s32.totalorder %s16, 0
    %p55 = por %p53, %p54
    %s56 = ssub.s32 %s17, %s29
    %s57 = ssub.s32 %s18, %s25
    %s58 = sor.u32 %s56, %s57
    %p59 = scmp.eq.s32.totalorder %s58, 0
    %s61 = sadd.s32 %s60, 1
    %s62 = scalar_select %p59, %s60, %s61
    %p65 = pneg %p59
    %p66 = scmp.eq.s32.totalorder %s10, 1
    %p67 = por %p65, %p66
    %p68 = scmp.ne.s32.totalorder %s60, %s63
    %p69 = scmp.eq.s32.totalorder %s10, 0
    %p70 = por %p68, %p69
    %p71 = scmp.ne.s32.totalorder %s60, %s63
    %p72 = scmp.eq.s32.totalorder %s15, 1
    %p73 = por %p71, %p72
    %p74 = scmp.ne.s32.totalorder %s63, %s64
    %p75 = scmp.eq.s32.totalorder %s15, 0
    %p76 = por %p74, %p75
    %p77 = scmp.ne.s32.totalorder %s63, %s64
    %p78 = scmp.eq.s32.totalorder %s16, 1
    %p79 = por %p77, %p78
    %p81 = scmp.ne.s32.totalorder %s64, %s80
    %p82 = scmp.eq.s32.totalorder %s16, 0
    %p83 = por %p81, %p82
    %s84 = ssub.s32 %s17, %s29
    %s85 = ssub.s32 %s18, %s25
    %s86 = sor.u32 %s84, %s85
    %p87 = scmp.eq.s32.totalorder %s86, 0
    %s89 = sadd.s32 %s88, 1
    %s90 = scalar_select %p87, %s88, %s89
    %p93 = pneg %p87
    %p94 = scmp.eq.s32.totalorder %s10, 1
    %p95 = por %p93, %p94
    %p96 = scmp.ne.s32.totalorder %s88, %s91
    %p97 = scmp.eq.s32.totalorder %s10, 0
    %p98 = por %p96, %p97
    %p99 = scmp.ne.s32.totalorder %s88, %s91
    %p100 = scmp.eq.s32.totalorder %s15, 1
    %p101 = por %p99, %p100
    %p102 = scmp.ne.s32.totalorder %s91, %s92
    %p103 = scmp.eq.s32.totalorder %s15, 0
    %p104 = por %p102, %p103
    %p105 = scmp.ne.s32.totalorder %s91, %s92
    %p106 = scmp.eq.s32.totalorder %s16, 1
    %p107 = por %p105, %p106
    %p109 = scmp.ne.s32.totalorder %s92, %s108
    %p110 = scmp.eq.s32.totalorder %s16, 0
    %p111 = por %p109, %p110
    %s112 = ssub.s32 %s17, %s29
    %s113 = ssub.s32 %s18, %s25
    %s114 = sor.u32 %s112, %s113
    %p115 = scmp.eq.s32.totalorder %s114, 0
    %s117 = sadd.s32 %s116, 1
    %s118 = scalar_select %p115, %s116, %s117
    %p121 = pneg %p115
    %p122 = scmp.eq.s32.totalorder %s10, 1
    %p123 = por %p121, %p122
    %p124 = scmp.ne.s32.totalorder %s116, %s119
    %p125 = scmp.eq.s32.totalorder %s10, 0
    %p126 = por %p124, %p125
    %p127 = scmp.ne.s32.totalorder %s116, %s119
    %p128 = scmp.eq.s32.totalorder %s15, 1
    %p129 = por %p127, %p128
    %p130 = scmp.ne.s32.totalorder %s119, %s120
    %p131 = scmp.eq.s32.totalorder %s15, 0
    %p132 = por %p130, %p131
    %p133 = scmp.ne.s32.totalorder %s119, %s120
    %p134 = scmp.eq.s32.totalorder %s16, 1
    %p135 = por %p133, %p134
    %p137 = scmp.ne.s32.totalorder %s120, %s136
    %p138 = scmp.eq.s32.totalorder %s16, 0
    %p139 = por %p137, %p138
    %s140 = ssub.s32 %s17, %s29
    %p141 = scmp.eq.s32.totalorder %s140, 0
    %s143 = sadd.s32 %s142, 1
    %s144 = scalar_select %p141, %s142, %s143
    %p147 = pneg %p141
    %p148 = scmp.eq.s32.totalorder %s10, 1
    %p149 = por %p147, %p148
    %p150 = scmp.ne.s32.totalorder %s142, %s145
    %p151 = scmp.eq.s32.totalorder %s10, 0
    %p152 = por %p150, %p151
    %p153 = scmp.ne.s32.totalorder %s142, %s145
    %p154 = scmp.eq.s32.totalorder %s15, 1
    %p155 = por %p153, %p154
    %p156 = scmp.ne.s32.totalorder %s145, %s146
    %p157 = scmp.eq.s32.totalorder %s15, 0
    %p158 = por %p156, %p157
    %p159 = scmp.ne.s32.totalorder %s145, %s146
    %p160 = scmp.eq.s32.totalorder %s16, 1
    %p161 = por %p159, %p160
    %p163 = scmp.ne.s32.totalorder %s146, %s162
    %p164 = scmp.eq.s32.totalorder %s16, 0
    %p165 = por %p163, %p164
    %p166 = scmp.le.s32.totalorder 1, %s10
    %p167 = scmp.lt.s32.totalorder %s10, 3
    %p168 = pnand %p166, %p167
    %p169 = pneg %p168
    // Predicated region
    $region9: #{text_encoder_forward.14} parent=5 // pred_check
      _
    $region10: #{text_encoder_forward.14} parent=5 // pred_check_branch
      %171 = sbr.rel (%p168) target = $region12
    $region11: #{text_encoder_forward.14} parent=5 // pred_region
      %s172 = ssub.s32 %s10, 1
    $region12: #{text_encoder_forward.14} parent=5 // pred_fallthru
      _
    %p173 = scmp.lt.s32.totalorder %s10, 2
    // Predicated region
    $region13: #{text_encoder_forward.14} parent=5 // pred_check
      %p174 = pneg %p173
    $region14: #{text_encoder_forward.14} parent=5 // pred_check_branch
      %176 = sbr.rel (%p174) target = $region16
    $region15: #{text_encoder_forward.14} parent=5 // pred_region
      // Predicated region
      $region17: #{text_encoder_forward.14} parent=15 // pred_check
        %p177 = pneg %p42
      $region18: #{text_encoder_forward.14} parent=15 // pred_check_branch
        %179 = sbr.rel (%p177) target = $region20
      $region19: #{text_encoder_forward.14} parent=15 // pred_region
        %p180 = scmp.lt.s32.totalorder %s17, 1
        %s181 = scalar_select %p180, %s17, 1
        %s182 = smul.addr %s181, 4
        %s183 = smul.addr %s182, 4
        %s184 = scalar_lea.vmem %s0, %s183
      $region20: #{text_encoder_forward.14} parent=15 // pred_fallthru
        _
      // Predicated region
      $region21: #{text_encoder_forward.14} parent=15 // pred_check
        %p185 = pneg %p70
      $region22: #{text_encoder_forward.14} parent=15 // pred_check_branch
        %187 = sbr.rel (%p185) target = $region24
      $region23: #{text_encoder_forward.14} parent=15 // pred_region
        %p188 = scmp.lt.s32.totalorder %s17, 1
        %s189 = scalar_select %p188, %s17, 1
        %p190 = scmp.lt.s32.totalorder %s18, 0
        %s191 = scalar_select %p190, %s18, 0
        %s192 = smul.addr %s189, 4
        %s193 = sadd.s32 %s191, %s192
        %s194 = smul.addr %s193, 4
        %s195 = scalar_lea.vmem %s1, %s194
      $region24: #{text_encoder_forward.14} parent=15 // pred_fallthru
        _
      // Predicated region
      $region25: #{text_encoder_forward.14} parent=15 // pred_check
        %p196 = pneg %p98
      $region26: #{text_encoder_forward.14} parent=15 // pred_check_branch
        %198 = sbr.rel (%p196) target = $region28
      $region27: #{text_encoder_forward.14} parent=15 // pred_region
        %p199 = scmp.lt.s32.totalorder %s17, 1
        %s200 = scalar_select %p199, %s17, 1
        %p201 = scmp.lt.s32.totalorder %s18, 0
        %s202 = scalar_select %p201, %s18, 0
        %s203 = smul.addr %s200, 4
        %s204 = sadd.s32 %s202, %s203
        %s205 = smul.addr %s204, 4
        %s206 = scalar_lea.vmem %s2, %s205
      $region28: #{text_encoder_forward.14} parent=15 // pred_fallthru
        _
      // Predicated region
      $region29: #{text_encoder_forward.14} parent=15 // pred_check
        %p207 = pneg %p126
      $region30: #{text_encoder_forward.14} parent=15 // pred_check_branch
        %209 = sbr.rel (%p207) target = $region32
      $region31: #{text_encoder_forward.14} parent=15 // pred_region
        %p210 = scmp.lt.s32.totalorder %s17, 1
        %s211 = scalar_select %p210, %s17, 1
        %p212 = scmp.lt.s32.totalorder %s18, 0
        %s213 = scalar_select %p212, %s18, 0
        %s214 = sadd.s32 %s213, %s211
        %s215 = scalar_lea.vmem %s3, %s214
      $region32: #{text_encoder_forward.14} parent=15 // pred_fallthru
        _
    $region16: #{text_encoder_forward.14} parent=5 // pred_fallthru
      _
    %p216 = scmp.le.s32.totalorder 1, %s10
    %p217 = scmp.lt.s32.totalorder %s10, 3
    %p218 = pnand %p216, %p217
    %p219 = pneg %p218
    // Predicated region
    $region33: #{text_encoder_forward.14} parent=5 // pred_check
      _
    $region34: #{text_encoder_forward.14} parent=5 // pred_check_branch
      %221 = sbr.rel (%p218) target = $region36
    $region35: #{text_encoder_forward.14} parent=5 // pred_region
      %s222 = ssub.s32 %s10, 1
      %p223 = scmp.lt.s32.totalorder %s19, 1
      %s224 = scalar_select %p223, %s19, 1
      %s225 = smul.addr %s224, 4
      %s226 = smul.addr %s225, 4
      %s227 = scalar_lea.vmem %s0, %s226
      %p228 = pneg %p48
      %p229 = pneg %p45
      %p230 = scmp.lt.s32.totalorder %s19, 1
      %s231 = scalar_select %p230, %s19, 1
      %p232 = scmp.lt.s32.totalorder %s20, 0
      %s233 = scalar_select %p232, %s20, 0
      %s234 = smul.addr %s231, 4
      %s235 = sadd.s32 %s233, %s234
      %s236 = smul.addr %s235, 4
      %s237 = scalar_lea.vmem %s1, %s236
      %p238 = pneg %p76
      %p239 = pneg %p73
      %p240 = scmp.lt.s32.totalorder %s19, 1
      %s241 = scalar_select %p240, %s19, 1
      %p242 = scmp.lt.s32.totalorder %s20, 0
      %s243 = scalar_select %p242, %s20, 0
      %s244 = smul.addr %s241, 4
      %s245 = sadd.s32 %s243, %s244
      %s246 = smul.addr %s245, 4
      %s247 = scalar_lea.vmem %s2, %s246
      %p248 = pneg %p104
      %p249 = pneg %p101
      %p250 = scmp.lt.s32.totalorder %s19, 1
      %s251 = scalar_select %p250, %s19, 1
      %p252 = scmp.lt.s32.totalorder %s20, 0
      %s253 = scalar_select %p252, %s20, 0
      %s254 = sadd.s32 %s253, %s251
      %s255 = scalar_lea.vmem %s3, %s254
      %p256 = pneg %p132
      %p257 = pneg %p129
      %p258 = pneg %p158
      %p259 = pneg %p155
      %p260 = scmp.lt.s32.totalorder %s19, 1
      %s261 = scalar_select %p260, %s19, 1
      %s262 = smul.addr %s261, 4
      %s263 = smul.addr %s262, 4
      %s264 = scalar_lea.vmem %s4, %s263
      %p265 = scmp.lt.s32.totalorder %s19, 1
      %s266 = scalar_select %p265, %s19, 1
      %s267 = smul.addr %s266, 4
      %s268 = smul.addr %s267, 4
      %s269 = scalar_lea.vmem %s0, %s268
      %p270 = scmp.lt.s32.totalorder %s19, 1
      %s271 = scalar_select %p270, %s19, 1
      %p272 = scmp.lt.s32.totalorder %s20, 0
      %s273 = scalar_select %p272, %s20, 0
      %s274 = smul.addr %s271, 4
      %s275 = sadd.s32 %s273, %s274
      %s276 = smul.addr %s275, 4
      %s277 = scalar_lea.vmem %s1, %s276
      %p278 = scmp.lt.s32.totalorder %s19, 1
      %s279 = scalar_select %p278, %s19, 1
      %p280 = scmp.lt.s32.totalorder %s20, 0
      %s281 = scalar_select %p280, %s20, 0
      %s282 = smul.addr %s279, 4
      %s283 = sadd.s32 %s281, %s282
      %s284 = smul.addr %s283, 4
      %s285 = scalar_lea.vmem %s2, %s284
      %p286 = scmp.lt.s32.totalorder %s19, 1
      %s287 = scalar_select %p286, %s19, 1
      %p288 = scmp.lt.s32.totalorder %s20, 0
      %s289 = scalar_select %p288, %s20, 0
      %s290 = sadd.s32 %s289, %s287
      %s291 = scalar_lea.vmem %s3, %s290
      %p292 = scmp.lt.s32.totalorder %s19, 1
      %s293 = scalar_select %p292, %s19, 1
      %s294 = smul.addr %s293, 4
      %s295 = smul.addr %s294, 4
      %s296 = scalar_lea.vmem %s4, %s295
      %p298 = scmp.eq.s32.totalorder %s20, 0
      // Predicated region
      $region37: #{text_encoder_forward.14} parent=35 // pred_check
        %p299 = pneg %p298
      $region38: #{text_encoder_forward.14} parent=35 // pred_check_branch
        %301 = sbr.rel (%p299) target = $region40
      $region39: #{text_encoder_forward.14} parent=35 // pred_region
        %vm302 = vcmask 7168
        %303 = vst.msk [vmem:[#allocation2] sm:$0xff] %vm302, -inf
        %304 = vst.msk [vmem:[#allocation2 + $0x8] sm:$0xff] %vm302, -inf
        %305 = vst.msk [vmem:[#allocation2 + $0x10] sm:$0xff] %vm302, -inf
        %306 = vst.msk [vmem:[#allocation2 + $0x18] sm:$0xff] %vm302, -inf
        %307 = vst.msk [vmem:[#allocation3] sm:$0xff] %vm302, 0.0
        %308 = vst.msk [vmem:[#allocation3 + $0x8] sm:$0xff] %vm302, 0.0
        %309 = vst.msk [vmem:[#allocation3 + $0x10] sm:$0xff] %vm302, 0.0
        %310 = vst.msk [vmem:[#allocation3 + $0x18] sm:$0xff] %vm302, 0.0
        %vm311 = vcmask 64512
        %312 = vst.msk [vmem:[#allocation4] sm:$0xff] %vm311, 0.0
        %313 = vst.msk [vmem:[#allocation4 + $0x8] sm:$0xff] %vm311, 0.0
        %314 = vst.msk [vmem:[#allocation4 + $0x10] sm:$0xff] %vm311, 0.0
        %315 = vst.msk [vmem:[#allocation4 + $0x18] sm:$0xff] %vm311, 0.0
      $region40: #{text_encoder_forward.14} parent=35 // pred_fallthru
        _
      %v316 = vld [vmem:[%s269] sm:$0xf]
      %v317 = vld [vmem:[%s269 + $0x4] sm:$0xf]
      %v318 = vld [vmem:[%s269 + $0x8] sm:$0xf]
      %v319 = vld [vmem:[%s269 + $0xc] sm:$0xf]
      %v320 = vld [vmem:[%s277] sm:$0xf]
      %v321 = vld [vmem:[%s277 + $0x4] sm:$0xf]
      %v322 = vld [vmem:[%s277 + $0x8] sm:$0xf]
      %v323 = vld [vmem:[%s277 + $0xc] sm:$0xf]
      %v324 = vld [vmem:[%s291] sm:$0x1]
      %v326 = vlaneseq
      %v327 = vshrl.u32 %v326, 7
      %v328 = vsub.s32 0, %v327
      %v329 = vrot.slane %v324, %v328
      %vm331 = vcmask 64512
      %v333 = vsel %vm331, %v316, 0
      %v336 = vsel %vm331, %v320, 0
      %338 = vmatprep.subr.bf16.mxu0 0
      %339 = vmatpush1.bf16.xpose.msra.mxu0 %v336
      %340 = vmatprep.subr.bf16.mxu0 0
      %341 = vmatpush1.bf16.xpose.msra.mxu0 0
      %342 = vmatprep.subr.bf16.mxu0 0
      %343 = vmatpush1.bf16.xpose.msra.mxu0 0
      %344 = vmatprep.subr.bf16.mxu0 0
      %345 = vmatpush1.bf16.xpose.msra.mxu0 0
      %346 = vmatprep.subr.bf16.mxu0 0
      %347 = vmatpush1.bf16.xpose.msra.mxu0 0
      %348 = vmatprep.subr.bf16.mxu0 0
      %349 = vmatpush1.bf16.xpose.msra.mxu0 0
      %350 = vmatprep.subr.bf16.mxu0 0
      %351 = vmatpush1.bf16.xpose.msra.mxu0 0
      %352 = vmatprep.subr.bf16.mxu0 0
      %353 = vmatpush1.bf16.xpose.msra.mxu0 0
      %354 = vmatprep.subr.bf16.mxu0 0
      %355 = vmatpush1.bf16.xpose.msra.mxu0 0
      %356 = vmatprep.subr.bf16.mxu0 0
      %357 = vmatpush1.bf16.xpose.msra.mxu0 0
      %358 = vmatprep.subr.bf16.mxu0 0
      %359 = vmatpush1.bf16.xpose.msra.mxu0 0
      %360 = vmatprep.subr.bf16.mxu0 0
      %361 = vmatpush1.bf16.xpose.msra.mxu0 0
      %362 = vmatprep.subr.bf16.mxu0 0
      %363 = vmatpush1.bf16.xpose.msra.mxu0 0
      %364 = vmatprep.subr.bf16.mxu0 0
      %365 = vmatpush1.bf16.xpose.msra.mxu0 0
      %366 = vmatprep.subr.bf16.mxu0 0
      %367 = vmatpush1.bf16.xpose.msra.mxu0 0
      %368 = vmatprep.subr.bf16.mxu0 0
      %369 = vmatpush1.bf16.xpose.msra.mxu0 0
      %370 = vmatprep.mubr.bf16.mxu0 0
      %371 = vmatmul.mubr.bf16.gmra.mrb[0].mxu0 %v333
      %v372 = vpop.f32.mrb[0].mxu0
      %v373 = vadd.f32 %v329, %v372
      %v374 = vpop.f32.mrb[0].mxu0
      %v375 = vpop.f32.mrb[0].mxu0
      %v376 = vpop.f32.mrb[0].mxu0
      %377 = vdwg.mxu0
      %v379 = vsel %vm331, %v317, 0
      %v382 = vsel %vm331, %v321, 0
      %384 = vmatprep.subr.bf16.mxu0 0
      %385 = vmatpush1.bf16.xpose.msra.mxu0 %v382
      %386 = vmatprep.subr.bf16.mxu0 0
      %387 = vmatpush1.bf16.xpose.msra.mxu0 0
      %388 = vmatprep.subr.bf16.mxu0 0
      %389 = vmatpush1.bf16.xpose.msra.mxu0 0
      %390 = vmatprep.subr.bf16.mxu0 0
      %391 = vmatpush1.bf16.xpose.msra.mxu0 0
      %392 = vmatprep.subr.bf16.mxu0 0
      %393 = vmatpush1.bf16.xpose.msra.mxu0 0
      %394 = vmatprep.subr.bf16.mxu0 0
      %395 = vmatpush1.bf16.xpose.msra.mxu0 0
      %396 = vmatprep.subr.bf16.mxu0 0
      %397 = vmatpush1.bf16.xpose.msra.mxu0 0
      %398 = vmatprep.subr.bf16.mxu0 0
      %399 = vmatpush1.bf16.xpose.msra.mxu0 0
      %400 = vmatprep.subr.bf16.mxu0 0
      %401 = vmatpush1.bf16.xpose.msra.mxu0 0
      %402 = vmatprep.subr.bf16.mxu0 0
      %403 = vmatpush1.bf16.xpose.msra.mxu0 0
      %404 = vmatprep.subr.bf16.mxu0 0
      %405 = vmatpush1.bf16.xpose.msra.mxu0 0
      %406 = vmatprep.subr.bf16.mxu0 0
      %407 = vmatpush1.bf16.xpose.msra.mxu0 0
      %408 = vmatprep.subr.bf16.mxu0 0
      %409 = vmatpush1.bf16.xpose.msra.mxu0 0
      %410 = vmatprep.subr.bf16.mxu0 0
      %411 = vmatpush1.bf16.xpose.msra.mxu0 0
      %412 = vmatprep.subr.bf16.mxu0 0
      %413 = vmatpush1.bf16.xpose.msra.mxu0 0
      %414 = vmatprep.subr.bf16.mxu0 0
      %415 = vmatpush1.bf16.xpose.msra.mxu0 0
      %416 = vmatprep.mubr.bf16.mxu0 0
      %417 = vmatmul.mubr.bf16.gmra.mrb[0].mxu0 %v379
      %v418 = vpop.f32.mrb[0].mxu0
      %v419 = vadd.f32 %v329, %v418
      %v420 = vpop.f32.mrb[0].mxu0
      %v421 = vpop.f32.mrb[0].mxu0
      %v422 = vpop.f32.mrb[0].mxu0
      %423 = vdwg.mxu0
      %v425 = vsel %vm331, %v318, 0
      %v428 = vsel %vm331, %v322, 0
      %430 = vmatprep.subr.bf16.mxu0 0
      %431 = vmatpush1.bf16.xpose.msra.mxu0 %v428
      %432 = vmatprep.subr.bf16.mxu0 0
      %433 = vmatpush1.bf16.xpose.msra.mxu0 0
      %434 = vmatprep.subr.bf16.mxu0 0
      %435 = vmatpush1.bf16.xpose.msra.mxu0 0
      %436 = vmatprep.subr.bf16.mxu0 0
      %437 = vmatpush1.bf16.xpose.msra.mxu0 0
      %438 = vmatprep.subr.bf16.mxu0 0
      %439 = vmatpush1.bf16.xpose.msra.mxu0 0
      %440 = vmatprep.subr.bf16.mxu0 0
      %441 = vmatpush1.bf16.xpose.msra.mxu0 0
      %442 = vmatprep.subr.bf16.mxu0 0
      %443 = vmatpush1.bf16.xpose.msra.mxu0 0
      %444 = vmatprep.subr.bf16.mxu0 0
      %445 = vmatpush1.bf16.xpose.msra.mxu0 0
      %446 = vmatprep.subr.bf16.mxu0 0
      %447 = vmatpush1.bf16.xpose.msra.mxu0 0
      %448 = vmatprep.subr.bf16.mxu0 0
      %449 = vmatpush1.bf16.xpose.msra.mxu0 0
      %450 = vmatprep.subr.bf16.mxu0 0
      %451 = vmatpush1.bf16.xpose.msra.mxu0 0
      %452 = vmatprep.subr.bf16.mxu0 0
      %453 = vmatpush1.bf16.xpose.msra.mxu0 0
      %454 = vmatprep.subr.bf16.mxu0 0
      %455 = vmatpush1.bf16.xpose.msra.mxu0 0
      %456 = vmatprep.subr.bf16.mxu0 0
      %457 = vmatpush1.bf16.xpose.msra.mxu0 0
      %458 = vmatprep.subr.bf16.mxu0 0
      %459 = vmatpush1.bf16.xpose.msra.mxu0 0
      %460 = vmatprep.subr.bf16.mxu0 0
      %461 = vmatpush1.bf16.xpose.msra.mxu0 0
      %462 = vmatprep.mubr.bf16.mxu0 0
      %463 = vmatmul.mubr.bf16.gmra.mrb[0].mxu0 %v425
      %v464 = vpop.f32.mrb[0].mxu0
      %v465 = vadd.f32 %v329, %v464
      %v466 = vpop.f32.mrb[0].mxu0
      %v467 = vpop.f32.mrb[0].mxu0
      %v468 = vpop.f32.mrb[0].mxu0
      %469 = vdwg.mxu0
      %v471 = vsel %vm331, %v319, 0
      %v474 = vsel %vm331, %v323, 0
      %476 = vmatprep.subr.bf16.mxu0 0
      %477 = vmatpush1.bf16.xpose.msra.mxu0 %v474
      %478 = vmatprep.subr.bf16.mxu0 0
      %479 = vmatpush1.bf16.xpose.msra.mxu0 0
      %480 = vmatprep.subr.bf16.mxu0 0
      %481 = vmatpush1.bf16.xpose.msra.mxu0 0
      %482 = vmatprep.subr.bf16.mxu0 0
      %483 = vmatpush1.bf16.xpose.msra.mxu0 0
      %484 = vmatprep.subr.bf16.mxu0 0
      %485 = vmatpush1.bf16.xpose.msra.mxu0 0
      %486 = vmatprep.subr.bf16.mxu0 0
      %487 = vmatpush1.bf16.xpose.msra.mxu0 0
      %488 = vmatprep.subr.bf16.mxu0 0
      %489 = vmatpush1.bf16.xpose.msra.mxu0 0
      %490 = vmatprep.subr.bf16.mxu0 0
      %491 = vmatpush1.bf16.xpose.msra.mxu0 0
      %492 = vmatprep.subr.bf16.mxu0 0
      %493 = vmatpush1.bf16.xpose.msra.mxu0 0
      %494 = vmatprep.subr.bf16.mxu0 0
      %495 = vmatpush1.bf16.xpose.msra.mxu0 0
      %496 = vmatprep.subr.bf16.mxu0 0
      %497 = vmatpush1.bf16.xpose.msra.mxu0 0
      %498 = vmatprep.subr.bf16.mxu0 0
      %499 = vmatpush1.bf16.xpose.msra.mxu0 0
      %500 = vmatprep.subr.bf16.mxu0 0
      %501 = vmatpush1.bf16.xpose.msra.mxu0 0
      %502 = vmatprep.subr.bf16.mxu0 0
      %503 = vmatpush1.bf16.xpose.msra.mxu0 0
      %504 = vmatprep.subr.bf16.mxu0 0
      %505 = vmatpush1.bf16.xpose.msra.mxu0 0
      %506 = vmatprep.subr.bf16.mxu0 0
      %507 = vmatpush1.bf16.xpose.msra.mxu0 0
      %508 = vmatprep.mubr.bf16.mxu0 0
      %509 = vmatmul.mubr.bf16.gmra.mrb[0].mxu0 %v471
      %v510 = vpop.f32.mrb[0].mxu0
      %v511 = vadd.f32 %v329, %v510
      %v512 = vpop.f32.mrb[0].mxu0
      %v513 = vpop.f32.mrb[0].mxu0
      %v514 = vpop.f32.mrb[0].mxu0
      %515 = vdwg.mxu0
      %v516 = vld [vmem:[#allocation2] sm:$0xff]
      %v517 = vld [vmem:[#allocation2 + $0x8] sm:$0xff]
      %v518 = vld [vmem:[#allocation2 + $0x10] sm:$0xff]
      %v519 = vld [vmem:[#allocation2 + $0x18] sm:$0xff]
      %v520 = vsel %vm331, %v373, -inf
      %521 = vmax.xlane.f32.xlu0 %v520
      %v522 = vpop.xlane.xlu0 %521
      %v523 = vsel %vm331, %v419, -inf
      %524 = vmax.xlane.f32.xlu0 %v523
      %v525 = vpop.xlane.xlu0 %524
      %v526 = vsel %vm331, %v465, -inf
      %527 = vmax.xlane.f32.xlu0 %v526
      %v528 = vpop.xlane.xlu0 %527
      %v529 = vsel %vm331, %v511, -inf
      %530 = vmax.xlane.f32.xlu0 %v529
      %v531 = vpop.xlane.xlu0 %530
      %v532 = vmax.f32 %v516, %v522
      %v533 = vmax.f32 %v517, %v525
      %v534 = vmax.f32 %v518, %v528
      %v535 = vmax.f32 %v519, %v531
      %v536 = vsub.f32 %v516, %v532
      %v537 = vsub.f32 %v517, %v533
      %v538 = vsub.f32 %v518, %v534
      %v539 = vsub.f32 %v519, %v535
      %v540 = vmul.f32 %v536, 1.442695
      %v541 = vpow.pop %v540
      %v542 = vmul.f32 %v537, 1.442695
      %v543 = vpow.pop %v542
      %v544 = vmul.f32 %v538, 1.442695
      %v545 = vpow.pop %v544
      %v546 = vmul.f32 %v539, 1.442695
      %v547 = vpow.pop %v546
      %549 = vset.pattern.permute.xlu0 0
      %550 = vperm.xlu0 %549, %v532
      %v551 = vpop.permute.xlu0 %550
      %554 = vset.pattern.permute.xlu0 0
      %555 = vperm.xlu0 %554, %v533
      %v556 = vpop.permute.xlu0 %555
      %559 = vset.pattern.permute.xlu0 0
      %560 = vperm.xlu0 %559, %v534
      %v561 = vpop.permute.xlu0 %560
      %564 = vset.pattern.permute.xlu0 0
      %565 = vperm.xlu0 %564, %v535
      %v566 = vpop.permute.xlu0 %565
      %v568 = vsub.f32 %v373, %v551
      %v569 = vsub.f32 %v419, %v556
      %v570 = vsub.f32 %v465, %v561
      %v571 = vsub.f32 %v511, %v566
      %v572 = vmul.f32 %v568, 1.442695
      %v573 = vpow.pop %v572
      %v574 = vmul.f32 %v569, 1.442695
      %v575 = vpow.pop %v574
      %v576 = vmul.f32 %v570, 1.442695
      %v577 = vpow.pop %v576
      %v578 = vmul.f32 %v571, 1.442695
      %v579 = vpow.pop %v578
      %v580 = vld [vmem:[#allocation3] sm:$0xff]
      %v581 = vld [vmem:[#allocation3 + $0x8] sm:$0xff]
      %v582 = vld [vmem:[#allocation3 + $0x10] sm:$0xff]
      %v583 = vld [vmem:[#allocation3 + $0x18] sm:$0xff]
      %v584 = vmul.f32 %v541, %v580
      %v585 = vmul.f32 %v543, %v581
      %v586 = vmul.f32 %v545, %v582
      %v587 = vmul.f32 %v547, %v583
      %v588 = vsel %vm331, %v573, 0.0
      %589 = vadd.xlane.f32.xlu0 %v588
      %v590 = vpop.xlane.xlu0 %589
      %v591 = vsel %vm331, %v575, 0.0
      %592 = vadd.xlane.f32.xlu0 %v591
      %v593 = vpop.xlane.xlu0 %592
      %v594 = vsel %vm331, %v577, 0.0
      %595 = vadd.xlane.f32.xlu0 %v594
      %v596 = vpop.xlane.xlu0 %595
      %v597 = vsel %vm331, %v579, 0.0
      %598 = vadd.xlane.f32.xlu0 %v597
      %v599 = vpop.xlane.xlu0 %598
      %v600 = vadd.f32 %v584, %v590
      %v601 = vadd.f32 %v585, %v593
      %v602 = vadd.f32 %v586, %v596
      %v603 = vadd.f32 %v587, %v599
      %vm604 = vcmask 7168
      %605 = vst.msk [vmem:[#allocation3] sm:$0xff] %vm604, %v600
      %606 = vst.msk [vmem:[#allocation3 + $0x8] sm:$0xff] %vm604, %v601
      %607 = vst.msk [vmem:[#allocation3 + $0x10] sm:$0xff] %vm604, %v602
      %608 = vst.msk [vmem:[#allocation3 + $0x18] sm:$0xff] %vm604, %v603
      %v609 = vld [vmem:[#allocation4] sm:$0xff]
      %v610 = vld [vmem:[#allocation4 + $0x8] sm:$0xff]
      %v611 = vld [vmem:[#allocation4 + $0x10] sm:$0xff]
      %v612 = vld [vmem:[#allocation4 + $0x18] sm:$0xff]
      %614 = vset.pattern.permute.xlu0 0
      %615 = vperm.xlu0 %614, %v541
      %v616 = vpop.permute.xlu0 %615
      %619 = vset.pattern.permute.xlu0 0
      %620 = vperm.xlu0 %619, %v543
      %v621 = vpop.permute.xlu0 %620
      %624 = vset.pattern.permute.xlu0 0
      %625 = vperm.xlu0 %624, %v545
      %v626 = vpop.permute.xlu0 %625
      %629 = vset.pattern.permute.xlu0 0
      %630 = vperm.xlu0 %629, %v547
      %v631 = vpop.permute.xlu0 %630
      %v633 = vmul.f32 %v616, %v609
      %v634 = vmul.f32 %v621, %v610
      %v635 = vmul.f32 %v626, %v611
      %v636 = vmul.f32 %v631, %v612
      %v637 = vpack.c.bf16 %v573, %v573
      %v638 = vpack.c.bf16 %v575, %v575
      %v639 = vpack.c.bf16 %v577, %v577
      %v640 = vpack.c.bf16 %v579, %v579
      %v641 = vld [vmem:[%s285] sm:$0xf]
      %v642 = vld [vmem:[%s285 + $0x4] sm:$0xf]
      %v643 = vld [vmem:[%s285 + $0x8] sm:$0xf]
      %v644 = vld [vmem:[%s285 + $0xc] sm:$0xf]
      %v646 = vsel %vm331, %v637, 0
      %vm648 = vcmask 1043456
      %v650 = vsel %vm648, %v641, 0
      %652 = vmatprep.subr.bf16.mxu0 0
      %653 = vmatpush1.bf16.msra.mxu0 %v650
      %654 = vmatprep.subr.bf16.mxu0 0
      %655 = vmatpush1.bf16.msra.mxu0 0
      %656 = vmatprep.subr.bf16.mxu0 0
      %657 = vmatpush1.bf16.msra.mxu0 0
      %658 = vmatprep.subr.bf16.mxu0 0
      %659 = vmatpush1.bf16.msra.mxu0 0
      %660 = vmatprep.subr.bf16.mxu0 0
      %661 = vmatpush1.bf16.msra.mxu0 0
      %662 = vmatprep.subr.bf16.mxu0 0
      %663 = vmatpush1.bf16.msra.mxu0 0
      %664 = vmatprep.subr.bf16.mxu0 0
      %665 = vmatpush1.bf16.msra.mxu0 0
      %666 = vmatprep.subr.bf16.mxu0 0
      %667 = vmatpush1.bf16.msra.mxu0 0
      %668 = vmatprep.subr.bf16.mxu0 0
      %669 = vmatpush1.bf16.msra.mxu0 0
      %670 = vmatprep.subr.bf16.mxu0 0
      %671 = vmatpush1.bf16.msra.mxu0 0
      %672 = vmatprep.subr.bf16.mxu0 0
      %673 = vmatpush1.bf16.msra.mxu0 0
      %674 = vmatprep.subr.bf16.mxu0 0
      %675 = vmatpush1.bf16.msra.mxu0 0
      %676 = vmatprep.subr.bf16.mxu0 0
      %677 = vmatpush1.bf16.msra.mxu0 0
      %678 = vmatprep.subr.bf16.mxu0 0
      %679 = vmatpush1.bf16.msra.mxu0 0
      %680 = vmatprep.subr.bf16.mxu0 0
      %681 = vmatpush1.bf16.msra.mxu0 0
      %682 = vmatprep.subr.bf16.mxu0 0
      %683 = vmatpush1.bf16.msra.mxu0 0
      %684 = vmatprep.mubr.bf16.mxu0 0
      %685 = vmatmul.mubr.bf16.gmra.mrb[0].mxu0 %v646
      %v686 = vpop.f32.mrb[0].mxu0
      %v687 = vadd.f32 0.0, %v686
      %v688 = vpop.f32.mrb[0].mxu0
      %v689 = vpop.f32.mrb[0].mxu0
      %v690 = vpop.f32.mrb[0].mxu0
      %691 = vdwg.mxu0
      %v693 = vsel %vm331, %v638, 0
      %v696 = vsel %vm648, %v642, 0
      %698 = vmatprep.subr.bf16.mxu0 0
      %699 = vmatpush1.bf16.msra.mxu0 %v696
      %700 = vmatprep.subr.bf16.mxu0 0
      %701 = vmatpush1.bf16.msra.mxu0 0
      %702 = vmatprep.subr.bf16.mxu0 0
      %703 = vmatpush1.bf16.msra.mxu0 0
      %704 = vmatprep.subr.bf16.mxu0 0
      %705 = vmatpush1.bf16.msra.mxu0 0
      %706 = vmatprep.subr.bf16.mxu0 0
      %707 = vmatpush1.bf16.msra.mxu0 0
      %708 = vmatprep.subr.bf16.mxu0 0
      %709 = vmatpush1.bf16.msra.mxu0 0
      %710 = vmatprep.subr.bf16.mxu0 0
      %711 = vmatpush1.bf16.msra.mxu0 0
      %712 = vmatprep.subr.bf16.mxu0 0
      %713 = vmatpush1.bf16.msra.mxu0 0
      %714 = vmatprep.subr.bf16.mxu0 0
      %715 = vmatpush1.bf16.msra.mxu0 0
      %716 = vmatprep.subr.bf16.mxu0 0
      %717 = vmatpush1.bf16.msra.mxu0 0
      %718 = vmatprep.subr.bf16.mxu0 0
      %719 = vmatpush1.bf16.msra.mxu0 0
      %720 = vmatprep.subr.bf16.mxu0 0
      %721 = vmatpush1.bf16.msra.mxu0 0
      %722 = vmatprep.subr.bf16.mxu0 0
      %723 = vmatpush1.bf16.msra.mxu0 0
      %724 = vmatprep.subr.bf16.mxu0 0
      %725 = vmatpush1.bf16.msra.mxu0 0
      %726 = vmatprep.subr.bf16.mxu0 0
      %727 = vmatpush1.bf16.msra.mxu0 0
      %728 = vmatprep.subr.bf16.mxu0 0
      %729 = vmatpush1.bf16.msra.mxu0 0
      %730 = vmatprep.mubr.bf16.mxu0 0
      %731 = vmatmul.mubr.bf16.gmra.mrb[0].mxu0 %v693
      %v732 = vpop.f32.mrb[0].mxu0
      %v733 = vadd.f32 0.0, %v732
      %v734 = vpop.f32.mrb[0].mxu0
      %v735 = vpop.f32.mrb[0].mxu0
      %v736 = vpop.f32.mrb[0].mxu0
      %737 = vdwg.mxu0
      %v739 = vsel %vm331, %v639, 0
      %v742 = vsel %vm648, %v643, 0
      %744 = vmatprep.subr.bf16.mxu0 0
      %745 = vmatpush1.bf16.msra.mxu0 %v742
      %746 = vmatprep.subr.bf16.mxu0 0
      %747 = vmatpush1.bf16.msra.mxu0 0
      %748 = vmatprep.subr.bf16.mxu0 0
      %749 = vmatpush1.bf16.msra.mxu0 0
      %750 = vmatprep.subr.bf16.mxu0 0
      %751 = vmatpush1.bf16.msra.mxu0 0
      %752 = vmatprep.subr.bf16.mxu0 0
      %753 = vmatpush1.bf16.msra.mxu0 0
      %754 = vmatprep.subr.bf16.mxu0 0
      %755 = vmatpush1.bf16.msra.mxu0 0
      %756 = vmatprep.subr.bf16.mxu0 0
      %757 = vmatpush1.bf16.msra.mxu0 0
      %758 = vmatprep.subr.bf16.mxu0 0
      %759 = vmatpush1.bf16.msra.mxu0 0
      %760 = vmatprep.subr.bf16.mxu0 0
      %761 = vmatpush1.bf16.msra.mxu0 0
      %762 = vmatprep.subr.bf16.mxu0 0
      %763 = vmatpush1.bf16.msra.mxu0 0
      %764 = vmatprep.subr.bf16.mxu0 0
      %765 = vmatpush1.bf16.msra.mxu0 0
      %766 = vmatprep.subr.bf16.mxu0 0
      %767 = vmatpush1.bf16.msra.mxu0 0
      %768 = vmatprep.subr.bf16.mxu0 0
      %769 = vmatpush1.bf16.msra.mxu0 0
      %770 = vmatprep.subr.bf16.mxu0 0
      %771 = vmatpush1.bf16.msra.mxu0 0
      %772 = vmatprep.subr.bf16.mxu0 0
      %773 = vmatpush1.bf16.msra.mxu0 0
      %774 = vmatprep.subr.bf16.mxu0 0
      %775 = vmatpush1.bf16.msra.mxu0 0
      %776 = vmatprep.mubr.bf16.mxu0 0
      %777 = vmatmul.mubr.bf16.gmra.mrb[0].mxu0 %v739
      %v778 = vpop.f32.mrb[0].mxu0
      %v779 = vadd.f32 0.0, %v778
      %v780 = vpop.f32.mrb[0].mxu0
      %v781 = vpop.f32.mrb[0].mxu0
      %v782 = vpop.f32.mrb[0].mxu0
      %783 = vdwg.mxu0
      %v785 = vsel %vm331, %v640, 0
      %v788 = vsel %vm648, %v644, 0
      %790 = vmatprep.subr.bf16.mxu0 0
      %791 = vmatpush1.bf16.msra.mxu0 %v788
      %792 = vmatprep.subr.bf16.mxu0 0
      %793 = vmatpush1.bf16.msra.mxu0 0
      %794 = vmatprep.subr.bf16.mxu0 0
      %795 = vmatpush1.bf16.msra.mxu0 0
      %796 = vmatprep.subr.bf16.mxu0 0
      %797 = vmatpush1.bf16.msra.mxu0 0
      %798 = vmatprep.subr.bf16.mxu0 0
      %799 = vmatpush1.bf16.msra.mxu0 0
      %800 = vmatprep.subr.bf16.mxu0 0
      %801 = vmatpush1.bf16.msra.mxu0 0
      %802 = vmatprep.subr.bf16.mxu0 0
      %803 = vmatpush1.bf16.msra.mxu0 0
      %804 = vmatprep.subr.bf16.mxu0 0
      %805 = vmatpush1.bf16.msra.mxu0 0
      %806 = vmatprep.subr.bf16.mxu0 0
      %807 = vmatpush1.bf16.msra.mxu0 0
      %808 = vmatprep.subr.bf16.mxu0 0
      %809 = vmatpush1.bf16.msra.mxu0 0
      %810 = vmatprep.subr.bf16.mxu0 0
      %811 = vmatpush1.bf16.msra.mxu0 0
      %812 = vmatprep.subr.bf16.mxu0 0
      %813 = vmatpush1.bf16.msra.mxu0 0
      %814 = vmatprep.subr.bf16.mxu0 0
      %815 = vmatpush1.bf16.msra.mxu0 0
      %816 = vmatprep.subr.bf16.mxu0 0
      %817 = vmatpush1.bf16.msra.mxu0 0
      %818 = vmatprep.subr.bf16.mxu0 0
      %819 = vmatpush1.bf16.msra.mxu0 0
      %820 = vmatprep.subr.bf16.mxu0 0
      %821 = vmatpush1.bf16.msra.mxu0 0
      %822 = vmatprep.mubr.bf16.mxu0 0
      %823 = vmatmul.mubr.bf16.gmra.mrb[0].mxu0 %v785
      %v824 = vpop.f32.mrb[0].mxu0
      %v825 = vadd.f32 0.0, %v824
      %v826 = vpop.f32.mrb[0].mxu0
      %v827 = vpop.f32.mrb[0].mxu0
      %v828 = vpop.f32.mrb[0].mxu0
      %829 = vdwg.mxu0
      %v830 = vadd.f32 %v633, %v687
      %v831 = vadd.f32 %v634, %v733
      %v832 = vadd.f32 %v635, %v779
      %v833 = vadd.f32 %v636, %v825
      %834 = vst.msk [vmem:[#allocation4] sm:$0xff] %vm331, %v830
      %835 = vst.msk [vmem:[#allocation4 + $0x8] sm:$0xff] %vm331, %v831
      %836 = vst.msk [vmem:[#allocation4 + $0x10] sm:$0xff] %vm331, %v832
      %837 = vst.msk [vmem:[#allocation4 + $0x18] sm:$0xff] %vm331, %v833
      %838 = vst.msk [vmem:[#allocation2] sm:$0xff] %vm604, %v532
      %839 = vst.msk [vmem:[#allocation2 + $0x8] sm:$0xff] %vm604, %v533
      %840 = vst.msk [vmem:[#allocation2 + $0x10] sm:$0xff] %vm604, %v534
      %841 = vst.msk [vmem:[#allocation2 + $0x18] sm:$0xff] %vm604, %v535
      // Predicated region
      $region41: #{text_encoder_forward.14} parent=35 // pred_check
        %p842 = pneg %p298
      $region42: #{text_encoder_forward.14} parent=35 // pred_check_branch
        %844 = sbr.rel (%p842) target = $region44
      $region43: #{text_encoder_forward.14} parent=35 // pred_region
        %v845 = vld [vmem:[#allocation4] sm:$0xff]
        %v846 = vld [vmem:[#allocation4 + $0x8] sm:$0xff]
        %v847 = vld [vmem:[#allocation4 + $0x10] sm:$0xff]
        %v848 = vld [vmem:[#allocation4 + $0x18] sm:$0xff]
        %v849 = vld [vmem:[#allocation3] sm:$0xff]
        %v850 = vld [vmem:[#allocation3 + $0x8] sm:$0xff]
        %v851 = vld [vmem:[#allocation3 + $0x10] sm:$0xff]
        %v852 = vld [vmem:[#allocation3 + $0x18] sm:$0xff]
        %v853 = vrcp.pop %v849
        %v854 = vrcp.pop %v850
        %v855 = vrcp.pop %v851
        %v856 = vrcp.pop %v852
        %858 = vset.pattern.permute.xlu0 0
        %859 = vperm.xlu0 %858, %v853
        %v860 = vpop.permute.xlu0 %859
        %863 = vset.pattern.permute.xlu0 0
        %864 = vperm.xlu0 %863, %v854
        %v865 = vpop.permute.xlu0 %864
        %868 = vset.pattern.permute.xlu0 0
        %869 = vperm.xlu0 %868, %v855
        %v870 = vpop.permute.xlu0 %869
        %873 = vset.pattern.permute.xlu0 0
        %874 = vperm.xlu0 %873, %v856
        %v875 = vpop.permute.xlu0 %874
        %v877 = vmul.f32 %v845, %v860
        %v878 = vmul.f32 %v846, %v865
        %v879 = vmul.f32 %v847, %v870
        %v880 = vmul.f32 %v848, %v875
        %v881 = vpack.c.bf16 %v877, %v877
        %v882 = vpack.c.bf16 %v878, %v878
        %v883 = vpack.c.bf16 %v879, %v879
        %v884 = vpack.c.bf16 %v880, %v880
        %vm885 = vcmask 60416
        %886 = vst.msk [vmem:[%s296] sm:$0xf] %vm885, %v881
        %887 = vst.msk [vmem:[%s296 + $0x4] sm:$0xf] %vm885, %v882
        %888 = vst.msk [vmem:[%s296 + $0x8] sm:$0xf] %vm885, %v883
        %889 = vst.msk [vmem:[%s296 + $0xc] sm:$0xf] %vm885, %v884
      $region44: #{text_encoder_forward.14} parent=35 // pred_fallthru
        _
      %p890 = scmp.lt.s32.totalorder %s19, 1
      %s891 = scalar_select %p890, %s19, 1
      %s892 = smul.addr %s891, 4
      %s893 = smul.addr %s892, 4
      %s894 = scalar_lea.vmem %s4, %s893
      // Predicated region
      $region45: #{text_encoder_forward.14} parent=35 // pred_check
        %p895 = pneg %p155
      $region46: #{text_encoder_forward.14} parent=35 // pred_check_branch
        %897 = sbr.rel (%p895) target = $region48
      $region47: #{text_encoder_forward.14} parent=35 // pred_region
        _
      $region48: #{text_encoder_forward.14} parent=35 // pred_fallthru
        _
    $region36: #{text_encoder_forward.14} parent=5 // pred_fallthru
      _
    %p898 = scmp.le.s32.totalorder 2, %s10
    // Predicated region
    $region49: #{text_encoder_forward.14} parent=5 // pred_check
      %p899 = pneg %p898
    $region50: #{text_encoder_forward.14} parent=5 // pred_check_branch
      %901 = sbr.rel (%p899) target = $region52
    $region51: #{text_encoder_forward.14} parent=5 // pred_region
      %s902 = ssub.s32 %s10, 2
      // Predicated region
      $region53: #{text_encoder_forward.14} parent=51 // pred_check
        %p903 = pneg %p161
      $region54: #{text_encoder_forward.14} parent=51 // pred_check_branch
        %905 = sbr.rel (%p903) target = $region56
      $region55: #{text_encoder_forward.14} parent=51 // pred_region
        %p906 = scmp.lt.s32.totalorder %s21, 1
        %s907 = scalar_select %p906, %s21, 1
        %s908 = smul.addr %s907, 4
        %s909 = smul.addr %s908, 4
        %s910 = scalar_lea.vmem %s4, %s909
      $region56: #{text_encoder_forward.14} parent=51 // pred_fallthru
        _
    $region52: #{text_encoder_forward.14} parent=5 // pred_fallthru
      _
  $region6: #{text_encoder_forward.14} parent=0 // loop_footer
    %s14 = sadd.s32 1, %s10
  $region7: #{text_encoder_forward.14} parent=0 // loop_footer_branch
    %9 = sbr.rel target = $region3
  $region8: #{text_encoder_forward.14} parent=0 // loop_exit
    _

// kernel: text_encoder_forward.16
$region0: #{text_encoder_forward.16}
  #allocation0 [shape = 'u32[]', space=smem, size = 0x4, offset = 0x4, fixed_abs, tag = 'smem constant byte address 0x4 - core index']
  #allocation1 [shape = 'u32[144,128]{1,0:T(1,128)}', space=vmem, size = 0x12000, scoped, tag = 'internal scratch']
  #allocation2 [shape = 'f32[16,64]{1,0:T(8,128)}', space=vmem, size = 0x2000, scoped, tag = 'scratch operand']
  %s0 = inlined_call_operand.vmem [shape: bf16[16,32], index: 0, kind: input, shape index: {}]
  %s1 = inlined_call_operand.vmem [shape: bf16[32,64], index: 1, kind: input, shape index: {}]
  %s2 = inlined_call_operand.vmem [shape: f32[1,64], index: 2, kind: input, shape index: {}]
  %s3 = inlined_call_operand.vmem [shape: bf16[16,64], index: 3, kind: output, shape index: {}]
  %s4 = sld [smem:[#allocation0]]
  $region30: #{text_encoder_forward.16} parent=0
    _
  %s6 = ssub.s32 1, %s4
  %s7 = scalar_select 0, %s6, %s4
  // Predicated region
  $region2: #{text_encoder_forward.16} parent=0 // pred_check
    _
  $region3: #{text_encoder_forward.16} parent=0 // pred_check_branch
    %9 = sbr.rel (0) target = $region5
  $region4: #{text_encoder_forward.16} parent=0 // pred_region
    _
  $region5: #{text_encoder_forward.16} parent=0 // pred_fallthru
    _
  // Predicated region
  $region6: #{text_encoder_forward.16} parent=0 // pred_check
    _
  $region7: #{text_encoder_forward.16} parent=0 // pred_check_branch
    %11 = sbr.rel (0) target = $region9
  $region8: #{text_encoder_forward.16} parent=0 // pred_region
    _
  $region9: #{text_encoder_forward.16} parent=0 // pred_fallthru
    _
  // Predicated region
  $region10: #{text_encoder_forward.16} parent=0 // pred_check
    _
  $region11: #{text_encoder_forward.16} parent=0 // pred_check_branch
    %13 = sbr.rel (0) target = $region13
  $region12: #{text_encoder_forward.16} parent=0 // pred_region
    _
  $region13: #{text_encoder_forward.16} parent=0 // pred_fallthru
    _
  %p15 = scmp.eq.s32.totalorder 0, 0
  // Predicated region
  $region14: #{text_encoder_forward.16} parent=0 // pred_check
    %p16 = pneg %p15
  $region15: #{text_encoder_forward.16} parent=0 // pred_check_branch
    %18 = sbr.rel (%p16) target = $region17
  $region16: #{text_encoder_forward.16} parent=0 // pred_region
    %vm19 = vcmask 523264
    %20 = vst.msk [vmem:[#allocation2] sm:$0xff] %vm19, 0.0
    %21 = vst.msk [vmem:[#allocation2 + $0x8] sm:$0xff] %vm19, 0.0
  $region17: #{text_encoder_forward.16} parent=0 // pred_fallthru
    _
  %v22 = vld [vmem:[#allocation2] sm:$0xff]
  %v23 = vld [vmem:[#allocation2 + $0x8] sm:$0xff]
  %v24 = vld [vmem:[%s0] sm:$0xf]
  %v25 = vld [vmem:[%s0 + $0x4] sm:$0xf]
  %v26 = vld [vmem:[%s1] sm:$0xf]
  %v27 = vld [vmem:[%s1 + $0x4] sm:$0xf]
  %v28 = vld [vmem:[%s1 + $0x8] sm:$0xf]
  %v29 = vld [vmem:[%s1 + $0xc] sm:$0xf]
  %v32 = vunpack.c.l.b16 %v24
  %v33 = vunpack.c.l.b16 %v25
  %v34 = vpack.c.b16 %v33, %v32
  %v39 = vunpack.c.l.b16 %v26
  %v40 = vunpack.c.l.b16 %v27
  %v41 = vunpack.c.l.b16 %v28
  %v42 = vunpack.c.l.b16 %v29
  %v43 = vpack.c.b16 %v40, %v39
  %v44 = vpack.c.b16 %v42, %v41
  %vm47 = vcmask 261120
  %v49 = vsel %vm47, %v34, 0
  %51 = vmatprep.subr.bf16.mxu0 0
  %52 = vmatpush1.bf16.msra.mxu0 %v43
  %53 = vmatprep.subr.bf16.mxu0 0
  %54 = vmatpush1.bf16.msra.mxu0 %v44
  %55 = vmatprep.subr.bf16.mxu0 0
  %56 = vmatpush1.bf16.msra.mxu0 0
  %57 = vmatprep.subr.bf16.mxu0 0
  %58 = vmatpush1.bf16.msra.mxu0 0
  %59 = vmatprep.subr.bf16.mxu0 0
  %60 = vmatpush1.bf16.msra.mxu0 0
  %61 = vmatprep.subr.bf16.mxu0 0
  %62 = vmatpush1.bf16.msra.mxu0 0
  %63 = vmatprep.subr.bf16.mxu0 0
  %64 = vmatpush1.bf16.msra.mxu0 0
  %65 = vmatprep.subr.bf16.mxu0 0
  %66 = vmatpush1.bf16.msra.mxu0 0
  %67 = vmatprep.subr.bf16.mxu0 0
  %68 = vmatpush1.bf16.msra.mxu0 0
  %69 = vmatprep.subr.bf16.mxu0 0
  %70 = vmatpush1.bf16.msra.mxu0 0
  %71 = vmatprep.subr.bf16.mxu0 0
  %72 = vmatpush1.bf16.msra.mxu0 0
  %73 = vmatprep.subr.bf16.mxu0 0
  %74 = vmatpush1.bf16.msra.mxu0 0
  %75 = vmatprep.subr.bf16.mxu0 0
  %76 = vmatpush1.bf16.msra.mxu0 0
  %77 = vmatprep.subr.bf16.mxu0 0
  %78 = vmatpush1.bf16.msra.mxu0 0
  %79 = vmatprep.subr.bf16.mxu0 0
  %80 = vmatpush1.bf16.msra.mxu0 0
  %81 = vmatprep.subr.bf16.mxu0 0
  %82 = vmatpush1.bf16.msra.mxu0 0
  %83 = vmatprep.mubr.bf16.mxu0 0
  %84 = vmatmul.mubr.bf16.gmra.mrb[0].mxu0 %v49
  %v85 = vpop.f32.mrb[0].mxu0
  %v86 = vadd.f32 0.0, %v85
  %v87 = vpop.f32.mrb[0].mxu0
  %v88 = vpop.f32.mrb[0].mxu0
  %v89 = vadd.f32 0.0, %v88
  %v90 = vpop.f32.mrb[0].mxu0
  %91 = vdwg.mxu0
  %v92 = vadd.f32 %v22, %v86
  %v93 = vadd.f32 %v23, %v89
  %vm94 = vcmask 523264
  %95 = vst.msk [vmem:[#allocation2] sm:$0xff] %vm94, %v92
  %96 = vst.msk [vmem:[#allocation2 + $0x8] sm:$0xff] %vm94, %v93
  // Predicated region
  $region18: #{text_encoder_forward.16} parent=0 // pred_check
    %p97 = pneg %p15
  $region19: #{text_encoder_forward.16} parent=0 // pred_check_branch
    %99 = sbr.rel (%p97) target = $region21
  $region20: #{text_encoder_forward.16} parent=0 // pred_region
    %v100 = vld [vmem:[#allocation2] sm:$0xff]
    %v101 = vld [vmem:[#allocation2 + $0x8] sm:$0xff]
    %v102 = vld [vmem:[%s2] sm:$0x1]
    %v104 = vlaneseq
    %v105 = vshrl.u32 %v104, 7
    %v106 = vsub.s32 0, %v105
    %v107 = vrot.slane %v102, %v106
    %v109 = vadd.f32 %v100, %v107
    %v110 = vadd.f32 %v101, %v107
    %v111 = vmul.f32 %v109, 0.5
    %v112 = vmul.f32 %v110, 0.5
    %v113 = vmul.f32 %v109, 0.044715
    %v114 = vmul.f32 %v110, 0.044715
    %v115 = vmul.f32 %v113, %v109
    %v116 = vmul.f32 %v114, %v110
    %v117 = vmul.f32 %v115, %v109
    %v118 = vmul.f32 %v116, %v110
    %v119 = vadd.f32 %v109, %v117
    %v120 = vadd.f32 %v110, %v118
    %v121 = vmul.f32 %v119, 0.7978846
    %v122 = vmul.f32 %v120, 0.7978846
    %v123 = vtanh.pop %v121
    %v124 = vtanh.pop %v122
    %v125 = vadd.f32 %v123, 1.0
    %v126 = vadd.f32 %v124, 1.0
    %v127 = vmul.f32 %v111, %v125
    %v128 = vmul.f32 %v112, %v126
    %v129 = vpack.c.bf16 %v128, %v127
    %v131 = vunpack.c.l.b16 %v129
    %v132 = vunpack.c.h.b16 %v129
    %v133 = vpack.c.b16 %v131, %v131
    %v134 = vpack.c.b16 %v132, %v132
    %vm137 = vcmask 519168
    %138 = vst.msk [vmem:[%s3] sm:$0xf] %vm137, %v133
    %139 = vst.msk [vmem:[%s3 + $0x4] sm:$0xf] %vm137, %v134
  $region21: #{text_encoder_forward.16} parent=0 // pred_fallthru
    _
  // Predicated region
  $region22: #{text_encoder_forward.16} parent=0 // pred_check
    _
  $region23: #{text_encoder_forward.16} parent=0 // pred_check_branch
    %141 = sbr.rel (0) target = $region25
  $region24: #{text_encoder_forward.16} parent=0 // pred_region
    _
  $region25: #{text_encoder_forward.16} parent=0 // pred_fallthru
    _
  // Predicated region
  $region26: #{text_encoder_forward.16} parent=0 // pred_check
    _
  $region27: #{text_encoder_forward.16} parent=0 // pred_check_branch
    %143 = sbr.rel (0) target = $region29
  $region28: #{text_encoder_forward.16} parent=0 // pred_region
    _
  $region29: #{text_encoder_forward.16} parent=0 // pred_fallthru
    _

// kernel: text_encoder_forward.23
$region0: #{text_encoder_forward.23}
  #allocation0 [shape = 'u32[]', space=smem, size = 0x4, offset = 0x4, fixed_abs, tag = 'smem constant byte address 0x4 - core index']
  #allocation1 [shape = 'u32[144,128]{1,0:T(1,128)}', space=vmem, size = 0x12000, scoped, tag = 'internal scratch']
  %s0 = inlined_call_operand.vmem [shape: bf16[2,32], index: 0, kind: input, shape index: {}]
  %s1 = inlined_call_operand.vmem [shape: bf16[32,32], index: 1, kind: input, shape index: {}]
  %s2 = inlined_call_operand.vmem [shape: f32[1,32], index: 2, kind: input, shape index: {}]
  %s3 = inlined_call_operand.vmem [shape: bf16[32,16], index: 3, kind: input, shape index: {}]
  %s4 = inlined_call_operand.vmem [shape: f32[1,16], index: 4, kind: input, shape index: {}]
  %s5 = inlined_call_operand.hbm [shape: f32[2,16], index: 5, kind: output, shape index: {}]
  %s6 = sld [smem:[#allocation0]]
  $region30: #{text_encoder_forward.23} parent=0
    _
  %s8 = ssub.s32 1, %s6
  %s9 = scalar_select 0, %s8, %s6
  $region1: #{text_encoder_forward.23} parent=0
    #allocation2 [shape = 'u8[1024]{0}', space=vmem, size = 0x400, scoped, tag = 'output window, operand 0, single buffered']
    #allocation3 [shape = 's32[1]{0}', space=sflag, size = 0x4, scoped, tag = 'scoped memory for text_encoder_forward.23']
    %10 = vsyncpa [#allocation3], 0
    // Predicated region
    $region2: #{text_encoder_forward.23} parent=1 // pred_check
      _
    $region3: #{text_encoder_forward.23} parent=1 // pred_check_branch
      %12 = sbr.rel (0) target = $region5
    $region4: #{text_encoder_forward.23} parent=1 // pred_region
      _
    $region5: #{text_encoder_forward.23} parent=1 // pred_fallthru
      _
    // Predicated region
    $region6: #{text_encoder_forward.23} parent=1 // pred_check
      _
    $region7: #{text_encoder_forward.23} parent=1 // pred_check_branch
      %14 = sbr.rel (0) target = $region9
    $region8: #{text_encoder_forward.23} parent=1 // pred_region
      _
    $region9: #{text_encoder_forward.23} parent=1 // pred_fallthru
      _
    // Predicated region
    $region10: #{text_encoder_forward.23} parent=1 // pred_check
      _
    $region11: #{text_encoder_forward.23} parent=1 // pred_check_branch
      %16 = sbr.rel (0) target = $region13
    $region12: #{text_encoder_forward.23} parent=1 // pred_region
      _
    $region13: #{text_encoder_forward.23} parent=1 // pred_fallthru
      _
    // Predicated region
    $region14: #{text_encoder_forward.23} parent=1 // pred_check
      _
    $region15: #{text_encoder_forward.23} parent=1 // pred_check_branch
      %18 = sbr.rel (0) target = $region17
    $region16: #{text_encoder_forward.23} parent=1 // pred_region
      _
    $region17: #{text_encoder_forward.23} parent=1 // pred_fallthru
      _
    // Predicated region
    $region18: #{text_encoder_forward.23} parent=1 // pred_check
      _
    $region19: #{text_encoder_forward.23} parent=1 // pred_check_branch
      %20 = sbr.rel (0) target = $region21
    $region20: #{text_encoder_forward.23} parent=1 // pred_region
      _
    $region21: #{text_encoder_forward.23} parent=1 // pred_fallthru
      _
    %v22 = vld [vmem:[%s0] sm:$0x1]
    %v23 = vld [vmem:[%s1] sm:$0xf]
    %v24 = vld [vmem:[%s1 + $0x4] sm:$0xf]
    %v25 = vld [vmem:[%s1 + $0x8] sm:$0xf]
    %v26 = vld [vmem:[%s1 + $0xc] sm:$0xf]
    %v27 = vld [vmem:[%s2] sm:$0x1]
    %v29 = vlaneseq
    %v30 = vshrl.u32 %v29, 7
    %v31 = vsub.s32 0, %v30
    %v32 = vrot.slane %v27, %v31
    %v38 = vunpack.c.l.b16 %v23
    %v39 = vunpack.c.l.b16 %v24
    %v40 = vunpack.c.l.b16 %v25
    %v41 = vunpack.c.l.b16 %v26
    %v42 = vpack.c.b16 %v39, %v38
    %v43 = vpack.c.b16 %v41, %v40
    %vm46 = vcmask 261120
    %v48 = vsel %vm46, %v22, 0
    %50 = vmatprep.subr.bf16.mxu0 0
    %51 = vmatpush1.bf16.msra.mxu0 %v42
    %52 = vmatprep.subr.bf16.mxu0 0
    %53 = vmatpush1.bf16.msra.mxu0 %v43
    %54 = vmatprep.subr.bf16.mxu0 0
    %55 = vmatpush1.bf16.msra.mxu0 0
    %56 = vmatprep.subr.bf16.mxu0 0
    %57 = vmatpush1.bf16.msra.mxu0 0
    %58 = vmatprep.subr.bf16.mxu0 0
    %59 = vmatpush1.bf16.msra.mxu0 0
    %60 = vmatprep.subr.bf16.mxu0 0
    %61 = vmatpush1.bf16.msra.mxu0 0
    %62 = vmatprep.subr.bf16.mxu0 0
    %63 = vmatpush1.bf16.msra.mxu0 0
    %64 = vmatprep.subr.bf16.mxu0 0
    %65 = vmatpush1.bf16.msra.mxu0 0
    %66 = vmatprep.subr.bf16.mxu0 0
    %67 = vmatpush1.bf16.msra.mxu0 0
    %68 = vmatprep.subr.bf16.mxu0 0
    %69 = vmatpush1.bf16.msra.mxu0 0
    %70 = vmatprep.subr.bf16.mxu0 0
    %71 = vmatpush1.bf16.msra.mxu0 0
    %72 = vmatprep.subr.bf16.mxu0 0
    %73 = vmatpush1.bf16.msra.mxu0 0
    %74 = vmatprep.subr.bf16.mxu0 0
    %75 = vmatpush1.bf16.msra.mxu0 0
    %76 = vmatprep.subr.bf16.mxu0 0
    %77 = vmatpush1.bf16.msra.mxu0 0
    %78 = vmatprep.subr.bf16.mxu0 0
    %79 = vmatpush1.bf16.msra.mxu0 0
    %80 = vmatprep.subr.bf16.mxu0 0
    %81 = vmatpush1.bf16.msra.mxu0 0
    %82 = vmatprep.mubr.bf16.mxu0 0
    %83 = vmatmul.mubr.bf16.gmra.mrb[0].mxu0 %v48
    %v84 = vpop.f32.mrb[0].mxu0
    %v85 = vadd.f32 %v32, %v84
    %v86 = vpop.f32.mrb[0].mxu0
    %v87 = vpop.f32.mrb[0].mxu0
    %v88 = vpop.f32.mrb[0].mxu0
    %89 = vdwg.mxu0
    %v90 = vtanh.pop %v85
    %v91 = vpack.c.bf16 %v90, %v90
    %v92 = vld [vmem:[%s3] sm:$0xf]
    %v93 = vld [vmem:[%s3 + $0x4] sm:$0xf]
    %v94 = vld [vmem:[%s3 + $0x8] sm:$0xf]
    %v95 = vld [vmem:[%s3 + $0xc] sm:$0xf]
    %v96 = vld [vmem:[%s4] sm:$0x1]
    %v98 = vlaneseq
    %v99 = vshrl.u32 %v98, 7
    %v100 = vsub.s32 0, %v99
    %v101 = vrot.slane %v96, %v100
    %v107 = vunpack.c.l.b16 %v92
    %v108 = vunpack.c.l.b16 %v93
    %v109 = vunpack.c.l.b16 %v94
    %v110 = vunpack.c.l.b16 %v95
    %v111 = vpack.c.b16 %v108, %v107
    %v112 = vpack.c.b16 %v110, %v109
    %v116 = vsel %vm46, %v91, 0
    %118 = vmatprep.subr.bf16.mxu0 0
    %119 = vmatpush1.bf16.msra.mxu0 %v111
    %120 = vmatprep.subr.bf16.mxu0 0
    %121 = vmatpush1.bf16.msra.mxu0 %v112
    %122 = vmatprep.subr.bf16.mxu0 0
    %123 = vmatpush1.bf16.msra.mxu0 0
    %124 = vmatprep.subr.bf16.mxu0 0
    %125 = vmatpush1.bf16.msra.mxu0 0
    %126 = vmatprep.subr.bf16.mxu0 0
    %127 = vmatpush1.bf16.msra.mxu0 0
    %128 = vmatprep.subr.bf16.mxu0 0
    %129 = vmatpush1.bf16.msra.mxu0 0
    %130 = vmatprep.subr.bf16.mxu0 0
    %131 = vmatpush1.bf16.msra.mxu0 0
    %132 = vmatprep.subr.bf16.mxu0 0
    %133 = vmatpush1.bf16.msra.mxu0 0
    %134 = vmatprep.subr.bf16.mxu0 0
    %135 = vmatpush1.bf16.msra.mxu0 0
    %136 = vmatprep.subr.bf16.mxu0 0
    %137 = vmatpush1.bf16.msra.mxu0 0
    %138 = vmatprep.subr.bf16.mxu0 0
    %139 = vmatpush1.bf16.msra.mxu0 0
    %140 = vmatprep.subr.bf16.mxu0 0
    %141 = vmatpush1.bf16.msra.mxu0 0
    %142 = vmatprep.subr.bf16.mxu0 0
    %143 = vmatpush1.bf16.msra.mxu0 0
    %144 = vmatprep.subr.bf16.mxu0 0
    %145 = vmatpush1.bf16.msra.mxu0 0
    %146 = vmatprep.subr.bf16.mxu0 0
    %147 = vmatpush1.bf16.msra.mxu0 0
    %148 = vmatprep.subr.bf16.mxu0 0
    %149 = vmatpush1.bf16.msra.mxu0 0
    %150 = vmatprep.mubr.bf16.mxu0 0
    %151 = vmatmul.mubr.bf16.gmra.mrb[0].mxu0 %v116
    %v152 = vpop.f32.mrb[0].mxu0
    %v153 = vadd.f32 %v101, %v152
    %v154 = vpop.f32.mrb[0].mxu0
    %v155 = vpop.f32.mrb[0].mxu0
    %v156 = vpop.f32.mrb[0].mxu0
    %157 = vdwg.mxu0
    %vm158 = vcmask 123904
    %159 = vst.msk [vmem:[#allocation2] sm:$0x3] %vm158, %v153
    // Predicated region
    $region22: #{text_encoder_forward.23} parent=1 // pred_check
      _
    $region23: #{text_encoder_forward.23} parent=1 // pred_check_branch
      %161 = sbr.rel (0) target = $region25
    $region24: #{text_encoder_forward.23} parent=1 // pred_region
      %s163 = ssub.s32 32, 32
      %164 = vsyncadd [#allocation3], %s163
      %s166 = sshll.u32 [#allocation2], 4
      %s167 = int_to_ptr.vmem [resolvable:$true] %s166
      %169 = dma.vmem_to_hbm [thread:$0]  %s167, 32, %s5, [#allocation3]
    $region25: #{text_encoder_forward.23} parent=1 // pred_fallthru
      _
    // Predicated region
    $region26: #{text_encoder_forward.23} parent=1 // pred_check
      _
    $region27: #{text_encoder_forward.23} parent=1 // pred_check_branch
      %171 = sbr.rel (0) target = $region29
    $region28: #{text_encoder_forward.23} parent=1 // pred_region
      %172 = dma.done [#allocation3], 32
    $region29: #{text_encoder_forward.23} parent=1 // pred_fallthru
      _
    %173 = vsyncpa [#allocation3], 1

// kernel: text_encoder_forward.17
$region0: #{text_encoder_forward.17}
  #allocation0 [shape = 'u32[]', space=smem, size = 0x4, offset = 0x4, fixed_abs, tag = 'smem constant byte address 0x4 - core index']
  #allocation1 [shape = 'u32[144,128]{1,0:T(1,128)}', space=vmem, size = 0x12000, scoped, tag = 'internal scratch']
  #allocation2 [shape = 'f32[16,32]{1,0:T(8,128)}', space=vmem, size = 0x2000, scoped, tag = 'scratch operand']
  %s0 = inlined_call_operand.vmem [shape: bf16[16,64], index: 0, kind: input, shape index: {}]
  %s1 = inlined_call_operand.vmem [shape: bf16[64,32], index: 1, kind: input, shape index: {}]
  %s2 = inlined_call_operand.vmem [shape: f32[1,32], index: 2, kind: input, shape index: {}]
  %s3 = inlined_call_operand.vmem [shape: bf16[16,32], index: 3, kind: input, shape index: {}]
  %s4 = inlined_call_operand.vmem [shape: f32[1,32], index: 4, kind: input, shape index: {}]
  %s5 = inlined_call_operand.vmem [shape: f32[1,32], index: 5, kind: input, shape index: {}]
  %s6 = inlined_call_operand.vmem [shape: bf16[16,32], index: 6, kind: output, shape index: {}]
  %s7 = sld [smem:[#allocation0]]
  $region42: #{text_encoder_forward.17} parent=0
    _
  %s9 = ssub.s32 1, %s7
  %s10 = scalar_select 0, %s9, %s7
  // Predicated region
  $region2: #{text_encoder_forward.17} parent=0 // pred_check
    _
  $region3: #{text_encoder_forward.17} parent=0 // pred_check_branch
    %12 = sbr.rel (0) target = $region5
  $region4: #{text_encoder_forward.17} parent=0 // pred_region
    _
  $region5: #{text_encoder_forward.17} parent=0 // pred_fallthru
    _
  // Predicated region
  $region6: #{text_encoder_forward.17} parent=0 // pred_check
    _
  $region7: #{text_encoder_forward.17} parent=0 // pred_check_branch
    %14 = sbr.rel (0) target = $region9
  $region8: #{text_encoder_forward.17} parent=0 // pred_region
    _
  $region9: #{text_encoder_forward.17} parent=0 // pred_fallthru
    _
  // Predicated region
  $region10: #{text_encoder_forward.17} parent=0 // pred_check
    _
  $region11: #{text_encoder_forward.17} parent=0 // pred_check_branch
    %16 = sbr.rel (0) target = $region13
  $region12: #{text_encoder_forward.17} parent=0 // pred_region
    _
  $region13: #{text_encoder_forward.17} parent=0 // pred_fallthru
    _
  // Predicated region
  $region14: #{text_encoder_forward.17} parent=0 // pred_check
    _
  $region15: #{text_encoder_forward.17} parent=0 // pred_check_branch
    %18 = sbr.rel (0) target = $region17
  $region16: #{text_encoder_forward.17} parent=0 // pred_region
    _
  $region17: #{text_encoder_forward.17} parent=0 // pred_fallthru
    _
  // Predicated region
  $region18: #{text_encoder_forward.17} parent=0 // pred_check
    _
  $region19: #{text_encoder_forward.17} parent=0 // pred_check_branch
    %20 = sbr.rel (0) target = $region21
  $region20: #{text_encoder_forward.17} parent=0 // pred_region
    _
  $region21: #{text_encoder_forward.17} parent=0 // pred_fallthru
    _
  // Predicated region
  $region22: #{text_encoder_forward.17} parent=0 // pred_check
    _
  $region23: #{text_encoder_forward.17} parent=0 // pred_check_branch
    %22 = sbr.rel (0) target = $region25
  $region24: #{text_encoder_forward.17} parent=0 // pred_region
    _
  $region25: #{text_encoder_forward.17} parent=0 // pred_fallthru
    _
  %p24 = scmp.eq.s32.totalorder 0, 0
  // Predicated region
  $region26: #{text_encoder_forward.17} parent=0 // pred_check
    %p25 = pneg %p24
  $region27: #{text_encoder_forward.17} parent=0 // pred_check_branch
    %27 = sbr.rel (%p25) target = $region29
  $region28: #{text_encoder_forward.17} parent=0 // pred_region
    %vm28 = vcmask 261120
    %29 = vst.msk [vmem:[#allocation2] sm:$0xff] %vm28, 0.0
    %30 = vst.msk [vmem:[#allocation2 + $0x8] sm:$0xff] %vm28, 0.0
  $region29: #{text_encoder_forward.17} parent=0 // pred_fallthru
    _
  %v31 = vld [vmem:[#allocation2] sm:$0xff]
  %v32 = vld [vmem:[#allocation2 + $0x8] sm:$0xff]
  %v33 = vld [vmem:[%s0] sm:$0xf]
  %v34 = vld [vmem:[%s0 + $0x4] sm:$0xf]
  %v35 = vld [vmem:[%s1] sm:$0xf]
  %v36 = vld [vmem:[%s1 + $0x4] sm:$0xf]
  %v37 = vld [vmem:[%s1 + $0x8] sm:$0xf]
  %v38 = vld [vmem:[%s1 + $0xc] sm:$0xf]
  %v39 = vld [vmem:[%s1 + $0x10] sm:$0xf]
  %v40 = vld [vmem:[%s1 + $0x14] sm:$0xf]
  %v41 = vld [vmem:[%s1 + $0x18] sm:$0xf]
  %v42 = vld [vmem:[%s1 + $0x1c] sm:$0xf]
  %v45 = vunpack.c.l.b16 %v33
  %v46 = vunpack.c.l.b16 %v34
  %v47 = vpack.c.b16 %v46, %v45
  %v56 = vunpack.c.l.b16 %v35
  %v57 = vunpack.c.l.b16 %v36
  %v58 = vunpack.c.l.b16 %v37
  %v59 = vunpack.c.l.b16 %v38
  %v60 = vunpack.c.l.b16 %v39
  %v61 = vunpack.c.l.b16 %v40
  %v62 = vunpack.c.l.b16 %v41
  %v63 = vunpack.c.l.b16 %v42
  %v64 = vpack.c.b16 %v57, %v56
  %v65 = vpack.c.b16 %v59, %v58
  %v66 = vpack.c.b16 %v61, %v60
  %v67 = vpack.c.b16 %v63, %v62
  %vm72 = vcmask 523264
  %v74 = vsel %vm72, %v47, 0
  %76 = vmatprep.subr.bf16.mxu0 0
  %77 = vmatpush1.bf16.msra.mxu0 %v64
  %78 = vmatprep.subr.bf16.mxu0 0
  %79 = vmatpush1.bf16.msra.mxu0 %v65
  %80 = vmatprep.subr.bf16.mxu0 0
  %81 = vmatpush1.bf16.msra.mxu0 %v66
  %82 = vmatprep.subr.bf16.mxu0 0
  %83 = vmatpush1.bf16.msra.mxu0 %v67
  %84 = vmatprep.subr.bf16.mxu0 0
  %85 = vmatpush1.bf16.msra.mxu0 0
  %86 = vmatprep.subr.bf16.mxu0 0
  %87 = vmatpush1.bf16.msra.mxu0 0
  %88 = vmatprep.subr.bf16.mxu0 0
  %89 = vmatpush1.bf16.msra.mxu0 0
  %90 = vmatprep.subr.bf16.mxu0 0
  %91 = vmatpush1.bf16.msra.mxu0 0
  %92 = vmatprep.subr.bf16.mxu0 0
  %93 = vmatpush1.bf16.msra.mxu0 0
  %94 = vmatprep.subr.bf16.mxu0 0
  %95 = vmatpush1.bf16.msra.mxu0 0
  %96 = vmatprep.subr.bf16.mxu0 0
  %97 = vmatpush1.bf16.msra.mxu0 0
  %98 = vmatprep.subr.bf16.mxu0 0
  %99 = vmatpush1.bf16.msra.mxu0 0
  %100 = vmatprep.subr.bf16.mxu0 0
  %101 = vmatpush1.bf16.msra.mxu0 0
  %102 = vmatprep.subr.bf16.mxu0 0
  %103 = vmatpush1.bf16.msra.mxu0 0
  %104 = vmatprep.subr.bf16.mxu0 0
  %105 = vmatpush1.bf16.msra.mxu0 0
  %106 = vmatprep.subr.bf16.mxu0 0
  %107 = vmatpush1.bf16.msra.mxu0 0
  %108 = vmatprep.mubr.bf16.mxu0 0
  %109 = vmatmul.mubr.bf16.gmra.mrb[0].mxu0 %v74
  %v110 = vpop.f32.mrb[0].mxu0
  %v111 = vadd.f32 0.0, %v110
  %v112 = vpop.f32.mrb[0].mxu0
  %v113 = vpop.f32.mrb[0].mxu0
  %v114 = vadd.f32 0.0, %v113
  %v115 = vpop.f32.mrb[0].mxu0
  %116 = vdwg.mxu0
  %v117 = vadd.f32 %v31, %v111
  %v118 = vadd.f32 %v32, %v114
  %vm119 = vcmask 261120
  %120 = vst.msk [vmem:[#allocation2] sm:$0xff] %vm119, %v117
  %121 = vst.msk [vmem:[#allocation2 + $0x8] sm:$0xff] %vm119, %v118
  // Predicated region
  $region30: #{text_encoder_forward.17} parent=0 // pred_check
    %p122 = pneg %p24
  $region31: #{text_encoder_forward.17} parent=0 // pred_check_branch
    %124 = sbr.rel (%p122) target = $region33
  $region32: #{text_encoder_forward.17} parent=0 // pred_region
    %v125 = vld [vmem:[#allocation2] sm:$0xff]
    %v126 = vld [vmem:[#allocation2 + $0x8] sm:$0xff]
    %v127 = vld [vmem:[%s2] sm:$0x1]
    %v129 = vlaneseq
    %v130 = vshrl.u32 %v129, 7
    %v131 = vsub.s32 0, %v130
    %v132 = vrot.slane %v127, %v131
    %v134 = vadd.f32 %v125, %v132
    %v135 = vadd.f32 %v126, %v132
    %v136 = vld [vmem:[%s3] sm:$0xf]
    %v137 = vld [vmem:[%s3 + $0x4] sm:$0xf]
    %v138 = vunpack.c.l.bf16 %v136
    %v139 = vunpack.c.l.bf16 %v137
    %v140 = vadd.f32 %v134, %v138
    %v141 = vadd.f32 %v135, %v139
    %v142 = vsel %vm119, %v140, 0.0
    %143 = vadd.xlane.f32.xlu0 %v142
    %v144 = vpop.xlane.xlu0 %143
    %v145 = vsel %vm119, %v141, 0.0
    %146 = vadd.xlane.f32.xlu0 %v145
    %v147 = vpop.xlane.xlu0 %146
    %v148 = vrcp.pop 32.0
    %v149 = vmul.f32 %v144, %v148
    %v150 = vmul.f32 %v147, %v148
    %v151 = vsub.f32 %v140, %v149
    %v152 = vsub.f32 %v141, %v150
    %v153 = vmul.f32 %v151, %v151
    %v154 = vmul.f32 %v152, %v152
    %v155 = vsel %vm119, %v153, 0.0
    %156 = vadd.xlane.f32.xlu0 %v155
    %v157 = vpop.xlane.xlu0 %156
    %v158 = vsel %vm119, %v154, 0.0
    %159 = vadd.xlane.f32.xlu0 %v158
    %v160 = vpop.xlane.xlu0 %159
    %v161 = vmul.f32 %v157, %v148
    %v162 = vmul.f32 %v160, %v148
    %v163 = vadd.f32 %v161, 1e-12
    %v164 = vadd.f32 %v162, 1e-12
    %v165 = vrsqrt.pop %v163
    %v166 = vrsqrt.pop %v164
    %v167 = vmul.f32 %v151, %v165
    %v168 = vmul.f32 %v152, %v166
    %v169 = vld [vmem:[%s4] sm:$0x1]
    %v171 = vlaneseq
    %v172 = vshrl.u32 %v171, 7
    %v173 = vsub.s32 0, %v172
    %v174 = vrot.slane %v169, %v173
    %v176 = vmul.f32 %v167, %v174
    %v177 = vmul.f32 %v168, %v174
    %v178 = vld [vmem:[%s5] sm:$0x1]
    %v180 = vlaneseq
    %v181 = vshrl.u32 %v180, 7
    %v182 = vsub.s32 0, %v181
    %v183 = vrot.slane %v178, %v182
    %v185 = vadd.f32 %v176, %v183
    %v186 = vadd.f32 %v177, %v183
    %v187 = vpack.c.bf16 %v186, %v185
    %v189 = vunpack.c.l.b16 %v187
    %v190 = vunpack.c.h.b16 %v187
    %v191 = vpack.c.b16 %v189, %v189
    %v192 = vpack.c.b16 %v190, %v190
    %vm195 = vcmask 257024
    %196 = vst.msk [vmem:[%s6] sm:$0xf] %vm195, %v191
    %197 = vst.msk [vmem:[%s6 + $0x4] sm:$0xf] %vm195, %v192
  $region33: #{text_encoder_forward.17} parent=0 // pred_fallthru
    _
  // Predicated region
  $region34: #{text_encoder_forward.17} parent=0 // pred_check
    _
  $region35: #{text_encoder_forward.17} parent=0 // pred_check_branch
    %199 = sbr.rel (0) target = $region37
  $region36: #{text_encoder_forward.17} parent=0 // pred_region
    _
  $region37: #{text_encoder_forward.17} parent=0 // pred_fallthru
    _
  // Predicated region
  $region38: #{text_encoder_forward.17} parent=0 // pred_check
    _
  $region39: #{text_encoder_forward.17} parent=0 // pred_check_branch
    %201 = sbr.rel (0) target = $region41
  $region40: #{text_encoder_forward.17} parent=0 // pred_region
    _
  $region41: #{text_encoder_forward.17} parent=0 // pred_fallthru
    _

</llo_original>
